<compile_context>
chip_gen: v6e
topology: v6e:2x2x1
jax: 0.10.0
libtpu: 0.0.40
codegen_flags: <defaults>
</compile_context>

<pallas_src>
import functools

import jax
import jax.numpy as jnp
from jax import lax
from jax.experimental import pallas as pl
from jax.experimental.pallas import tpu as pltpu

_EPS = 1e-5
_LANE = 128


def _round_up(x, m):
    return (x + m - 1) // m * m


# ----------------------------- kernel ---------------------------------------

def _down_kernel(x_ref, w1_ref, s1_ref, b1_ref, w2_ref, s2_ref, b2_ref,
                 wr_ref, br_ref, o_ref, y1pad_ref, *, h, w, use_channel_conv):
    """Fused MaxPool(2) -> conv3x3+BN+ReLU -> conv3x3+BN+ReLU -> +residual.

    x_ref    : (1, 2*(h+2), w+2, 2*Ci) bf16  (pool pairs folded into W / C)
    w1_ref   : (3, 3, Ci, Co) bf16 ;  w2_ref: (3, 3, Co, Co) bf16
    wr_ref   : (Ci, Co) bf16  (folded 1x1 conv + BN)
    s*/b*/br : (1, Co) f32  (folded BN scale / bias)
    o_ref    : (1, h*w, Co) f32
    y1pad_ref: (h+2, w+2, Co) f32 scratch (conv1 output with zero halo)
    """
    hp, wp = h + 2, w + 2
    ci = w1_ref.shape[2]
    co = w1_ref.shape[3]

    # ---- MaxPool2d(2) over the zero-bordered image (border pools to 0) -----
    z = x_ref[0].astype(jnp.float32)                     # (2*hp, wp, 2*ci)
    wmax = jnp.maximum(z[:, :, :ci], z[:, :, ci:])       # max over W pairs
    wmax = wmax.reshape(hp, 2, wp, ci)                   # split leading dim
    pooled_pad = jnp.maximum(wmax[:, 0], wmax[:, 1])     # (hp, wp, ci)

    # ---- conv1 (3x3, pad=1) + BN + ReLU -------------------------------------
    acc1 = jnp.zeros((h * w, co), jnp.float32)
    for dy in range(3):
        for dx in range(3):
            tap = pooled_pad[dy:dy + h, dx:dx + w, :].reshape(h * w, ci)
            acc1 += jnp.dot(tap.astype(jnp.bfloat16), w1_ref[dy, dx],
                            preferred_element_type=jnp.float32)
    y1 = jnp.maximum(acc1 * s1_ref[...] + b1_ref[...], 0.0)

    # stash conv1 output with a zero halo so conv2 taps are straight slices
    y1pad_ref[...] = jnp.zeros((hp, wp, co), jnp.float32)
    y1pad_ref[1:1 + h, 1:1 + w, :] = y1.reshape(h, w, co)

    # ---- conv2 (3x3, pad=1) + BN + ReLU -------------------------------------
    acc2 = jnp.zeros((h * w, co), jnp.float32)
    for dy in range(3):
        for dx in range(3):
            tap = y1pad_ref[dy:dy + h, dx:dx + w, :].reshape(h * w, co)
            acc2 += jnp.dot(tap.astype(jnp.bfloat16), w2_ref[dy, dx],
                            preferred_element_type=jnp.float32)
    y2 = jnp.maximum(acc2 * s2_ref[...] + b2_ref[...], 0.0)

    # ---- residual ------------------------------------------------------------
    pooled = pooled_pad[1:1 + h, 1:1 + w, :].reshape(h * w, ci)
    if use_channel_conv:   # folded 1x1 conv + BN
        res = jnp.dot(pooled.astype(jnp.bfloat16), wr_ref[...],
                      preferred_element_type=jnp.float32) + br_ref[...]
    else:                  # ci == co: plain VPU add, no identity matmul
        res = pooled

    o_ref[0] = y2 + res


# ----------------------------- wrapper ---------------------------------------

def _fold_bn(conv_bias, gamma, beta, mean, var):
    s = gamma / jnp.sqrt(var + _EPS)
    b = (conv_bias - mean) * s + beta
    return s, b


def _pad_to(x, axis, size):
    pad = [(0, 0)] * x.ndim
    pad[axis] = (0, size - x.shape[axis])
    return jnp.pad(x, pad)


def down_forward(x_nchw, params):
    N, in_ch, H0, W0 = x_nchw.shape
    out_ch = params["w1"].shape[-1]
    H, W = H0 // 2, W0 // 2
    ci = _round_up(in_ch, _LANE)        # lane-dense MXU K dim
    co = _round_up(out_ch, _LANE)       # lane-dense output / MXU N dim
    use_cc = in_ch != out_ch

    # input prep: NHWC, bf16, lane-pad channels, 2-px zero border, fold W pairs
    x = jnp.transpose(x_nchw, (0, 2, 3, 1)).astype(jnp.bfloat16)
    x = _pad_to(x, 3, ci)
    x = jnp.pad(x, ((0, 0), (2, 2), (2, 2), (0, 0)))
    x = x.reshape(N, 2 * (H + 2), W + 2, 2 * ci)   # contiguous reinterpretation

    # fold BN into per-channel scale/bias; lane-pad weights / vectors
    s1, b1 = _fold_bn(params["cb1"], params["g1"], params["be1"],
                      params["m1"], params["v1"])
    s2, b2 = _fold_bn(params["cb2"], params["g2"], params["be2"],
                      params["m2"], params["v2"])
    sr = params["gr"] / jnp.sqrt(params["vr"] + _EPS)
    wr = params["wr"] * sr[None, :]
    br = params["ber"] - params["mr"] * sr

    w1 = _pad_to(_pad_to(params["w1"], 2, ci), 3, co).astype(jnp.bfloat16)
    w2 = _pad_to(_pad_to(params["w2"], 2, co), 3, co).astype(jnp.bfloat16)
    wr = _pad_to(_pad_to(wr, 0, ci), 1, co).astype(jnp.bfloat16)

    def pad_vec(v):
        return _pad_to(v, 0, co).reshape(1, co).astype(jnp.float32)

    s1, b1, s2, b2, br = map(pad_vec, (s1, b1, s2, b2, br))

    kernel = functools.partial(_down_kernel, h=H, w=W, use_channel_conv=use_cc)

    flops = 2 * N * H * W * (9 * ci * co + 9 * co * co
                             + (ci * co if use_cc else 0))
    bytes_accessed = sum(int(a.size) * a.dtype.itemsize
                         for a in (x, w1, w2, wr, s1, b1, s2, b2, br))
    bytes_accessed += N * H * W * co * 4

    out = pl.pallas_call(
        kernel,
        out_shape=jax.ShapeDtypeStruct((N, H * W, co), jnp.float32),
        grid_spec=pltpu.PrefetchScalarGridSpec(
            num_scalar_prefetch=0,
            grid=(N,),
            in_specs=[
                pl.BlockSpec((1, 2 * (H + 2), W + 2, 2 * ci),
                             lambda n: (n, 0, 0, 0)),
                pl.BlockSpec((3, 3, ci, co), lambda n: (0, 0, 0, 0)),
                pl.BlockSpec((1, co), lambda n: (0, 0)),
                pl.BlockSpec((1, co), lambda n: (0, 0)),
                pl.BlockSpec((3, 3, co, co), lambda n: (0, 0, 0, 0)),
                pl.BlockSpec((1, co), lambda n: (0, 0)),
                pl.BlockSpec((1, co), lambda n: (0, 0)),
                pl.BlockSpec((ci, co), lambda n: (0, 0)),
                pl.BlockSpec((1, co), lambda n: (0, 0)),
            ],
            out_specs=pl.BlockSpec((1, H * W, co), lambda n: (n, 0, 0)),
            scratch_shapes=[pltpu.VMEM((H + 2, W + 2, co), jnp.float32)],
        ),
        compiler_params=pltpu.CompilerParams(
            dimension_semantics=("parallel",),
            vmem_limit_bytes=48 * 1024 * 1024,
        ),
        cost_estimate=pl.CostEstimate(flops=flops, transcendentals=0,
                                      bytes_accessed=bytes_accessed),
    )(x, w1, s1, b1, w2, s2, b2, wr, br)

    out = out.reshape(N, H, W, co)[..., :out_ch]
    return jnp.transpose(out, (0, 3, 1, 2))        # back to NCHW


# ----------------------------- params / reference ----------------------------

def init_params(key, in_ch, out_ch):
    ks = jax.random.split(key, 16)
    p = {}
    p["w1"] = 0.1 * jax.random.normal(ks[0], (3, 3, in_ch, out_ch), jnp.float32)
    p["cb1"] = 0.1 * jax.random.normal(ks[1], (out_ch,), jnp.float32)
    p["g1"] = 1.0 + 0.1 * jax.random.normal(ks[2], (out_ch,), jnp.float32)
    p["be1"] = 0.1 * jax.random.normal(ks[3], (out_ch,), jnp.float32)
    p["m1"] = 0.1 * jax.random.normal(ks[4], (out_ch,), jnp.float32)
    p["v1"] = 1.0 + 0.1 * jnp.abs(jax.random.normal(ks[5], (out_ch,), jnp.float32))

    p["w2"] = 0.1 * jax.random.normal(ks[6], (3, 3, out_ch, out_ch), jnp.float32)
    p["cb2"] = 0.1 * jax.random.normal(ks[7], (out_ch,), jnp.float32)
    p["g2"] = 1.0 + 0.1 * jax.random.normal(ks[8], (out_ch,), jnp.float32)
    p["be2"] = 0.1 * jax.random.normal(ks[9], (out_ch,), jnp.float32)
    p["m2"] = 0.1 * jax.random.normal(ks[10], (out_ch,), jnp.float32)
    p["v2"] = 1.0 + 0.1 * jnp.abs(jax.random.normal(ks[11], (out_ch,), jnp.float32))

    # residual 1x1 conv (no bias) + BN — only used if in_ch != out_ch
    p["wr"] = 0.1 * jax.random.normal(ks[12], (in_ch, out_ch), jnp.float32)
    p["gr"] = 1.0 + 0.1 * jax.random.normal(ks[13], (out_ch,), jnp.float32)
    p["ber"] = 0.1 * jax.random.normal(ks[14], (out_ch,), jnp.float32)
    p["mr"] = 0.1 * jax.random.normal(ks[15], (out_ch,), jnp.float32)
    p["vr"] = jnp.ones((out_ch,), jnp.float32)
    return p


def _reference(x_nchw, params):
    """Pure-JAX (f32) reference for the inference-mode Down block."""
    in_ch, out_ch = params["w1"].shape[2], params["w1"].shape[3]
    x = jnp.transpose(x_nchw, (0, 2, 3, 1))
    N, H0, W0, _ = x.shape
    H, W = H0 // 2, W0 // 2
    pooled = x.reshape(N, H, 2, W, 2, in_ch).max(axis=(2, 4))

    def conv_bn_relu(z, wgt, cb, g, be, m, v):
        y = lax.conv_general_dilated(z, wgt, (1, 1), "SAME",
                                     dimension_numbers=("NHWC", "HWIO", "NHWC"))
        y = (y + cb - m) / jnp.sqrt(v + _EPS) * g + be
        return jax.nn.relu(y)

    y1 = conv_bn_relu(pooled, params["w1"], params["cb1"], params["g1"],
                      params["be1"], params["m1"], params["v1"])
    y2 = conv_bn_relu(y1, params["w2"], params["cb2"], params["g2"],
                      params["be2"], params["m2"], params["v2"])
    if in_ch != out_ch:
        r = jnp.einsum("nhwc,co->nhwo", pooled, params["wr"])
        r = (r - params["mr"]) / jnp.sqrt(params["vr"] + _EPS) * params["gr"] \
            + params["ber"]
    else:
        r = pooled
    return jnp.transpose(y2 + r, (0, 3, 1, 2))


if __name__ == "__main__":
    key = jax.random.PRNGKey(0)
    kx, kp = jax.random.split(key)
    in_ch, out_ch = 4, 8
    x = jax.random.normal(kx, (2, in_ch, 16, 16), jnp.float32)
    params = init_params(kp, in_ch, out_ch)

    out = jax.jit(down_forward)(x, params)
    out = jax.block_until_ready(out)
    assert out.shape == (2, out_ch, 8, 8), out.shape
    assert bool(jnp.isfinite(out).all())

    ref = _reference(x, params)
    err = float(jnp.max(jnp.abs(out - ref)))
    assert err < 5e-2, f"max abs err vs reference: {err}"
    print("KERNEL_OK")
</pallas_src>

<mosaic_0001>
module attributes {stable_mosaic.version = 11 : i64} {
  func.func @_down_kernel(%arg0: i32, %arg1: memref<1x20x10x256xbf16, #tpu.memory_space<vmem>>, %arg2: memref<3x3x128x128xbf16, #tpu.memory_space<vmem>>, %arg3: memref<1x128xf32, #tpu.memory_space<vmem>>, %arg4: memref<1x128xf32, #tpu.memory_space<vmem>>, %arg5: memref<3x3x128x128xbf16, #tpu.memory_space<vmem>>, %arg6: memref<1x128xf32, #tpu.memory_space<vmem>>, %arg7: memref<1x128xf32, #tpu.memory_space<vmem>>, %arg8: memref<128x128xbf16, #tpu.memory_space<vmem>>, %arg9: memref<1x128xf32, #tpu.memory_space<vmem>>, %arg10: memref<1x64x128xf32, #tpu.memory_space<vmem>>, %arg11: memref<10x10x128xf32, #tpu.memory_space<vmem>>) attributes {dimension_semantics = [#tpu.dimension_semantics<parallel>], iteration_bounds = array<i64: 2>, scalar_prefetch = 0 : i64, scratch_operands = 1 : i64, tpu.core_type = #tpu.core_type<tc>, window_params = [{transform_indices = @transform_0, window_bounds = array<i64: 1, 20, 10, 256>}, {pipeline_mode = #tpu.pipeline_mode<synchronous>, transform_indices = @transform_1, window_bounds = array<i64: 3, 3, 128, 128>}, {pipeline_mode = #tpu.pipeline_mode<synchronous>, transform_indices = @transform_2, window_bounds = array<i64: 1, 128>}, {pipeline_mode = #tpu.pipeline_mode<synchronous>, transform_indices = @transform_3, window_bounds = array<i64: 1, 128>}, {pipeline_mode = #tpu.pipeline_mode<synchronous>, transform_indices = @transform_4, window_bounds = array<i64: 3, 3, 128, 128>}, {pipeline_mode = #tpu.pipeline_mode<synchronous>, transform_indices = @transform_5, window_bounds = array<i64: 1, 128>}, {pipeline_mode = #tpu.pipeline_mode<synchronous>, transform_indices = @transform_6, window_bounds = array<i64: 1, 128>}, {pipeline_mode = #tpu.pipeline_mode<synchronous>, transform_indices = @transform_7, window_bounds = array<i64: 128, 128>}, {pipeline_mode = #tpu.pipeline_mode<synchronous>, transform_indices = @transform_8, window_bounds = array<i64: 1, 128>}, {transform_indices = @transform_9, window_bounds = array<i64: 1, 64, 128>}]} {
    %c0 = arith.constant 0 : index
    %c0_0 = arith.constant 0 : index
    %c0_1 = arith.constant 0 : index
    %c0_2 = arith.constant 0 : index
    %0 = vector.load %arg1[%c0, %c0_0, %c0_1, %c0_2] : memref<1x20x10x256xbf16, #tpu.memory_space<vmem>>, vector<1x20x10x256xbf16>
    %1 = vector.shape_cast %0 : vector<1x20x10x256xbf16> to vector<20x10x256xbf16>
    %2 = arith.extf %1 : vector<20x10x256xbf16> to vector<20x10x256xf32>
    %3 = vector.extract_strided_slice %2 {offsets = [0, 0, 0], sizes = [20, 10, 128], strides = [1, 1, 1]} : vector<20x10x256xf32> to vector<20x10x128xf32>
    %4 = vector.extract_strided_slice %2 {offsets = [0, 0, 128], sizes = [20, 10, 128], strides = [1, 1, 1]} : vector<20x10x256xf32> to vector<20x10x128xf32>
    %5 = arith.maximumf %3, %4 : vector<20x10x128xf32>
    %6 = vector.shape_cast %5 : vector<20x10x128xf32> to vector<10x2x10x128xf32>
    %7 = vector.extract_strided_slice %6 {offsets = [0, 0, 0, 0], sizes = [10, 1, 10, 128], strides = [1, 1, 1, 1]} : vector<10x2x10x128xf32> to vector<10x1x10x128xf32>
    %8 = vector.shape_cast %7 : vector<10x1x10x128xf32> to vector<10x10x128xf32>
    %9 = vector.extract_strided_slice %6 {offsets = [0, 1, 0, 0], sizes = [10, 1, 10, 128], strides = [1, 1, 1, 1]} : vector<10x2x10x128xf32> to vector<10x1x10x128xf32>
    %10 = vector.shape_cast %9 : vector<10x1x10x128xf32> to vector<10x10x128xf32>
    %11 = arith.maximumf %8, %10 : vector<10x10x128xf32>
    %cst = arith.constant 0.000000e+00 : f32
    %12 = vector.broadcast %cst : f32 to vector<64x128xf32>
    %13 = vector.extract_strided_slice %11 {offsets = [0, 0, 0], sizes = [8, 8, 128], strides = [1, 1, 1]} : vector<10x10x128xf32> to vector<8x8x128xf32>
    %14 = vector.shape_cast %13 : vector<8x8x128xf32> to vector<64x128xf32>
    %15 = arith.truncf %14 : vector<64x128xf32> to vector<64x128xbf16>
    %c0_3 = arith.constant 0 : index
    %c0_4 = arith.constant 0 : index
    %c0_5 = arith.constant 0 : index
    %c0_6 = arith.constant 0 : index
    %16 = vector.load %arg2[%c0_3, %c0_4, %c0_5, %c0_6] : memref<3x3x128x128xbf16, #tpu.memory_space<vmem>>, vector<1x1x128x128xbf16>
    %17 = vector.shape_cast %16 : vector<1x1x128x128xbf16> to vector<128x128xbf16>
    %cst_7 = arith.constant dense<0.000000e+00> : vector<64x128xf32>
    %18 = tpu.matmul %15, %17, %cst_7 {dimension_numbers = #tpu.dot_dimension_numbers<[1], [0], [0], [1], [0, 0, 1, 1], [], []>} : vector<64x128xbf16>, vector<128x128xbf16>, vector<64x128xf32> -> vector<64x128xf32>
    %19 = arith.addf %12, %18 : vector<64x128xf32>
    %20 = vector.extract_strided_slice %11 {offsets = [0, 1, 0], sizes = [8, 8, 128], strides = [1, 1, 1]} : vector<10x10x128xf32> to vector<8x8x128xf32>
    %21 = vector.shape_cast %20 : vector<8x8x128xf32> to vector<64x128xf32>
    %22 = arith.truncf %21 : vector<64x128xf32> to vector<64x128xbf16>
    %c0_8 = arith.constant 0 : index
    %c1 = arith.constant 1 : index
    %c0_9 = arith.constant 0 : index
    %c0_10 = arith.constant 0 : index
    %23 = vector.load %arg2[%c0_8, %c1, %c0_9, %c0_10] : memref<3x3x128x128xbf16, #tpu.memory_space<vmem>>, vector<1x1x128x128xbf16>
    %24 = vector.shape_cast %23 : vector<1x1x128x128xbf16> to vector<128x128xbf16>
    %cst_11 = arith.constant dense<0.000000e+00> : vector<64x128xf32>
    %25 = tpu.matmul %22, %24, %cst_11 {dimension_numbers = #tpu.dot_dimension_numbers<[1], [0], [0], [1], [0, 0, 1, 1], [], []>} : vector<64x128xbf16>, vector<128x128xbf16>, vector<64x128xf32> -> vector<64x128xf32>
    %26 = arith.addf %19, %25 : vector<64x128xf32>
    %27 = vector.extract_strided_slice %11 {offsets = [0, 2, 0], sizes = [8, 8, 128], strides = [1, 1, 1]} : vector<10x10x128xf32> to vector<8x8x128xf32>
    %28 = vector.shape_cast %27 : vector<8x8x128xf32> to vector<64x128xf32>
    %29 = arith.truncf %28 : vector<64x128xf32> to vector<64x128xbf16>
    %c0_12 = arith.constant 0 : index
    %c2 = arith.constant 2 : index
    %c0_13 = arith.constant 0 : index
    %c0_14 = arith.constant 0 : index
    %30 = vector.load %arg2[%c0_12, %c2, %c0_13, %c0_14] : memref<3x3x128x128xbf16, #tpu.memory_space<vmem>>, vector<1x1x128x128xbf16>
    %31 = vector.shape_cast %30 : vector<1x1x128x128xbf16> to vector<128x128xbf16>
    %cst_15 = arith.constant dense<0.000000e+00> : vector<64x128xf32>
    %32 = tpu.matmul %29, %31, %cst_15 {dimension_numbers = #tpu.dot_dimension_numbers<[1], [0], [0], [1], [0, 0, 1, 1], [], []>} : vector<64x128xbf16>, vector<128x128xbf16>, vector<64x128xf32> -> vector<64x128xf32>
    %33 = arith.addf %26, %32 : vector<64x128xf32>
    %34 = vector.extract_strided_slice %11 {offsets = [1, 0, 0], sizes = [8, 8, 128], strides = [1, 1, 1]} : vector<10x10x128xf32> to vector<8x8x128xf32>
    %35 = vector.shape_cast %34 : vector<8x8x128xf32> to vector<64x128xf32>
    %36 = arith.truncf %35 : vector<64x128xf32> to vector<64x128xbf16>
    %c1_16 = arith.constant 1 : index
    %c0_17 = arith.constant 0 : index
    %c0_18 = arith.constant 0 : index
    %c0_19 = arith.constant 0 : index
    %37 = vector.load %arg2[%c1_16, %c0_17, %c0_18, %c0_19] : memref<3x3x128x128xbf16, #tpu.memory_space<vmem>>, vector<1x1x128x128xbf16>
    %38 = vector.shape_cast %37 : vector<1x1x128x128xbf16> to vector<128x128xbf16>
    %cst_20 = arith.constant dense<0.000000e+00> : vector<64x128xf32>
    %39 = tpu.matmul %36, %38, %cst_20 {dimension_numbers = #tpu.dot_dimension_numbers<[1], [0], [0], [1], [0, 0, 1, 1], [], []>} : vector<64x128xbf16>, vector<128x128xbf16>, vector<64x128xf32> -> vector<64x128xf32>
    %40 = arith.addf %33, %39 : vector<64x128xf32>
    %41 = vector.extract_strided_slice %11 {offsets = [1, 1, 0], sizes = [8, 8, 128], strides = [1, 1, 1]} : vector<10x10x128xf32> to vector<8x8x128xf32>
    %42 = vector.shape_cast %41 : vector<8x8x128xf32> to vector<64x128xf32>
    %43 = arith.truncf %42 : vector<64x128xf32> to vector<64x128xbf16>
    %c1_21 = arith.constant 1 : index
    %c1_22 = arith.constant 1 : index
    %c0_23 = arith.constant 0 : index
    %c0_24 = arith.constant 0 : index
    %44 = vector.load %arg2[%c1_21, %c1_22, %c0_23, %c0_24] : memref<3x3x128x128xbf16, #tpu.memory_space<vmem>>, vector<1x1x128x128xbf16>
    %45 = vector.shape_cast %44 : vector<1x1x128x128xbf16> to vector<128x128xbf16>
    %cst_25 = arith.constant dense<0.000000e+00> : vector<64x128xf32>
    %46 = tpu.matmul %43, %45, %cst_25 {dimension_numbers = #tpu.dot_dimension_numbers<[1], [0], [0], [1], [0, 0, 1, 1], [], []>} : vector<64x128xbf16>, vector<128x128xbf16>, vector<64x128xf32> -> vector<64x128xf32>
    %47 = arith.addf %40, %46 : vector<64x128xf32>
    %48 = vector.extract_strided_slice %11 {offsets = [1, 2, 0], sizes = [8, 8, 128], strides = [1, 1, 1]} : vector<10x10x128xf32> to vector<8x8x128xf32>
    %49 = vector.shape_cast %48 : vector<8x8x128xf32> to vector<64x128xf32>
    %50 = arith.truncf %49 : vector<64x128xf32> to vector<64x128xbf16>
    %c1_26 = arith.constant 1 : index
    %c2_27 = arith.constant 2 : index
    %c0_28 = arith.constant 0 : index
    %c0_29 = arith.constant 0 : index
    %51 = vector.load %arg2[%c1_26, %c2_27, %c0_28, %c0_29] : memref<3x3x128x128xbf16, #tpu.memory_space<vmem>>, vector<1x1x128x128xbf16>
    %52 = vector.shape_cast %51 : vector<1x1x128x128xbf16> to vector<128x128xbf16>
    %cst_30 = arith.constant dense<0.000000e+00> : vector<64x128xf32>
    %53 = tpu.matmul %50, %52, %cst_30 {dimension_numbers = #tpu.dot_dimension_numbers<[1], [0], [0], [1], [0, 0, 1, 1], [], []>} : vector<64x128xbf16>, vector<128x128xbf16>, vector<64x128xf32> -> vector<64x128xf32>
    %54 = arith.addf %47, %53 : vector<64x128xf32>
    %55 = vector.extract_strided_slice %11 {offsets = [2, 0, 0], sizes = [8, 8, 128], strides = [1, 1, 1]} : vector<10x10x128xf32> to vector<8x8x128xf32>
    %56 = vector.shape_cast %55 : vector<8x8x128xf32> to vector<64x128xf32>
    %57 = arith.truncf %56 : vector<64x128xf32> to vector<64x128xbf16>
    %c2_31 = arith.constant 2 : index
    %c0_32 = arith.constant 0 : index
    %c0_33 = arith.constant 0 : index
    %c0_34 = arith.constant 0 : index
    %58 = vector.load %arg2[%c2_31, %c0_32, %c0_33, %c0_34] : memref<3x3x128x128xbf16, #tpu.memory_space<vmem>>, vector<1x1x128x128xbf16>
    %59 = vector.shape_cast %58 : vector<1x1x128x128xbf16> to vector<128x128xbf16>
    %cst_35 = arith.constant dense<0.000000e+00> : vector<64x128xf32>
    %60 = tpu.matmul %57, %59, %cst_35 {dimension_numbers = #tpu.dot_dimension_numbers<[1], [0], [0], [1], [0, 0, 1, 1], [], []>} : vector<64x128xbf16>, vector<128x128xbf16>, vector<64x128xf32> -> vector<64x128xf32>
    %61 = arith.addf %54, %60 : vector<64x128xf32>
    %62 = vector.extract_strided_slice %11 {offsets = [2, 1, 0], sizes = [8, 8, 128], strides = [1, 1, 1]} : vector<10x10x128xf32> to vector<8x8x128xf32>
    %63 = vector.shape_cast %62 : vector<8x8x128xf32> to vector<64x128xf32>
    %64 = arith.truncf %63 : vector<64x128xf32> to vector<64x128xbf16>
    %c2_36 = arith.constant 2 : index
    %c1_37 = arith.constant 1 : index
    %c0_38 = arith.constant 0 : index
    %c0_39 = arith.constant 0 : index
    %65 = vector.load %arg2[%c2_36, %c1_37, %c0_38, %c0_39] : memref<3x3x128x128xbf16, #tpu.memory_space<vmem>>, vector<1x1x128x128xbf16>
    %66 = vector.shape_cast %65 : vector<1x1x128x128xbf16> to vector<128x128xbf16>
    %cst_40 = arith.constant dense<0.000000e+00> : vector<64x128xf32>
    %67 = tpu.matmul %64, %66, %cst_40 {dimension_numbers = #tpu.dot_dimension_numbers<[1], [0], [0], [1], [0, 0, 1, 1], [], []>} : vector<64x128xbf16>, vector<128x128xbf16>, vector<64x128xf32> -> vector<64x128xf32>
    %68 = arith.addf %61, %67 : vector<64x128xf32>
    %69 = vector.extract_strided_slice %11 {offsets = [2, 2, 0], sizes = [8, 8, 128], strides = [1, 1, 1]} : vector<10x10x128xf32> to vector<8x8x128xf32>
    %70 = vector.shape_cast %69 : vector<8x8x128xf32> to vector<64x128xf32>
    %71 = arith.truncf %70 : vector<64x128xf32> to vector<64x128xbf16>
    %c2_41 = arith.constant 2 : index
    %c2_42 = arith.constant 2 : index
    %c0_43 = arith.constant 0 : index
    %c0_44 = arith.constant 0 : index
    %72 = vector.load %arg2[%c2_41, %c2_42, %c0_43, %c0_44] : memref<3x3x128x128xbf16, #tpu.memory_space<vmem>>, vector<1x1x128x128xbf16>
    %73 = vector.shape_cast %72 : vector<1x1x128x128xbf16> to vector<128x128xbf16>
    %cst_45 = arith.constant dense<0.000000e+00> : vector<64x128xf32>
    %74 = tpu.matmul %71, %73, %cst_45 {dimension_numbers = #tpu.dot_dimension_numbers<[1], [0], [0], [1], [0, 0, 1, 1], [], []>} : vector<64x128xbf16>, vector<128x128xbf16>, vector<64x128xf32> -> vector<64x128xf32>
    %75 = arith.addf %68, %74 : vector<64x128xf32>
    %c0_46 = arith.constant 0 : index
    %c0_47 = arith.constant 0 : index
    %76 = vector.load %arg3[%c0_46, %c0_47] : memref<1x128xf32, #tpu.memory_space<vmem>>, vector<1x128xf32>
    %77 = vector.broadcast %76 : vector<1x128xf32> to vector<64x128xf32>
    %78 = arith.mulf %75, %77 : vector<64x128xf32>
    %c0_48 = arith.constant 0 : index
    %c0_49 = arith.constant 0 : index
    %79 = vector.load %arg4[%c0_48, %c0_49] : memref<1x128xf32, #tpu.memory_space<vmem>>, vector<1x128xf32>
    %80 = vector.broadcast %79 : vector<1x128xf32> to vector<64x128xf32>
    %81 = arith.addf %78, %80 : vector<64x128xf32>
    %cst_50 = arith.constant 0.000000e+00 : f32
    %82 = vector.broadcast %cst_50 : f32 to vector<64x128xf32>
    %83 = arith.maximumf %81, %82 : vector<64x128xf32>
    %cst_51 = arith.constant 0.000000e+00 : f32
    %84 = vector.broadcast %cst_51 : f32 to vector<10x10x128xf32>
    %c0_52 = arith.constant 0 : index
    %c0_53 = arith.constant 0 : index
    %c0_54 = arith.constant 0 : index
    %85 = vector.load %arg11[%c0_52, %c0_53, %c0_54] : memref<10x10x128xf32, #tpu.memory_space<vmem>>, vector<10x10x128xf32>
    tpu.vector_store %arg11[%c0_52, %c0_53, %c0_54], %84 {strides = array<i32>} : memref<10x10x128xf32, #tpu.memory_space<vmem>>, vector<10x10x128xf32>,
    %86 = vector.shape_cast %83 : vector<64x128xf32> to vector<8x8x128xf32>
    %c1_55 = arith.constant 1 : index
    %c1_56 = arith.constant 1 : index
    %c0_57 = arith.constant 0 : index
    %87 = vector.load %arg11[%c1_55, %c1_56, %c0_57] : memref<10x10x128xf32, #tpu.memory_space<vmem>>, vector<8x8x128xf32>
    tpu.vector_store %arg11[%c1_55, %c1_56, %c0_57], %86 {strides = array<i32>} : memref<10x10x128xf32, #tpu.memory_space<vmem>>, vector<8x8x128xf32>,
    %cst_58 = arith.constant 0.000000e+00 : f32
    %88 = vector.broadcast %cst_58 : f32 to vector<64x128xf32>
    %c0_59 = arith.constant 0 : index
    %c0_60 = arith.constant 0 : index
    %c0_61 = arith.constant 0 : index
    %89 = vector.load %arg11[%c0_59, %c0_60, %c0_61] : memref<10x10x128xf32, #tpu.memory_space<vmem>>, vector<8x8x128xf32>
    %90 = vector.shape_cast %89 : vector<8x8x128xf32> to vector<64x128xf32>
    %91 = arith.truncf %90 : vector<64x128xf32> to vector<64x128xbf16>
    %c0_62 = arith.constant 0 : index
    %c0_63 = arith.constant 0 : index
    %c0_64 = arith.constant 0 : index
    %c0_65 = arith.constant 0 : index
    %92 = vector.load %arg5[%c0_62, %c0_63, %c0_64, %c0_65] : memref<3x3x128x128xbf16, #tpu.memory_space<vmem>>, vector<1x1x128x128xbf16>
    %93 = vector.shape_cast %92 : vector<1x1x128x128xbf16> to vector<128x128xbf16>
    %cst_66 = arith.constant dense<0.000000e+00> : vector<64x128xf32>
    %94 = tpu.matmul %91, %93, %cst_66 {dimension_numbers = #tpu.dot_dimension_numbers<[1], [0], [0], [1], [0, 0, 1, 1], [], []>} : vector<64x128xbf16>, vector<128x128xbf16>, vector<64x128xf32> -> vector<64x128xf32>
    %95 = arith.addf %88, %94 : vector<64x128xf32>
    %c0_67 = arith.constant 0 : index
    %c1_68 = arith.constant 1 : index
    %c0_69 = arith.constant 0 : index
    %96 = vector.load %arg11[%c0_67, %c1_68, %c0_69] : memref<10x10x128xf32, #tpu.memory_space<vmem>>, vector<8x8x128xf32>
    %97 = vector.shape_cast %96 : vector<8x8x128xf32> to vector<64x128xf32>
    %98 = arith.truncf %97 : vector<64x128xf32> to vector<64x128xbf16>
    %c0_70 = arith.constant 0 : index
    %c1_71 = arith.constant 1 : index
    %c0_72 = arith.constant 0 : index
    %c0_73 = arith.constant 0 : index
    %99 = vector.load %arg5[%c0_70, %c1_71, %c0_72, %c0_73] : memref<3x3x128x128xbf16, #tpu.memory_space<vmem>>, vector<1x1x128x128xbf16>
    %100 = vector.shape_cast %99 : vector<1x1x128x128xbf16> to vector<128x128xbf16>
    %cst_74 = arith.constant dense<0.000000e+00> : vector<64x128xf32>
    %101 = tpu.matmul %98, %100, %cst_74 {dimension_numbers = #tpu.dot_dimension_numbers<[1], [0], [0], [1], [0, 0, 1, 1], [], []>} : vector<64x128xbf16>, vector<128x128xbf16>, vector<64x128xf32> -> vector<64x128xf32>
    %102 = arith.addf %95, %101 : vector<64x128xf32>
    %c0_75 = arith.constant 0 : index
    %c2_76 = arith.constant 2 : index
    %c0_77 = arith.constant 0 : index
    %103 = vector.load %arg11[%c0_75, %c2_76, %c0_77] : memref<10x10x128xf32, #tpu.memory_space<vmem>>, vector<8x8x128xf32>
    %104 = vector.shape_cast %103 : vector<8x8x128xf32> to vector<64x128xf32>
    %105 = arith.truncf %104 : vector<64x128xf32> to vector<64x128xbf16>
    %c0_78 = arith.constant 0 : index
    %c2_79 = arith.constant 2 : index
    %c0_80 = arith.constant 0 : index
    %c0_81 = arith.constant 0 : index
    %106 = vector.load %arg5[%c0_78, %c2_79, %c0_80, %c0_81] : memref<3x3x128x128xbf16, #tpu.memory_space<vmem>>, vector<1x1x128x128xbf16>
    %107 = vector.shape_cast %106 : vector<1x1x128x128xbf16> to vector<128x128xbf16>
    %cst_82 = arith.constant dense<0.000000e+00> : vector<64x128xf32>
    %108 = tpu.matmul %105, %107, %cst_82 {dimension_numbers = #tpu.dot_dimension_numbers<[1], [0], [0], [1], [0, 0, 1, 1], [], []>} : vector<64x128xbf16>, vector<128x128xbf16>, vector<64x128xf32> -> vector<64x128xf32>
    %109 = arith.addf %102, %108 : vector<64x128xf32>
    %c1_83 = arith.constant 1 : index
    %c0_84 = arith.constant 0 : index
    %c0_85 = arith.constant 0 : index
    %110 = vector.load %arg11[%c1_83, %c0_84, %c0_85] : memref<10x10x128xf32, #tpu.memory_space<vmem>>, vector<8x8x128xf32>
    %111 = vector.shape_cast %110 : vector<8x8x128xf32> to vector<64x128xf32>
    %112 = arith.truncf %111 : vector<64x128xf32> to vector<64x128xbf16>
    %c1_86 = arith.constant 1 : index
    %c0_87 = arith.constant 0 : index
    %c0_88 = arith.constant 0 : index
    %c0_89 = arith.constant 0 : index
    %113 = vector.load %arg5[%c1_86, %c0_87, %c0_88, %c0_89] : memref<3x3x128x128xbf16, #tpu.memory_space<vmem>>, vector<1x1x128x128xbf16>
    %114 = vector.shape_cast %113 : vector<1x1x128x128xbf16> to vector<128x128xbf16>
    %cst_90 = arith.constant dense<0.000000e+00> : vector<64x128xf32>
    %115 = tpu.matmul %112, %114, %cst_90 {dimension_numbers = #tpu.dot_dimension_numbers<[1], [0], [0], [1], [0, 0, 1, 1], [], []>} : vector<64x128xbf16>, vector<128x128xbf16>, vector<64x128xf32> -> vector<64x128xf32>
    %116 = arith.addf %109, %115 : vector<64x128xf32>
    %c1_91 = arith.constant 1 : index
    %c1_92 = arith.constant 1 : index
    %c0_93 = arith.constant 0 : index
    %117 = vector.load %arg11[%c1_91, %c1_92, %c0_93] : memref<10x10x128xf32, #tpu.memory_space<vmem>>, vector<8x8x128xf32>
    %118 = vector.shape_cast %117 : vector<8x8x128xf32> to vector<64x128xf32>
    %119 = arith.truncf %118 : vector<64x128xf32> to vector<64x128xbf16>
    %c1_94 = arith.constant 1 : index
    %c1_95 = arith.constant 1 : index
    %c0_96 = arith.constant 0 : index
    %c0_97 = arith.constant 0 : index
    %120 = vector.load %arg5[%c1_94, %c1_95, %c0_96, %c0_97] : memref<3x3x128x128xbf16, #tpu.memory_space<vmem>>, vector<1x1x128x128xbf16>
    %121 = vector.shape_cast %120 : vector<1x1x128x128xbf16> to vector<128x128xbf16>
    %cst_98 = arith.constant dense<0.000000e+00> : vector<64x128xf32>
    %122 = tpu.matmul %119, %121, %cst_98 {dimension_numbers = #tpu.dot_dimension_numbers<[1], [0], [0], [1], [0, 0, 1, 1], [], []>} : vector<64x128xbf16>, vector<128x128xbf16>, vector<64x128xf32> -> vector<64x128xf32>
    %123 = arith.addf %116, %122 : vector<64x128xf32>
    %c1_99 = arith.constant 1 : index
    %c2_100 = arith.constant 2 : index
    %c0_101 = arith.constant 0 : index
    %124 = vector.load %arg11[%c1_99, %c2_100, %c0_101] : memref<10x10x128xf32, #tpu.memory_space<vmem>>, vector<8x8x128xf32>
    %125 = vector.shape_cast %124 : vector<8x8x128xf32> to vector<64x128xf32>
    %126 = arith.truncf %125 : vector<64x128xf32> to vector<64x128xbf16>
    %c1_102 = arith.constant 1 : index
    %c2_103 = arith.constant 2 : index
    %c0_104 = arith.constant 0 : index
    %c0_105 = arith.constant 0 : index
    %127 = vector.load %arg5[%c1_102, %c2_103, %c0_104, %c0_105] : memref<3x3x128x128xbf16, #tpu.memory_space<vmem>>, vector<1x1x128x128xbf16>
    %128 = vector.shape_cast %127 : vector<1x1x128x128xbf16> to vector<128x128xbf16>
    %cst_106 = arith.constant dense<0.000000e+00> : vector<64x128xf32>
    %129 = tpu.matmul %126, %128, %cst_106 {dimension_numbers = #tpu.dot_dimension_numbers<[1], [0], [0], [1], [0, 0, 1, 1], [], []>} : vector<64x128xbf16>, vector<128x128xbf16>, vector<64x128xf32> -> vector<64x128xf32>
    %130 = arith.addf %123, %129 : vector<64x128xf32>
    %c2_107 = arith.constant 2 : index
    %c0_108 = arith.constant 0 : index
    %c0_109 = arith.constant 0 : index
    %131 = vector.load %arg11[%c2_107, %c0_108, %c0_109] : memref<10x10x128xf32, #tpu.memory_space<vmem>>, vector<8x8x128xf32>
    %132 = vector.shape_cast %131 : vector<8x8x128xf32> to vector<64x128xf32>
    %133 = arith.truncf %132 : vector<64x128xf32> to vector<64x128xbf16>
    %c2_110 = arith.constant 2 : index
    %c0_111 = arith.constant 0 : index
    %c0_112 = arith.constant 0 : index
    %c0_113 = arith.constant 0 : index
    %134 = vector.load %arg5[%c2_110, %c0_111, %c0_112, %c0_113] : memref<3x3x128x128xbf16, #tpu.memory_space<vmem>>, vector<1x1x128x128xbf16>
    %135 = vector.shape_cast %134 : vector<1x1x128x128xbf16> to vector<128x128xbf16>
    %cst_114 = arith.constant dense<0.000000e+00> : vector<64x128xf32>
    %136 = tpu.matmul %133, %135, %cst_114 {dimension_numbers = #tpu.dot_dimension_numbers<[1], [0], [0], [1], [0, 0, 1, 1], [], []>} : vector<64x128xbf16>, vector<128x128xbf16>, vector<64x128xf32> -> vector<64x128xf32>
    %137 = arith.addf %130, %136 : vector<64x128xf32>
    %c2_115 = arith.constant 2 : index
    %c1_116 = arith.constant 1 : index
    %c0_117 = arith.constant 0 : index
    %138 = vector.load %arg11[%c2_115, %c1_116, %c0_117] : memref<10x10x128xf32, #tpu.memory_space<vmem>>, vector<8x8x128xf32>
    %139 = vector.shape_cast %138 : vector<8x8x128xf32> to vector<64x128xf32>
    %140 = arith.truncf %139 : vector<64x128xf32> to vector<64x128xbf16>
    %c2_118 = arith.constant 2 : index
    %c1_119 = arith.constant 1 : index
    %c0_120 = arith.constant 0 : index
    %c0_121 = arith.constant 0 : index
    %141 = vector.load %arg5[%c2_118, %c1_119, %c0_120, %c0_121] : memref<3x3x128x128xbf16, #tpu.memory_space<vmem>>, vector<1x1x128x128xbf16>
    %142 = vector.shape_cast %141 : vector<1x1x128x128xbf16> to vector<128x128xbf16>
    %cst_122 = arith.constant dense<0.000000e+00> : vector<64x128xf32>
    %143 = tpu.matmul %140, %142, %cst_122 {dimension_numbers = #tpu.dot_dimension_numbers<[1], [0], [0], [1], [0, 0, 1, 1], [], []>} : vector<64x128xbf16>, vector<128x128xbf16>, vector<64x128xf32> -> vector<64x128xf32>
    %144 = arith.addf %137, %143 : vector<64x128xf32>
    %c2_123 = arith.constant 2 : index
    %c2_124 = arith.constant 2 : index
    %c0_125 = arith.constant 0 : index
    %145 = vector.load %arg11[%c2_123, %c2_124, %c0_125] : memref<10x10x128xf32, #tpu.memory_space<vmem>>, vector<8x8x128xf32>
    %146 = vector.shape_cast %145 : vector<8x8x128xf32> to vector<64x128xf32>
    %147 = arith.truncf %146 : vector<64x128xf32> to vector<64x128xbf16>
    %c2_126 = arith.constant 2 : index
    %c2_127 = arith.constant 2 : index
    %c0_128 = arith.constant 0 : index
    %c0_129 = arith.constant 0 : index
    %148 = vector.load %arg5[%c2_126, %c2_127, %c0_128, %c0_129] : memref<3x3x128x128xbf16, #tpu.memory_space<vmem>>, vector<1x1x128x128xbf16>
    %149 = vector.shape_cast %148 : vector<1x1x128x128xbf16> to vector<128x128xbf16>
    %cst_130 = arith.constant dense<0.000000e+00> : vector<64x128xf32>
    %150 = tpu.matmul %147, %149, %cst_130 {dimension_numbers = #tpu.dot_dimension_numbers<[1], [0], [0], [1], [0, 0, 1, 1], [], []>} : vector<64x128xbf16>, vector<128x128xbf16>, vector<64x128xf32> -> vector<64x128xf32>
    %151 = arith.addf %144, %150 : vector<64x128xf32>
    %c0_131 = arith.constant 0 : index
    %c0_132 = arith.constant 0 : index
    %152 = vector.load %arg6[%c0_131, %c0_132] : memref<1x128xf32, #tpu.memory_space<vmem>>, vector<1x128xf32>
    %153 = vector.broadcast %152 : vector<1x128xf32> to vector<64x128xf32>
    %154 = arith.mulf %151, %153 : vector<64x128xf32>
    %c0_133 = arith.constant 0 : index
    %c0_134 = arith.constant 0 : index
    %155 = vector.load %arg7[%c0_133, %c0_134] : memref<1x128xf32, #tpu.memory_space<vmem>>, vector<1x128xf32>
    %156 = vector.broadcast %155 : vector<1x128xf32> to vector<64x128xf32>
    %157 = arith.addf %154, %156 : vector<64x128xf32>
    %cst_135 = arith.constant 0.000000e+00 : f32
    %158 = vector.broadcast %cst_135 : f32 to vector<64x128xf32>
    %159 = arith.maximumf %157, %158 : vector<64x128xf32>
    %160 = vector.extract_strided_slice %11 {offsets = [1, 1, 0], sizes = [8, 8, 128], strides = [1, 1, 1]} : vector<10x10x128xf32> to vector<8x8x128xf32>
    %161 = vector.shape_cast %160 : vector<8x8x128xf32> to vector<64x128xf32>
    %162 = arith.truncf %161 : vector<64x128xf32> to vector<64x128xbf16>
    %c0_136 = arith.constant 0 : index
    %c0_137 = arith.constant 0 : index
    %163 = vector.load %arg8[%c0_136, %c0_137] : memref<128x128xbf16, #tpu.memory_space<vmem>>, vector<128x128xbf16>
    %cst_138 = arith.constant dense<0.000000e+00> : vector<64x128xf32>
    %164 = tpu.matmul %162, %163, %cst_138 {dimension_numbers = #tpu.dot_dimension_numbers<[1], [0], [0], [1], [0, 0, 1, 1], [], []>} : vector<64x128xbf16>, vector<128x128xbf16>, vector<64x128xf32> -> vector<64x128xf32>
    %c0_139 = arith.constant 0 : index
    %c0_140 = arith.constant 0 : index
    %165 = vector.load %arg9[%c0_139, %c0_140] : memref<1x128xf32, #tpu.memory_space<vmem>>, vector<1x128xf32>
    %166 = vector.broadcast %165 : vector<1x128xf32> to vector<64x128xf32>
    %167 = arith.addf %164, %166 : vector<64x128xf32>
    %168 = arith.addf %159, %167 : vector<64x128xf32>
    %c0_141 = arith.constant 0 : index
    %c0_142 = arith.constant 0 : index
    %c0_143 = arith.constant 0 : index
    %169 = vector.load %arg10[%c0_141, %c0_142, %c0_143] : memref<1x64x128xf32, #tpu.memory_space<vmem>>, vector<1x64x128xf32>
    %170 = vector.shape_cast %169 : vector<1x64x128xf32> to vector<64x128xf32>
    %171 = vector.shape_cast %168 : vector<64x128xf32> to vector<1x64x128xf32>
    tpu.vector_store %arg10[%c0_141, %c0_142, %c0_143], %171 {strides = array<i32>} : memref<1x64x128xf32, #tpu.memory_space<vmem>>, vector<1x64x128xf32>,
    return
  }
  func.func @transform_0(%arg0: i32) -> (i32, i32, i32, i32) {
    %c0_i32 = arith.constant 0 : i32
    %c0_i32_0 = arith.constant 0 : i32
    %c0_i32_1 = arith.constant 0 : i32
    %c0_i32_2 = arith.constant 0 : i32
    return %arg0, %c0_i32, %c0_i32_0, %c0_i32_1 : i32, i32, i32, i32
  }
  func.func @transform_1(%arg0: i32) -> (i32, i32, i32, i32) {
    %c0_i32 = arith.constant 0 : i32
    %c0_i32_0 = arith.constant 0 : i32
    %c0_i32_1 = arith.constant 0 : i32
    %c0_i32_2 = arith.constant 0 : i32
    %c0_i32_3 = arith.constant 0 : i32
    return %c0_i32, %c0_i32_0, %c0_i32_1, %c0_i32_2 : i32, i32, i32, i32
  }
  func.func @transform_2(%arg0: i32) -> (i32, i32) {
    %c0_i32 = arith.constant 0 : i32
    %c0_i32_0 = arith.constant 0 : i32
    %c0_i32_1 = arith.constant 0 : i32
    return %c0_i32, %c0_i32_0 : i32, i32
  }
  func.func @transform_3(%arg0: i32) -> (i32, i32) {
    %c0_i32 = arith.constant 0 : i32
    %c0_i32_0 = arith.constant 0 : i32
    %c0_i32_1 = arith.constant 0 : i32
    return %c0_i32, %c0_i32_0 : i32, i32
  }
  func.func @transform_4(%arg0: i32) -> (i32, i32, i32, i32) {
    %c0_i32 = arith.constant 0 : i32
    %c0_i32_0 = arith.constant 0 : i32
    %c0_i32_1 = arith.constant 0 : i32
    %c0_i32_2 = arith.constant 0 : i32
    %c0_i32_3 = arith.constant 0 : i32
    return %c0_i32, %c0_i32_0, %c0_i32_1, %c0_i32_2 : i32, i32, i32, i32
  }
  func.func @transform_5(%arg0: i32) -> (i32, i32) {
    %c0_i32 = arith.constant 0 : i32
    %c0_i32_0 = arith.constant 0 : i32
    %c0_i32_1 = arith.constant 0 : i32
    return %c0_i32, %c0_i32_0 : i32, i32
  }
  func.func @transform_6(%arg0: i32) -> (i32, i32) {
    %c0_i32 = arith.constant 0 : i32
    %c0_i32_0 = arith.constant 0 : i32
    %c0_i32_1 = arith.constant 0 : i32
    return %c0_i32, %c0_i32_0 : i32, i32
  }
  func.func @transform_7(%arg0: i32) -> (i32, i32) {
    %c0_i32 = arith.constant 0 : i32
    %c0_i32_0 = arith.constant 0 : i32
    %c0_i32_1 = arith.constant 0 : i32
    return %c0_i32, %c0_i32_0 : i32, i32
  }
  func.func @transform_8(%arg0: i32) -> (i32, i32) {
    %c0_i32 = arith.constant 0 : i32
    %c0_i32_0 = arith.constant 0 : i32
    %c0_i32_1 = arith.constant 0 : i32
    return %c0_i32, %c0_i32_0 : i32, i32
  }
  func.func @transform_9(%arg0: i32) -> (i32, i32, i32) {
    %c0_i32 = arith.constant 0 : i32
    %c0_i32_0 = arith.constant 0 : i32
    %c0_i32_1 = arith.constant 0 : i32
    return %arg0, %c0_i32, %c0_i32_0 : i32, i32, i32
  }
}

</mosaic_0001>

<llo_original>
// kernel: down_forward.1
$region0: #{down_forward.1}
  #allocation0 [shape = 'u32[]', space=smem, size = 0x4, offset = 0x4, fixed_abs, tag = 'smem constant byte address 0x4 - core index']
  #allocation1 [shape = 'u32[144,128]{1,0:T(1,128)}', space=vmem, size = 0x12000, scoped, tag = 'internal scratch']
  #allocation2 [shape = 'f32[10,10,128]{2,1,0:T(8,128)}', space=vmem, size = 0x14000, scoped, tag = 'scratch operand']
  %s0 = inlined_call_operand.vmem [shape: bf16[2,20,10,256], index: 0, kind: input, shape index: {}]
  %s1 = inlined_call_operand.vmem [shape: bf16[3,3,128,128], index: 1, kind: input, shape index: {}]
  %s2 = inlined_call_operand.vmem [shape: f32[1,128], index: 2, kind: input, shape index: {}]
  %s3 = inlined_call_operand.vmem [shape: f32[1,128], index: 3, kind: input, shape index: {}]
  %s4 = inlined_call_operand.vmem [shape: bf16[3,3,128,128], index: 4, kind: input, shape index: {}]
  %s5 = inlined_call_operand.vmem [shape: f32[1,128], index: 5, kind: input, shape index: {}]
  %s6 = inlined_call_operand.vmem [shape: f32[1,128], index: 6, kind: input, shape index: {}]
  %s7 = inlined_call_operand.vmem [shape: bf16[128,128], index: 7, kind: input, shape index: {}]
  %s8 = inlined_call_operand.vmem [shape: f32[1,128], index: 8, kind: input, shape index: {}]
  %s9 = inlined_call_operand.vmem [shape: f32[2,64,128], index: 9, kind: output, shape index: {}]
  %s10 = sld [smem:[#allocation0]]
  $region69: #{down_forward.1} parent=0
    _
  %s12 = ssub.s32 1, %s10
  %s13 = scalar_select 0, %s12, %s10
  loop: start=0, step=1, limit=4
  $region2: #{down_forward.1} parent=0 // loop_pre_header
    _
  $region3: #{down_forward.1} parent=0 // loop_header
    %s15 = sphi 0, %s19
    %p16 = scmp.ge.s32.totalorder %s15, 4
    %s25 = sphi 0, %s27
    %s28 = sphi 0, %s25
    %s29 = sphi 0, %s28
    %s45 = sphi 0, %s29
    %s49 = sphi 0, %s49
    %s51 = sphi 0, %s49
    %s52 = sphi 0, %s51
    %s66 = sphi 0, %s52
    %s70 = sphi 0, %s70
    %s72 = sphi 0, %s70
    %s73 = sphi 0, %s72
    %s87 = sphi 0, %s73
    %s91 = sphi 0, %s91
    %s93 = sphi 0, %s91
    %s94 = sphi 0, %s93
    %s108 = sphi 0, %s94
    %s112 = sphi 0, %s112
    %s114 = sphi 0, %s112
    %s115 = sphi 0, %s114
    %s129 = sphi 0, %s115
    %s133 = sphi 0, %s133
    %s135 = sphi 0, %s133
    %s136 = sphi 0, %s135
    %s150 = sphi 0, %s136
    %s154 = sphi 0, %s154
    %s156 = sphi 0, %s154
    %s157 = sphi 0, %s156
    %s171 = sphi 0, %s157
    %s175 = sphi 0, %s175
    %s177 = sphi 0, %s175
    %s178 = sphi 0, %s177
    %s192 = sphi 0, %s178
    %s196 = sphi 0, %s196
    %s198 = sphi 0, %s196
    %s199 = sphi 0, %s198
    %s213 = sphi 0, %s199
    %s219 = sphi 0, %s221
    %s222 = sphi 0, %s219
    %s223 = sphi 0, %s222
    %s239 = sphi 0, %s223
  $region4: #{down_forward.1} parent=0 // loop_header_branch
    %18 = sbr.rel (%p16) target = $region8
  $region5: #{down_forward.1} parent=0 // loop_body
    %s20 = ssub.s32 %s15, 1
    %s21 = ssub.s32 %s15, 2
    %s22 = sadd.s32 %s15, 1
    %s23 = ssub.s32 %s15, %s22
    %p24 = scmp.eq.s32.totalorder %s23, 0
    %s26 = sadd.s32 %s25, 1
    %s27 = scalar_select %p24, %s25, %s26
    %p30 = pneg %p24
    %p31 = scmp.eq.s32.totalorder %s15, 1
    %p32 = por %p30, %p31
    %p33 = scmp.ne.s32.totalorder %s25, %s28
    %p34 = scmp.eq.s32.totalorder %s15, 0
    %p35 = por %p33, %p34
    %p36 = scmp.ne.s32.totalorder %s25, %s28
    %p37 = scmp.eq.s32.totalorder %s20, 1
    %p38 = por %p36, %p37
    %p39 = scmp.ne.s32.totalorder %s28, %s29
    %p40 = scmp.eq.s32.totalorder %s20, 0
    %p41 = por %p39, %p40
    %p42 = scmp.ne.s32.totalorder %s28, %s29
    %p43 = scmp.eq.s32.totalorder %s21, 1
    %p44 = por %p42, %p43
    %p46 = scmp.ne.s32.totalorder %s29, %s45
    %p47 = scmp.eq.s32.totalorder %s21, 0
    %p48 = por %p46, %p47
    %s50 = sadd.s32 %s49, 1
    %p53 = scmp.eq.s32.totalorder %s15, 1
    %p54 = scmp.ne.s32.totalorder %s49, %s51
    %p55 = scmp.eq.s32.totalorder %s15, 0
    %p56 = por %p54, %p55
    %p57 = scmp.ne.s32.totalorder %s49, %s51
    %p58 = scmp.eq.s32.totalorder %s20, 1
    %p59 = por %p57, %p58
    %p60 = scmp.ne.s32.totalorder %s51, %s52
    %p61 = scmp.eq.s32.totalorder %s20, 0
    %p62 = por %p60, %p61
    %p63 = scmp.ne.s32.totalorder %s51, %s52
    %p64 = scmp.eq.s32.totalorder %s21, 1
    %p65 = por %p63, %p64
    %p67 = scmp.ne.s32.totalorder %s52, %s66
    %p68 = scmp.eq.s32.totalorder %s21, 0
    %p69 = por %p67, %p68
    %s71 = sadd.s32 %s70, 1
    %p74 = scmp.eq.s32.totalorder %s15, 1
    %p75 = scmp.ne.s32.totalorder %s70, %s72
    %p76 = scmp.eq.s32.totalorder %s15, 0
    %p77 = por %p75, %p76
    %p78 = scmp.ne.s32.totalorder %s70, %s72
    %p79 = scmp.eq.s32.totalorder %s20, 1
    %p80 = por %p78, %p79
    %p81 = scmp.ne.s32.totalorder %s72, %s73
    %p82 = scmp.eq.s32.totalorder %s20, 0
    %p83 = por %p81, %p82
    %p84 = scmp.ne.s32.totalorder %s72, %s73
    %p85 = scmp.eq.s32.totalorder %s21, 1
    %p86 = por %p84, %p85
    %p88 = scmp.ne.s32.totalorder %s73, %s87
    %p89 = scmp.eq.s32.totalorder %s21, 0
    %p90 = por %p88, %p89
    %s92 = sadd.s32 %s91, 1
    %p95 = scmp.eq.s32.totalorder %s15, 1
    %p96 = scmp.ne.s32.totalorder %s91, %s93
    %p97 = scmp.eq.s32.totalorder %s15, 0
    %p98 = por %p96, %p97
    %p99 = scmp.ne.s32.totalorder %s91, %s93
    %p100 = scmp.eq.s32.totalorder %s20, 1
    %p101 = por %p99, %p100
    %p102 = scmp.ne.s32.totalorder %s93, %s94
    %p103 = scmp.eq.s32.totalorder %s20, 0
    %p104 = por %p102, %p103
    %p105 = scmp.ne.s32.totalorder %s93, %s94
    %p106 = scmp.eq.s32.totalorder %s21, 1
    %p107 = por %p105, %p106
    %p109 = scmp.ne.s32.totalorder %s94, %s108
    %p110 = scmp.eq.s32.totalorder %s21, 0
    %p111 = por %p109, %p110
    %s113 = sadd.s32 %s112, 1
    %p116 = scmp.eq.s32.totalorder %s15, 1
    %p117 = scmp.ne.s32.totalorder %s112, %s114
    %p118 = scmp.eq.s32.totalorder %s15, 0
    %p119 = por %p117, %p118
    %p120 = scmp.ne.s32.totalorder %s112, %s114
    %p121 = scmp.eq.s32.totalorder %s20, 1
    %p122 = por %p120, %p121
    %p123 = scmp.ne.s32.totalorder %s114, %s115
    %p124 = scmp.eq.s32.totalorder %s20, 0
    %p125 = por %p123, %p124
    %p126 = scmp.ne.s32.totalorder %s114, %s115
    %p127 = scmp.eq.s32.totalorder %s21, 1
    %p128 = por %p126, %p127
    %p130 = scmp.ne.s32.totalorder %s115, %s129
    %p131 = scmp.eq.s32.totalorder %s21, 0
    %p132 = por %p130, %p131
    %s134 = sadd.s32 %s133, 1
    %p137 = scmp.eq.s32.totalorder %s15, 1
    %p138 = scmp.ne.s32.totalorder %s133, %s135
    %p139 = scmp.eq.s32.totalorder %s15, 0
    %p140 = por %p138, %p139
    %p141 = scmp.ne.s32.totalorder %s133, %s135
    %p142 = scmp.eq.s32.totalorder %s20, 1
    %p143 = por %p141, %p142
    %p144 = scmp.ne.s32.totalorder %s135, %s136
    %p145 = scmp.eq.s32.totalorder %s20, 0
    %p146 = por %p144, %p145
    %p147 = scmp.ne.s32.totalorder %s135, %s136
    %p148 = scmp.eq.s32.totalorder %s21, 1
    %p149 = por %p147, %p148
    %p151 = scmp.ne.s32.totalorder %s136, %s150
    %p152 = scmp.eq.s32.totalorder %s21, 0
    %p153 = por %p151, %p152
    %s155 = sadd.s32 %s154, 1
    %p158 = scmp.eq.s32.totalorder %s15, 1
    %p159 = scmp.ne.s32.totalorder %s154, %s156
    %p160 = scmp.eq.s32.totalorder %s15, 0
    %p161 = por %p159, %p160
    %p162 = scmp.ne.s32.totalorder %s154, %s156
    %p163 = scmp.eq.s32.totalorder %s20, 1
    %p164 = por %p162, %p163
    %p165 = scmp.ne.s32.totalorder %s156, %s157
    %p166 = scmp.eq.s32.totalorder %s20, 0
    %p167 = por %p165, %p166
    %p168 = scmp.ne.s32.totalorder %s156, %s157
    %p169 = scmp.eq.s32.totalorder %s21, 1
    %p170 = por %p168, %p169
    %p172 = scmp.ne.s32.totalorder %s157, %s171
    %p173 = scmp.eq.s32.totalorder %s21, 0
    %p174 = por %p172, %p173
    %s176 = sadd.s32 %s175, 1
    %p179 = scmp.eq.s32.totalorder %s15, 1
    %p180 = scmp.ne.s32.totalorder %s175, %s177
    %p181 = scmp.eq.s32.totalorder %s15, 0
    %p182 = por %p180, %p181
    %p183 = scmp.ne.s32.totalorder %s175, %s177
    %p184 = scmp.eq.s32.totalorder %s20, 1
    %p185 = por %p183, %p184
    %p186 = scmp.ne.s32.totalorder %s177, %s178
    %p187 = scmp.eq.s32.totalorder %s20, 0
    %p188 = por %p186, %p187
    %p189 = scmp.ne.s32.totalorder %s177, %s178
    %p190 = scmp.eq.s32.totalorder %s21, 1
    %p191 = por %p189, %p190
    %p193 = scmp.ne.s32.totalorder %s178, %s192
    %p194 = scmp.eq.s32.totalorder %s21, 0
    %p195 = por %p193, %p194
    %s197 = sadd.s32 %s196, 1
    %p200 = scmp.eq.s32.totalorder %s15, 1
    %p201 = scmp.ne.s32.totalorder %s196, %s198
    %p202 = scmp.eq.s32.totalorder %s15, 0
    %p203 = por %p201, %p202
    %p204 = scmp.ne.s32.totalorder %s196, %s198
    %p205 = scmp.eq.s32.totalorder %s20, 1
    %p206 = por %p204, %p205
    %p207 = scmp.ne.s32.totalorder %s198, %s199
    %p208 = scmp.eq.s32.totalorder %s20, 0
    %p209 = por %p207, %p208
    %p210 = scmp.ne.s32.totalorder %s198, %s199
    %p211 = scmp.eq.s32.totalorder %s21, 1
    %p212 = por %p210, %p211
    %p214 = scmp.ne.s32.totalorder %s199, %s213
    %p215 = scmp.eq.s32.totalorder %s21, 0
    %p216 = por %p214, %p215
    %s217 = ssub.s32 %s15, %s22
    %p218 = scmp.eq.s32.totalorder %s217, 0
    %s220 = sadd.s32 %s219, 1
    %s221 = scalar_select %p218, %s219, %s220
    %p224 = pneg %p218
    %p225 = scmp.eq.s32.totalorder %s15, 1
    %p226 = por %p224, %p225
    %p227 = scmp.ne.s32.totalorder %s219, %s222
    %p228 = scmp.eq.s32.totalorder %s15, 0
    %p229 = por %p227, %p228
    %p230 = scmp.ne.s32.totalorder %s219, %s222
    %p231 = scmp.eq.s32.totalorder %s20, 1
    %p232 = por %p230, %p231
    %p233 = scmp.ne.s32.totalorder %s222, %s223
    %p234 = scmp.eq.s32.totalorder %s20, 0
    %p235 = por %p233, %p234
    %p236 = scmp.ne.s32.totalorder %s222, %s223
    %p237 = scmp.eq.s32.totalorder %s21, 1
    %p238 = por %p236, %p237
    %p240 = scmp.ne.s32.totalorder %s223, %s239
    %p241 = scmp.eq.s32.totalorder %s21, 0
    %p242 = por %p240, %p241
    %p243 = scmp.le.s32.totalorder 1, %s15
    %p244 = scmp.lt.s32.totalorder %s15, 3
    %p245 = pnand %p243, %p244
    %p246 = pneg %p245
    // Predicated region
    $region9: #{down_forward.1} parent=5 // pred_check
      _
    $region10: #{down_forward.1} parent=5 // pred_check_branch
      %248 = sbr.rel (%p245) target = $region12
    $region11: #{down_forward.1} parent=5 // pred_region
      %s249 = ssub.s32 %s15, 1
      // Predicated region
      $region13: #{down_forward.1} parent=11 // pred_check
        %p250 = pneg %p62
      $region14: #{down_forward.1} parent=11 // pred_check_branch
        %252 = sbr.rel (%p250) target = $region16
      $region15: #{down_forward.1} parent=11 // pred_region
        _
      $region16: #{down_forward.1} parent=11 // pred_fallthru
        _
      // Predicated region
      $region17: #{down_forward.1} parent=11 // pred_check
        %p253 = pneg %p83
      $region18: #{down_forward.1} parent=11 // pred_check_branch
        %255 = sbr.rel (%p253) target = $region20
      $region19: #{down_forward.1} parent=11 // pred_region
        _
      $region20: #{down_forward.1} parent=11 // pred_fallthru
        _
      // Predicated region
      $region21: #{down_forward.1} parent=11 // pred_check
        %p256 = pneg %p104
      $region22: #{down_forward.1} parent=11 // pred_check_branch
        %258 = sbr.rel (%p256) target = $region24
      $region23: #{down_forward.1} parent=11 // pred_region
        _
      $region24: #{down_forward.1} parent=11 // pred_fallthru
        _
      // Predicated region
      $region25: #{down_forward.1} parent=11 // pred_check
        %p259 = pneg %p125
      $region26: #{down_forward.1} parent=11 // pred_check_branch
        %261 = sbr.rel (%p259) target = $region28
      $region27: #{down_forward.1} parent=11 // pred_region
        _
      $region28: #{down_forward.1} parent=11 // pred_fallthru
        _
      // Predicated region
      $region29: #{down_forward.1} parent=11 // pred_check
        %p262 = pneg %p146
      $region30: #{down_forward.1} parent=11 // pred_check_branch
        %264 = sbr.rel (%p262) target = $region32
      $region31: #{down_forward.1} parent=11 // pred_region
        _
      $region32: #{down_forward.1} parent=11 // pred_fallthru
        _
      // Predicated region
      $region33: #{down_forward.1} parent=11 // pred_check
        %p265 = pneg %p167
      $region34: #{down_forward.1} parent=11 // pred_check_branch
        %267 = sbr.rel (%p265) target = $region36
      $region35: #{down_forward.1} parent=11 // pred_region
        _
      $region36: #{down_forward.1} parent=11 // pred_fallthru
        _
      // Predicated region
      $region37: #{down_forward.1} parent=11 // pred_check
        %p268 = pneg %p188
      $region38: #{down_forward.1} parent=11 // pred_check_branch
        %270 = sbr.rel (%p268) target = $region40
      $region39: #{down_forward.1} parent=11 // pred_region
        _
      $region40: #{down_forward.1} parent=11 // pred_fallthru
        _
      // Predicated region
      $region41: #{down_forward.1} parent=11 // pred_check
        %p271 = pneg %p209
      $region42: #{down_forward.1} parent=11 // pred_check_branch
        %273 = sbr.rel (%p271) target = $region44
      $region43: #{down_forward.1} parent=11 // pred_region
        _
      $region44: #{down_forward.1} parent=11 // pred_fallthru
        _
    $region12: #{down_forward.1} parent=5 // pred_fallthru
      _
    %p274 = scmp.lt.s32.totalorder %s15, 2
    // Predicated region
    $region45: #{down_forward.1} parent=5 // pred_check
      %p275 = pneg %p274
    $region46: #{down_forward.1} parent=5 // pred_check_branch
      %277 = sbr.rel (%p275) target = $region48
    $region47: #{down_forward.1} parent=5 // pred_region
      // Predicated region
      $region49: #{down_forward.1} parent=47 // pred_check
        %p278 = pneg %p35
      $region50: #{down_forward.1} parent=47 // pred_check_branch
        %280 = sbr.rel (%p278) target = $region52
      $region51: #{down_forward.1} parent=47 // pred_region
        %p281 = scmp.lt.s32.totalorder %s15, 1
        %s282 = scalar_select %p281, %s15, 1
        %s283 = smul.addr %s282, 80
        %s284 = smul.addr %s283, 4
        %s285 = scalar_lea.vmem %s0, %s284
      $region52: #{down_forward.1} parent=47 // pred_fallthru
        _
    $region48: #{down_forward.1} parent=5 // pred_fallthru
      _
    %p286 = scmp.le.s32.totalorder 1, %s15
    %p287 = scmp.lt.s32.totalorder %s15, 3
    %p288 = pnand %p286, %p287
    %p289 = pneg %p288
    // Predicated region
    $region53: #{down_forward.1} parent=5 // pred_check
      _
    $region54: #{down_forward.1} parent=5 // pred_check_branch
      %291 = sbr.rel (%p288) target = $region56
    $region55: #{down_forward.1} parent=5 // pred_region
      %s292 = ssub.s32 %s15, 1
      %p293 = scmp.lt.s32.totalorder %s20, 1
      %s294 = scalar_select %p293, %s20, 1
      %s295 = smul.addr %s294, 80
      %s296 = smul.addr %s295, 4
      %s297 = scalar_lea.vmem %s0, %s296
      %p298 = pneg %p41
      %p299 = pneg %p38
      %p300 = pneg %p62
      %p301 = pneg %p59
      %p302 = pneg %p83
      %p303 = pneg %p80
      %p304 = pneg %p104
      %p305 = pneg %p101
      %p306 = pneg %p125
      %p307 = pneg %p122
      %p308 = pneg %p146
      %p309 = pneg %p143
      %p310 = pneg %p167
      %p311 = pneg %p164
      %p312 = pneg %p188
      %p313 = pneg %p185
      %p314 = pneg %p209
      %p315 = pneg %p206
      %p316 = pneg %p235
      %p317 = pneg %p232
      %p318 = scmp.lt.s32.totalorder %s20, 1
      %s319 = scalar_select %p318, %s20, 1
      %s320 = smul.addr %s319, 8
      %s321 = smul.addr %s320, 8
      %s322 = scalar_lea.vmem %s9, %s321
      %p323 = scmp.lt.s32.totalorder %s20, 1
      %s324 = scalar_select %p323, %s20, 1
      %s325 = smul.addr %s324, 80
      %s326 = smul.addr %s325, 4
      %s327 = scalar_lea.vmem %s0, %s326
      %p328 = scmp.lt.s32.totalorder %s20, 1
      %s329 = scalar_select %p328, %s20, 1
      %s330 = smul.addr %s329, 8
      %s331 = smul.addr %s330, 8
      %s332 = scalar_lea.vmem %s9, %s331
      %v334 = vld [vmem:[%s327] sm:$0xff]
      %v335 = vld [vmem:[%s327 + $0x8] sm:$0x11]
      %v336 = vld [vmem:[%s327 + $0x10] sm:$0xff]
      %v337 = vld [vmem:[%s327 + $0x18] sm:$0x11]
      %v338 = vld [vmem:[%s327 + $0x20] sm:$0xff]
      %v339 = vld [vmem:[%s327 + $0x28] sm:$0x11]
      %v340 = vld [vmem:[%s327 + $0x30] sm:$0xff]
      %v341 = vld [vmem:[%s327 + $0x38] sm:$0x11]
      %v342 = vld [vmem:[%s327 + $0x40] sm:$0xff]
      %v343 = vld [vmem:[%s327 + $0x48] sm:$0x11]
      %v344 = vld [vmem:[%s327 + $0x50] sm:$0xff]
      %v345 = vld [vmem:[%s327 + $0x58] sm:$0x11]
      %v346 = vld [vmem:[%s327 + $0x60] sm:$0xff]
      %v347 = vld [vmem:[%s327 + $0x68] sm:$0x11]
      %v348 = vld [vmem:[%s327 + $0x70] sm:$0xff]
      %v349 = vld [vmem:[%s327 + $0x78] sm:$0x11]
      %v350 = vld [vmem:[%s327 + $0x80] sm:$0xff]
      %v351 = vld [vmem:[%s327 + $0x88] sm:$0x11]
      %v352 = vld [vmem:[%s327 + $0x90] sm:$0xff]
      %v353 = vld [vmem:[%s327 + $0x98] sm:$0x11]
      %v354 = vld [vmem:[%s327 + $0xa0] sm:$0xff]
      %v355 = vld [vmem:[%s327 + $0xa8] sm:$0x11]
      %v356 = vld [vmem:[%s327 + $0xb0] sm:$0xff]
      %v357 = vld [vmem:[%s327 + $0xb8] sm:$0x11]
      %v358 = vld [vmem:[%s327 + $0xc0] sm:$0xff]
      %v359 = vld [vmem:[%s327 + $0xc8] sm:$0x11]
      %v360 = vld [vmem:[%s327 + $0xd0] sm:$0xff]
      %v361 = vld [vmem:[%s327 + $0xd8] sm:$0x11]
      %v362 = vld [vmem:[%s327 + $0xe0] sm:$0xff]
      %v363 = vld [vmem:[%s327 + $0xe8] sm:$0x11]
      %v364 = vld [vmem:[%s327 + $0xf0] sm:$0xff]
      %v365 = vld [vmem:[%s327 + $0xf8] sm:$0x11]
      %v366 = vld [vmem:[%s327 + $0x100] sm:$0xff]
      %v367 = vld [vmem:[%s327 + $0x108] sm:$0x11]
      %v368 = vld [vmem:[%s327 + $0x110] sm:$0xff]
      %v369 = vld [vmem:[%s327 + $0x118] sm:$0x11]
      %v370 = vld [vmem:[%s327 + $0x120] sm:$0xff]
      %v371 = vld [vmem:[%s327 + $0x128] sm:$0x11]
      %v372 = vld [vmem:[%s327 + $0x130] sm:$0xff]
      %v373 = vld [vmem:[%s327 + $0x138] sm:$0x11]
      %v374 = vunpack.c.l.bf16 %v334
      %v375 = vunpack.c.h.bf16 %v334
      %v376 = vunpack.c.l.bf16 %v335
      %v377 = vunpack.c.h.bf16 %v335
      %v378 = vunpack.c.l.bf16 %v336
      %v379 = vunpack.c.h.bf16 %v336
      %v380 = vunpack.c.l.bf16 %v337
      %v381 = vunpack.c.h.bf16 %v337
      %v382 = vunpack.c.l.bf16 %v338
      %v383 = vunpack.c.h.bf16 %v338
      %v384 = vunpack.c.l.bf16 %v339
      %v385 = vunpack.c.h.bf16 %v339
      %v386 = vunpack.c.l.bf16 %v340
      %v387 = vunpack.c.h.bf16 %v340
      %v388 = vunpack.c.l.bf16 %v341
      %v389 = vunpack.c.h.bf16 %v341
      %v390 = vunpack.c.l.bf16 %v342
      %v391 = vunpack.c.h.bf16 %v342
      %v392 = vunpack.c.l.bf16 %v343
      %v393 = vunpack.c.h.bf16 %v343
      %v394 = vunpack.c.l.bf16 %v344
      %v395 = vunpack.c.h.bf16 %v344
      %v396 = vunpack.c.l.bf16 %v345
      %v397 = vunpack.c.h.bf16 %v345
      %v398 = vunpack.c.l.bf16 %v346
      %v399 = vunpack.c.h.bf16 %v346
      %v400 = vunpack.c.l.bf16 %v347
      %v401 = vunpack.c.h.bf16 %v347
      %v402 = vunpack.c.l.bf16 %v348
      %v403 = vunpack.c.h.bf16 %v348
      %v404 = vunpack.c.l.bf16 %v349
      %v405 = vunpack.c.h.bf16 %v349
      %v406 = vunpack.c.l.bf16 %v350
      %v407 = vunpack.c.h.bf16 %v350
      %v408 = vunpack.c.l.bf16 %v351
      %v409 = vunpack.c.h.bf16 %v351
      %v410 = vunpack.c.l.bf16 %v352
      %v411 = vunpack.c.h.bf16 %v352
      %v412 = vunpack.c.l.bf16 %v353
      %v413 = vunpack.c.h.bf16 %v353
      %v414 = vunpack.c.l.bf16 %v354
      %v415 = vunpack.c.h.bf16 %v354
      %v416 = vunpack.c.l.bf16 %v355
      %v417 = vunpack.c.h.bf16 %v355
      %v418 = vunpack.c.l.bf16 %v356
      %v419 = vunpack.c.h.bf16 %v356
      %v420 = vunpack.c.l.bf16 %v357
      %v421 = vunpack.c.h.bf16 %v357
      %v422 = vunpack.c.l.bf16 %v358
      %v423 = vunpack.c.h.bf16 %v358
      %v424 = vunpack.c.l.bf16 %v359
      %v425 = vunpack.c.h.bf16 %v359
      %v426 = vunpack.c.l.bf16 %v360
      %v427 = vunpack.c.h.bf16 %v360
      %v428 = vunpack.c.l.bf16 %v361
      %v429 = vunpack.c.h.bf16 %v361
      %v430 = vunpack.c.l.bf16 %v362
      %v431 = vunpack.c.h.bf16 %v362
      %v432 = vunpack.c.l.bf16 %v363
      %v433 = vunpack.c.h.bf16 %v363
      %v434 = vunpack.c.l.bf16 %v364
      %v435 = vunpack.c.h.bf16 %v364
      %v436 = vunpack.c.l.bf16 %v365
      %v437 = vunpack.c.h.bf16 %v365
      %v438 = vunpack.c.l.bf16 %v366
      %v439 = vunpack.c.h.bf16 %v366
      %v440 = vunpack.c.l.bf16 %v367
      %v441 = vunpack.c.h.bf16 %v367
      %v442 = vunpack.c.l.bf16 %v368
      %v443 = vunpack.c.h.bf16 %v368
      %v444 = vunpack.c.l.bf16 %v369
      %v445 = vunpack.c.h.bf16 %v369
      %v446 = vunpack.c.l.bf16 %v370
      %v447 = vunpack.c.h.bf16 %v370
      %v448 = vunpack.c.l.bf16 %v371
      %v449 = vunpack.c.h.bf16 %v371
      %v450 = vunpack.c.l.bf16 %v372
      %v451 = vunpack.c.h.bf16 %v372
      %v452 = vunpack.c.l.bf16 %v373
      %v453 = vunpack.c.h.bf16 %v373
      %v454 = vmax.f32 %v374, %v375
      %v455 = vmax.f32 %v376, %v377
      %v456 = vmax.f32 %v378, %v379
      %v457 = vmax.f32 %v380, %v381
      %v458 = vmax.f32 %v382, %v383
      %v459 = vmax.f32 %v384, %v385
      %v460 = vmax.f32 %v386, %v387
      %v461 = vmax.f32 %v388, %v389
      %v462 = vmax.f32 %v390, %v391
      %v463 = vmax.f32 %v392, %v393
      %v464 = vmax.f32 %v394, %v395
      %v465 = vmax.f32 %v396, %v397
      %v466 = vmax.f32 %v398, %v399
      %v467 = vmax.f32 %v400, %v401
      %v468 = vmax.f32 %v402, %v403
      %v469 = vmax.f32 %v404, %v405
      %v470 = vmax.f32 %v406, %v407
      %v471 = vmax.f32 %v408, %v409
      %v472 = vmax.f32 %v410, %v411
      %v473 = vmax.f32 %v412, %v413
      %v474 = vmax.f32 %v414, %v415
      %v475 = vmax.f32 %v416, %v417
      %v476 = vmax.f32 %v418, %v419
      %v477 = vmax.f32 %v420, %v421
      %v478 = vmax.f32 %v422, %v423
      %v479 = vmax.f32 %v424, %v425
      %v480 = vmax.f32 %v426, %v427
      %v481 = vmax.f32 %v428, %v429
      %v482 = vmax.f32 %v430, %v431
      %v483 = vmax.f32 %v432, %v433
      %v484 = vmax.f32 %v434, %v435
      %v485 = vmax.f32 %v436, %v437
      %v486 = vmax.f32 %v438, %v439
      %v487 = vmax.f32 %v440, %v441
      %v488 = vmax.f32 %v442, %v443
      %v489 = vmax.f32 %v444, %v445
      %v490 = vmax.f32 %v446, %v447
      %v491 = vmax.f32 %v448, %v449
      %v492 = vmax.f32 %v450, %v451
      %v493 = vmax.f32 %v452, %v453
      %v494 = vmax.f32 %v454, %v456
      %v495 = vmax.f32 %v455, %v457
      %v496 = vmax.f32 %v458, %v460
      %v497 = vmax.f32 %v459, %v461
      %v498 = vmax.f32 %v462, %v464
      %v499 = vmax.f32 %v463, %v465
      %v500 = vmax.f32 %v466, %v468
      %v501 = vmax.f32 %v467, %v469
      %v502 = vmax.f32 %v470, %v472
      %v503 = vmax.f32 %v471, %v473
      %v504 = vmax.f32 %v474, %v476
      %v505 = vmax.f32 %v475, %v477
      %v506 = vmax.f32 %v478, %v480
      %v507 = vmax.f32 %v479, %v481
      %v508 = vmax.f32 %v482, %v484
      %v509 = vmax.f32 %v483, %v485
      %v510 = vmax.f32 %v486, %v488
      %v511 = vmax.f32 %v487, %v489
      %v512 = vmax.f32 %v490, %v492
      %v513 = vmax.f32 %v491, %v493
      %v514 = vpack.c.bf16 %v496, %v494
      %v515 = vpack.c.bf16 %v500, %v498
      %v516 = vpack.c.bf16 %v504, %v502
      %v517 = vpack.c.bf16 %v508, %v506
      %v518 = vld [vmem:[%s1] sm:$0xf]
      %v519 = vld [vmem:[%s1 + $0x4] sm:$0xf]
      %v520 = vld [vmem:[%s1 + $0x8] sm:$0xf]
      %v521 = vld [vmem:[%s1 + $0xc] sm:$0xf]
      %v522 = vld [vmem:[%s1 + $0x10] sm:$0xf]
      %v523 = vld [vmem:[%s1 + $0x14] sm:$0xf]
      %v524 = vld [vmem:[%s1 + $0x18] sm:$0xf]
      %v525 = vld [vmem:[%s1 + $0x1c] sm:$0xf]
      %v526 = vld [vmem:[%s1 + $0x20] sm:$0xf]
      %v527 = vld [vmem:[%s1 + $0x24] sm:$0xf]
      %v528 = vld [vmem:[%s1 + $0x28] sm:$0xf]
      %v529 = vld [vmem:[%s1 + $0x2c] sm:$0xf]
      %v530 = vld [vmem:[%s1 + $0x30] sm:$0xf]
      %v531 = vld [vmem:[%s1 + $0x34] sm:$0xf]
      %v532 = vld [vmem:[%s1 + $0x38] sm:$0xf]
      %v533 = vld [vmem:[%s1 + $0x3c] sm:$0xf]
      %vm550 = vcmask 1046528
      %v551 = vrot.slane %v494, 1
      %v552 = vrot.slane %v495, 1
      %v553 = vsel %vm550, %v551, %v552
      %v554 = vrot.slane %v496, 1
      %v555 = vrot.slane %v497, 1
      %v556 = vsel %vm550, %v554, %v555
      %v557 = vrot.slane %v498, 1
      %v558 = vrot.slane %v499, 1
      %v559 = vsel %vm550, %v557, %v558
      %v560 = vrot.slane %v500, 1
      %v561 = vrot.slane %v501, 1
      %v562 = vsel %vm550, %v560, %v561
      %v563 = vrot.slane %v502, 1
      %v564 = vrot.slane %v503, 1
      %v565 = vsel %vm550, %v563, %v564
      %v566 = vrot.slane %v504, 1
      %v567 = vrot.slane %v505, 1
      %v568 = vsel %vm550, %v566, %v567
      %v569 = vrot.slane %v506, 1
      %v570 = vrot.slane %v507, 1
      %v571 = vsel %vm550, %v569, %v570
      %v572 = vrot.slane %v508, 1
      %v573 = vrot.slane %v509, 1
      %v574 = vsel %vm550, %v572, %v573
      %v583 = vpack.c.bf16 %v556, %v553
      %v584 = vpack.c.bf16 %v562, %v559
      %v585 = vpack.c.bf16 %v568, %v565
      %v586 = vpack.c.bf16 %v574, %v571
      %s587 = scalar_lea.vmem %s1, 64
      %v588 = vld [vmem:[%s587] sm:$0xf]
      %v589 = vld [vmem:[%s587 + $0x4] sm:$0xf]
      %v590 = vld [vmem:[%s587 + $0x8] sm:$0xf]
      %v591 = vld [vmem:[%s587 + $0xc] sm:$0xf]
      %v592 = vld [vmem:[%s587 + $0x10] sm:$0xf]
      %v593 = vld [vmem:[%s587 + $0x14] sm:$0xf]
      %v594 = vld [vmem:[%s587 + $0x18] sm:$0xf]
      %v595 = vld [vmem:[%s587 + $0x1c] sm:$0xf]
      %v596 = vld [vmem:[%s587 + $0x20] sm:$0xf]
      %v597 = vld [vmem:[%s587 + $0x24] sm:$0xf]
      %v598 = vld [vmem:[%s587 + $0x28] sm:$0xf]
      %v599 = vld [vmem:[%s587 + $0x2c] sm:$0xf]
      %v600 = vld [vmem:[%s587 + $0x30] sm:$0xf]
      %v601 = vld [vmem:[%s587 + $0x34] sm:$0xf]
      %v602 = vld [vmem:[%s587 + $0x38] sm:$0xf]
      %v603 = vld [vmem:[%s587 + $0x3c] sm:$0xf]
      %v620 = vunpack.c.l.b16 %v588
      %v621 = vunpack.c.l.b16 %v589
      %v622 = vunpack.c.l.b16 %v590
      %v623 = vunpack.c.l.b16 %v591
      %v624 = vunpack.c.l.b16 %v592
      %v625 = vunpack.c.l.b16 %v593
      %v626 = vunpack.c.l.b16 %v594
      %v627 = vunpack.c.l.b16 %v595
      %v628 = vunpack.c.l.b16 %v596
      %v629 = vunpack.c.l.b16 %v597
      %v630 = vunpack.c.l.b16 %v598
      %v631 = vunpack.c.l.b16 %v599
      %v632 = vunpack.c.l.b16 %v600
      %v633 = vunpack.c.l.b16 %v601
      %v634 = vunpack.c.l.b16 %v602
      %v635 = vunpack.c.l.b16 %v603
      %v636 = vpack.c.b16 %v621, %v620
      %v637 = vpack.c.b16 %v623, %v622
      %v638 = vpack.c.b16 %v625, %v624
      %v639 = vpack.c.b16 %v627, %v626
      %v640 = vpack.c.b16 %v629, %v628
      %v641 = vpack.c.b16 %v631, %v630
      %v642 = vpack.c.b16 %v633, %v632
      %v643 = vpack.c.b16 %v635, %v634
      %652 = vmatprep.subr.bf16.mxu0 0
      %653 = vmatpush1.bf16.msra.mxu0 %v643
      %654 = vmatprep.subr.bf16.mxu0 0
      %655 = vmatpush1.bf16.msra.mxu0 %v642
      %656 = vmatprep.subr.bf16.mxu0 0
      %657 = vmatpush1.bf16.msra.mxu0 %v641
      %658 = vmatprep.subr.bf16.mxu0 0
      %659 = vmatpush1.bf16.msra.mxu0 %v640
      %660 = vmatprep.subr.bf16.mxu0 0
      %661 = vmatpush1.bf16.msra.mxu0 %v639
      %662 = vmatprep.subr.bf16.mxu0 0
      %663 = vmatpush1.bf16.msra.mxu0 %v638
      %664 = vmatprep.subr.bf16.mxu0 0
      %665 = vmatpush1.bf16.msra.mxu0 %v637
      %666 = vmatprep.subr.bf16.mxu0 0
      %667 = vmatpush1.bf16.msra.mxu0 %v636
      %668 = vmatprep.subr.bf16.mxu0 0
      %669 = vmatpush2.bf16.msra.mxu0 0
      %670 = vmatprep.subr.bf16.mxu0 0
      %671 = vmatpush2.bf16.msra.mxu0 0
      %672 = vmatprep.subr.bf16.mxu0 0
      %673 = vmatpush2.bf16.msra.mxu0 0
      %674 = vmatprep.subr.bf16.mxu0 0
      %675 = vmatpush2.bf16.msra.mxu0 0
      %676 = vmatprep.subr.bf16.mxu0 0
      %677 = vmatpush2.bf16.msra.mxu0 0
      %678 = vmatprep.subr.bf16.mxu0 0
      %679 = vmatpush2.bf16.msra.mxu0 0
      %680 = vmatprep.subr.bf16.mxu0 0
      %681 = vmatpush2.bf16.msra.mxu0 0
      %682 = vmatprep.subr.bf16.mxu0 0
      %683 = vmatpush2.bf16.msra.mxu0 0
      %684 = vmatprep.mubr.bf16.mxu0 0
      %685 = vmatmul.mubr.bf16.gmra.mxu0 %v583
      %v686 = vpop.f32.mrf.mxu0
      %v687 = vadd.f32 0.0, %v686
      %v688 = vpop.f32.mrf.mxu0
      %v689 = vpop.f32.mrf.mxu0
      %v690 = vadd.f32 0.0, %v689
      %v691 = vpop.f32.mrf.mxu0
      %692 = vmatprep.mubr.bf16.mxu0 0
      %693 = vmatmul.mubr.bf16.gmra.mxu0 %v584
      %v694 = vpop.f32.mrf.mxu0
      %v695 = vadd.f32 0.0, %v694
      %v696 = vpop.f32.mrf.mxu0
      %v697 = vpop.f32.mrf.mxu0
      %v698 = vadd.f32 0.0, %v697
      %v699 = vpop.f32.mrf.mxu0
      %700 = vmatprep.mubr.bf16.mxu0 0
      %701 = vmatmul.mubr.bf16.gmra.mxu0 %v585
      %v702 = vpop.f32.mrf.mxu0
      %v703 = vadd.f32 0.0, %v702
      %v704 = vpop.f32.mrf.mxu0
      %v705 = vpop.f32.mrf.mxu0
      %v706 = vadd.f32 0.0, %v705
      %v707 = vpop.f32.mrf.mxu0
      %708 = vmatprep.mubr.bf16.mxu0 0
      %709 = vmatmul.mubr.bf16.gmra.mxu0 %v586
      %v710 = vpop.f32.mrf.mxu0
      %v711 = vadd.f32 0.0, %v710
      %v712 = vpop.f32.mrf.mxu0
      %v713 = vpop.f32.mrf.mxu0
      %v714 = vadd.f32 0.0, %v713
      %v715 = vpop.f32.mrf.mxu0
      %716 = vdwg.mxu0
      %v733 = vunpack.c.l.b16 %v518
      %v734 = vunpack.c.l.b16 %v519
      %v735 = vunpack.c.l.b16 %v520
      %v736 = vunpack.c.l.b16 %v521
      %v737 = vunpack.c.l.b16 %v522
      %v738 = vunpack.c.l.b16 %v523
      %v739 = vunpack.c.l.b16 %v524
      %v740 = vunpack.c.l.b16 %v525
      %v741 = vunpack.c.l.b16 %v526
      %v742 = vunpack.c.l.b16 %v527
      %v743 = vunpack.c.l.b16 %v528
      %v744 = vunpack.c.l.b16 %v529
      %v745 = vunpack.c.l.b16 %v530
      %v746 = vunpack.c.l.b16 %v531
      %v747 = vunpack.c.l.b16 %v532
      %v748 = vunpack.c.l.b16 %v533
      %v749 = vpack.c.b16 %v734, %v733
      %v750 = vpack.c.b16 %v736, %v735
      %v751 = vpack.c.b16 %v738, %v737
      %v752 = vpack.c.b16 %v740, %v739
      %v753 = vpack.c.b16 %v742, %v741
      %v754 = vpack.c.b16 %v744, %v743
      %v755 = vpack.c.b16 %v746, %v745
      %v756 = vpack.c.b16 %v748, %v747
      %765 = vmatprep.subr.bf16.mxu0 0
      %766 = vmatpush1.bf16.msra.mxu0 %v756
      %767 = vmatprep.subr.bf16.mxu0 0
      %768 = vmatpush1.bf16.msra.mxu0 %v755
      %769 = vmatprep.subr.bf16.mxu0 0
      %770 = vmatpush1.bf16.msra.mxu0 %v754
      %771 = vmatprep.subr.bf16.mxu0 0
      %772 = vmatpush1.bf16.msra.mxu0 %v753
      %773 = vmatprep.subr.bf16.mxu0 0
      %774 = vmatpush1.bf16.msra.mxu0 %v752
      %775 = vmatprep.subr.bf16.mxu0 0
      %776 = vmatpush1.bf16.msra.mxu0 %v751
      %777 = vmatprep.subr.bf16.mxu0 0
      %778 = vmatpush1.bf16.msra.mxu0 %v750
      %779 = vmatprep.subr.bf16.mxu0 0
      %780 = vmatpush1.bf16.msra.mxu0 %v749
      %781 = vmatprep.subr.bf16.mxu0 0
      %782 = vmatpush2.bf16.msra.mxu0 0
      %783 = vmatprep.subr.bf16.mxu0 0
      %784 = vmatpush2.bf16.msra.mxu0 0
      %785 = vmatprep.subr.bf16.mxu0 0
      %786 = vmatpush2.bf16.msra.mxu0 0
      %787 = vmatprep.subr.bf16.mxu0 0
      %788 = vmatpush2.bf16.msra.mxu0 0
      %789 = vmatprep.subr.bf16.mxu0 0
      %790 = vmatpush2.bf16.msra.mxu0 0
      %791 = vmatprep.subr.bf16.mxu0 0
      %792 = vmatpush2.bf16.msra.mxu0 0
      %793 = vmatprep.subr.bf16.mxu0 0
      %794 = vmatpush2.bf16.msra.mxu0 0
      %795 = vmatprep.subr.bf16.mxu0 0
      %796 = vmatpush2.bf16.msra.mxu0 0
      %797 = vmatprep.mubr.bf16.mxu0 0
      %798 = vmatmul.mubr.bf16.gmra.mxu0 %v514
      %v799 = vpop.f32.mrf.mxu0
      %v800 = vadd.f32 %v687, %v799
      %v801 = vpop.f32.mrf.mxu0
      %v802 = vpop.f32.mrf.mxu0
      %v803 = vadd.f32 %v690, %v802
      %v804 = vpop.f32.mrf.mxu0
      %805 = vmatprep.mubr.bf16.mxu0 0
      %806 = vmatmul.mubr.bf16.gmra.mxu0 %v515
      %v807 = vpop.f32.mrf.mxu0
      %v808 = vadd.f32 %v695, %v807
      %v809 = vpop.f32.mrf.mxu0
      %v810 = vpop.f32.mrf.mxu0
      %v811 = vadd.f32 %v698, %v810
      %v812 = vpop.f32.mrf.mxu0
      %813 = vmatprep.mubr.bf16.mxu0 0
      %814 = vmatmul.mubr.bf16.gmra.mxu0 %v516
      %v815 = vpop.f32.mrf.mxu0
      %v816 = vadd.f32 %v703, %v815
      %v817 = vpop.f32.mrf.mxu0
      %v818 = vpop.f32.mrf.mxu0
      %v819 = vadd.f32 %v706, %v818
      %v820 = vpop.f32.mrf.mxu0
      %821 = vmatprep.mubr.bf16.mxu0 0
      %822 = vmatmul.mubr.bf16.gmra.mxu0 %v517
      %v823 = vpop.f32.mrf.mxu0
      %v824 = vadd.f32 %v711, %v823
      %v825 = vpop.f32.mrf.mxu0
      %v826 = vpop.f32.mrf.mxu0
      %v827 = vadd.f32 %v714, %v826
      %v828 = vpop.f32.mrf.mxu0
      %829 = vdwg.mxu0
      %vm830 = vcmask 1045504
      %v831 = vrot.slane %v494, 2
      %v832 = vrot.slane %v495, 2
      %v833 = vsel %vm830, %v831, %v832
      %v834 = vrot.slane %v496, 2
      %v835 = vrot.slane %v497, 2
      %v836 = vsel %vm830, %v834, %v835
      %v837 = vrot.slane %v498, 2
      %v838 = vrot.slane %v499, 2
      %v839 = vsel %vm830, %v837, %v838
      %v840 = vrot.slane %v500, 2
      %v841 = vrot.slane %v501, 2
      %v842 = vsel %vm830, %v840, %v841
      %v843 = vrot.slane %v502, 2
      %v844 = vrot.slane %v503, 2
      %v845 = vsel %vm830, %v843, %v844
      %v846 = vrot.slane %v504, 2
      %v847 = vrot.slane %v505, 2
      %v848 = vsel %vm830, %v846, %v847
      %v849 = vrot.slane %v506, 2
      %v850 = vrot.slane %v507, 2
      %v851 = vsel %vm830, %v849, %v850
      %v852 = vrot.slane %v508, 2
      %v853 = vrot.slane %v509, 2
      %v854 = vsel %vm830, %v852, %v853
      %v863 = vpack.c.bf16 %v836, %v833
      %v864 = vpack.c.bf16 %v842, %v839
      %v865 = vpack.c.bf16 %v848, %v845
      %v866 = vpack.c.bf16 %v854, %v851
      %s867 = scalar_lea.vmem %s1, 128
      %v868 = vld [vmem:[%s867] sm:$0xf]
      %v869 = vld [vmem:[%s867 + $0x4] sm:$0xf]
      %v870 = vld [vmem:[%s867 + $0x8] sm:$0xf]
      %v871 = vld [vmem:[%s867 + $0xc] sm:$0xf]
      %v872 = vld [vmem:[%s867 + $0x10] sm:$0xf]
      %v873 = vld [vmem:[%s867 + $0x14] sm:$0xf]
      %v874 = vld [vmem:[%s867 + $0x18] sm:$0xf]
      %v875 = vld [vmem:[%s867 + $0x1c] sm:$0xf]
      %v876 = vld [vmem:[%s867 + $0x20] sm:$0xf]
      %v877 = vld [vmem:[%s867 + $0x24] sm:$0xf]
      %v878 = vld [vmem:[%s867 + $0x28] sm:$0xf]
      %v879 = vld [vmem:[%s867 + $0x2c] sm:$0xf]
      %v880 = vld [vmem:[%s867 + $0x30] sm:$0xf]
      %v881 = vld [vmem:[%s867 + $0x34] sm:$0xf]
      %v882 = vld [vmem:[%s867 + $0x38] sm:$0xf]
      %v883 = vld [vmem:[%s867 + $0x3c] sm:$0xf]
      %v900 = vunpack.c.l.b16 %v868
      %v901 = vunpack.c.l.b16 %v869
      %v902 = vunpack.c.l.b16 %v870
      %v903 = vunpack.c.l.b16 %v871
      %v904 = vunpack.c.l.b16 %v872
      %v905 = vunpack.c.l.b16 %v873
      %v906 = vunpack.c.l.b16 %v874
      %v907 = vunpack.c.l.b16 %v875
      %v908 = vunpack.c.l.b16 %v876
      %v909 = vunpack.c.l.b16 %v877
      %v910 = vunpack.c.l.b16 %v878
      %v911 = vunpack.c.l.b16 %v879
      %v912 = vunpack.c.l.b16 %v880
      %v913 = vunpack.c.l.b16 %v881
      %v914 = vunpack.c.l.b16 %v882
      %v915 = vunpack.c.l.b16 %v883
      %v916 = vpack.c.b16 %v901, %v900
      %v917 = vpack.c.b16 %v903, %v902
      %v918 = vpack.c.b16 %v905, %v904
      %v919 = vpack.c.b16 %v907, %v906
      %v920 = vpack.c.b16 %v909, %v908
      %v921 = vpack.c.b16 %v911, %v910
      %v922 = vpack.c.b16 %v913, %v912
      %v923 = vpack.c.b16 %v915, %v914
      %932 = vmatprep.subr.bf16.mxu0 0
      %933 = vmatpush1.bf16.msra.mxu0 %v923
      %934 = vmatprep.subr.bf16.mxu0 0
      %935 = vmatpush1.bf16.msra.mxu0 %v922
      %936 = vmatprep.subr.bf16.mxu0 0
      %937 = vmatpush1.bf16.msra.mxu0 %v921
      %938 = vmatprep.subr.bf16.mxu0 0
      %939 = vmatpush1.bf16.msra.mxu0 %v920
      %940 = vmatprep.subr.bf16.mxu0 0
      %941 = vmatpush1.bf16.msra.mxu0 %v919
      %942 = vmatprep.subr.bf16.mxu0 0
      %943 = vmatpush1.bf16.msra.mxu0 %v918
      %944 = vmatprep.subr.bf16.mxu0 0
      %945 = vmatpush1.bf16.msra.mxu0 %v917
      %946 = vmatprep.subr.bf16.mxu0 0
      %947 = vmatpush1.bf16.msra.mxu0 %v916
      %948 = vmatprep.subr.bf16.mxu0 0
      %949 = vmatpush2.bf16.msra.mxu0 0
      %950 = vmatprep.subr.bf16.mxu0 0
      %951 = vmatpush2.bf16.msra.mxu0 0
      %952 = vmatprep.subr.bf16.mxu0 0
      %953 = vmatpush2.bf16.msra.mxu0 0
      %954 = vmatprep.subr.bf16.mxu0 0
      %955 = vmatpush2.bf16.msra.mxu0 0
      %956 = vmatprep.subr.bf16.mxu0 0
      %957 = vmatpush2.bf16.msra.mxu0 0
      %958 = vmatprep.subr.bf16.mxu0 0
      %959 = vmatpush2.bf16.msra.mxu0 0
      %960 = vmatprep.subr.bf16.mxu0 0
      %961 = vmatpush2.bf16.msra.mxu0 0
      %962 = vmatprep.subr.bf16.mxu0 0
      %963 = vmatpush2.bf16.msra.mxu0 0
      %964 = vmatprep.mubr.bf16.mxu0 0
      %965 = vmatmul.mubr.bf16.gmra.mxu0 %v863
      %v966 = vpop.f32.mrf.mxu0
      %v967 = vadd.f32 0.0, %v966
      %v968 = vpop.f32.mrf.mxu0
      %v969 = vpop.f32.mrf.mxu0
      %v970 = vadd.f32 0.0, %v969
      %v971 = vpop.f32.mrf.mxu0
      %972 = vmatprep.mubr.bf16.mxu0 0
      %973 = vmatmul.mubr.bf16.gmra.mxu0 %v864
      %v974 = vpop.f32.mrf.mxu0
      %v975 = vadd.f32 0.0, %v974
      %v976 = vpop.f32.mrf.mxu0
      %v977 = vpop.f32.mrf.mxu0
      %v978 = vadd.f32 0.0, %v977
      %v979 = vpop.f32.mrf.mxu0
      %980 = vmatprep.mubr.bf16.mxu0 0
      %981 = vmatmul.mubr.bf16.gmra.mxu0 %v865
      %v982 = vpop.f32.mrf.mxu0
      %v983 = vadd.f32 0.0, %v982
      %v984 = vpop.f32.mrf.mxu0
      %v985 = vpop.f32.mrf.mxu0
      %v986 = vadd.f32 0.0, %v985
      %v987 = vpop.f32.mrf.mxu0
      %988 = vmatprep.mubr.bf16.mxu0 0
      %989 = vmatmul.mubr.bf16.gmra.mxu0 %v866
      %v990 = vpop.f32.mrf.mxu0
      %v991 = vadd.f32 0.0, %v990
      %v992 = vpop.f32.mrf.mxu0
      %v993 = vpop.f32.mrf.mxu0
      %v994 = vadd.f32 0.0, %v993
      %v995 = vpop.f32.mrf.mxu0
      %996 = vdwg.mxu0
      %v997 = vadd.f32 %v800, %v967
      %v998 = vadd.f32 %v803, %v970
      %v999 = vadd.f32 %v808, %v975
      %v1000 = vadd.f32 %v811, %v978
      %v1001 = vadd.f32 %v816, %v983
      %v1002 = vadd.f32 %v819, %v986
      %v1003 = vadd.f32 %v824, %v991
      %v1004 = vadd.f32 %v827, %v994
      %v1005 = vpack.c.bf16 %v498, %v496
      %v1006 = vpack.c.bf16 %v502, %v500
      %v1007 = vpack.c.bf16 %v506, %v504
      %v1008 = vpack.c.bf16 %v510, %v508
      %s1009 = scalar_lea.vmem %s1, 192
      %v1010 = vld [vmem:[%s1009] sm:$0xf]
      %v1011 = vld [vmem:[%s1009 + $0x4] sm:$0xf]
      %v1012 = vld [vmem:[%s1009 + $0x8] sm:$0xf]
      %v1013 = vld [vmem:[%s1009 + $0xc] sm:$0xf]
      %v1014 = vld [vmem:[%s1009 + $0x10] sm:$0xf]
      %v1015 = vld [vmem:[%s1009 + $0x14] sm:$0xf]
      %v1016 = vld [vmem:[%s1009 + $0x18] sm:$0xf]
      %v1017 = vld [vmem:[%s1009 + $0x1c] sm:$0xf]
      %v1018 = vld [vmem:[%s1009 + $0x20] sm:$0xf]
      %v1019 = vld [vmem:[%s1009 + $0x24] sm:$0xf]
      %v1020 = vld [vmem:[%s1009 + $0x28] sm:$0xf]
      %v1021 = vld [vmem:[%s1009 + $0x2c] sm:$0xf]
      %v1022 = vld [vmem:[%s1009 + $0x30] sm:$0xf]
      %v1023 = vld [vmem:[%s1009 + $0x34] sm:$0xf]
      %v1024 = vld [vmem:[%s1009 + $0x38] sm:$0xf]
      %v1025 = vld [vmem:[%s1009 + $0x3c] sm:$0xf]
      %v1042 = vunpack.c.l.b16 %v1010
      %v1043 = vunpack.c.l.b16 %v1011
      %v1044 = vunpack.c.l.b16 %v1012
      %v1045 = vunpack.c.l.b16 %v1013
      %v1046 = vunpack.c.l.b16 %v1014
      %v1047 = vunpack.c.l.b16 %v1015
      %v1048 = vunpack.c.l.b16 %v1016
      %v1049 = vunpack.c.l.b16 %v1017
      %v1050 = vunpack.c.l.b16 %v1018
      %v1051 = vunpack.c.l.b16 %v1019
      %v1052 = vunpack.c.l.b16 %v1020
      %v1053 = vunpack.c.l.b16 %v1021
      %v1054 = vunpack.c.l.b16 %v1022
      %v1055 = vunpack.c.l.b16 %v1023
      %v1056 = vunpack.c.l.b16 %v1024
      %v1057 = vunpack.c.l.b16 %v1025
      %v1058 = vpack.c.b16 %v1043, %v1042
      %v1059 = vpack.c.b16 %v1045, %v1044
      %v1060 = vpack.c.b16 %v1047, %v1046
      %v1061 = vpack.c.b16 %v1049, %v1048
      %v1062 = vpack.c.b16 %v1051, %v1050
      %v1063 = vpack.c.b16 %v1053, %v1052
      %v1064 = vpack.c.b16 %v1055, %v1054
      %v1065 = vpack.c.b16 %v1057, %v1056
      %1074 = vmatprep.subr.bf16.mxu0 0
      %1075 = vmatpush1.bf16.msra.mxu0 %v1065
      %1076 = vmatprep.subr.bf16.mxu0 0
      %1077 = vmatpush1.bf16.msra.mxu0 %v1064
      %1078 = vmatprep.subr.bf16.mxu0 0
      %1079 = vmatpush1.bf16.msra.mxu0 %v1063
      %1080 = vmatprep.subr.bf16.mxu0 0
      %1081 = vmatpush1.bf16.msra.mxu0 %v1062
      %1082 = vmatprep.subr.bf16.mxu0 0
      %1083 = vmatpush1.bf16.msra.mxu0 %v1061
      %1084 = vmatprep.subr.bf16.mxu0 0
      %1085 = vmatpush1.bf16.msra.mxu0 %v1060
      %1086 = vmatprep.subr.bf16.mxu0 0
      %1087 = vmatpush1.bf16.msra.mxu0 %v1059
      %1088 = vmatprep.subr.bf16.mxu0 0
      %1089 = vmatpush1.bf16.msra.mxu0 %v1058
      %1090 = vmatprep.subr.bf16.mxu0 0
      %1091 = vmatpush2.bf16.msra.mxu0 0
      %1092 = vmatprep.subr.bf16.mxu0 0
      %1093 = vmatpush2.bf16.msra.mxu0 0
      %1094 = vmatprep.subr.bf16.mxu0 0
      %1095 = vmatpush2.bf16.msra.mxu0 0
      %1096 = vmatprep.subr.bf16.mxu0 0
      %1097 = vmatpush2.bf16.msra.mxu0 0
      %1098 = vmatprep.subr.bf16.mxu0 0
      %1099 = vmatpush2.bf16.msra.mxu0 0
      %1100 = vmatprep.subr.bf16.mxu0 0
      %1101 = vmatpush2.bf16.msra.mxu0 0
      %1102 = vmatprep.subr.bf16.mxu0 0
      %1103 = vmatpush2.bf16.msra.mxu0 0
      %1104 = vmatprep.subr.bf16.mxu0 0
      %1105 = vmatpush2.bf16.msra.mxu0 0
      %1106 = vmatprep.mubr.bf16.mxu0 0
      %1107 = vmatmul.mubr.bf16.gmra.mxu0 %v1005
      %v1108 = vpop.f32.mrf.mxu0
      %v1109 = vadd.f32 0.0, %v1108
      %v1110 = vpop.f32.mrf.mxu0
      %v1111 = vpop.f32.mrf.mxu0
      %v1112 = vadd.f32 0.0, %v1111
      %v1113 = vpop.f32.mrf.mxu0
      %1114 = vmatprep.mubr.bf16.mxu0 0
      %1115 = vmatmul.mubr.bf16.gmra.mxu0 %v1006
      %v1116 = vpop.f32.mrf.mxu0
      %v1117 = vadd.f32 0.0, %v1116
      %v1118 = vpop.f32.mrf.mxu0
      %v1119 = vpop.f32.mrf.mxu0
      %v1120 = vadd.f32 0.0, %v1119
      %v1121 = vpop.f32.mrf.mxu0
      %1122 = vmatprep.mubr.bf16.mxu0 0
      %1123 = vmatmul.mubr.bf16.gmra.mxu0 %v1007
      %v1124 = vpop.f32.mrf.mxu0
      %v1125 = vadd.f32 0.0, %v1124
      %v1126 = vpop.f32.mrf.mxu0
      %v1127 = vpop.f32.mrf.mxu0
      %v1128 = vadd.f32 0.0, %v1127
      %v1129 = vpop.f32.mrf.mxu0
      %1130 = vmatprep.mubr.bf16.mxu0 0
      %1131 = vmatmul.mubr.bf16.gmra.mxu0 %v1008
      %v1132 = vpop.f32.mrf.mxu0
      %v1133 = vadd.f32 0.0, %v1132
      %v1134 = vpop.f32.mrf.mxu0
      %v1135 = vpop.f32.mrf.mxu0
      %v1136 = vadd.f32 0.0, %v1135
      %v1137 = vpop.f32.mrf.mxu0
      %1138 = vdwg.mxu0
      %v1139 = vadd.f32 %v997, %v1109
      %v1140 = vadd.f32 %v998, %v1112
      %v1141 = vadd.f32 %v999, %v1117
      %v1142 = vadd.f32 %v1000, %v1120
      %v1143 = vadd.f32 %v1001, %v1125
      %v1144 = vadd.f32 %v1002, %v1128
      %v1145 = vadd.f32 %v1003, %v1133
      %v1146 = vadd.f32 %v1004, %v1136
      %v1149 = vrot.slane %v510, 1
      %v1150 = vrot.slane %v511, 1
      %v1151 = vsel %vm550, %v1149, %v1150
      %v1153 = vpack.c.bf16 %v559, %v556
      %v1154 = vpack.c.bf16 %v565, %v562
      %v1155 = vpack.c.bf16 %v571, %v568
      %v1156 = vpack.c.bf16 %v1151, %v574
      %s1157 = scalar_lea.vmem %s1, 256
      %v1158 = vld [vmem:[%s1157] sm:$0xf]
      %v1159 = vld [vmem:[%s1157 + $0x4] sm:$0xf]
      %v1160 = vld [vmem:[%s1157 + $0x8] sm:$0xf]
      %v1161 = vld [vmem:[%s1157 + $0xc] sm:$0xf]
      %v1162 = vld [vmem:[%s1157 + $0x10] sm:$0xf]
      %v1163 = vld [vmem:[%s1157 + $0x14] sm:$0xf]
      %v1164 = vld [vmem:[%s1157 + $0x18] sm:$0xf]
      %v1165 = vld [vmem:[%s1157 + $0x1c] sm:$0xf]
      %v1166 = vld [vmem:[%s1157 + $0x20] sm:$0xf]
      %v1167 = vld [vmem:[%s1157 + $0x24] sm:$0xf]
      %v1168 = vld [vmem:[%s1157 + $0x28] sm:$0xf]
      %v1169 = vld [vmem:[%s1157 + $0x2c] sm:$0xf]
      %v1170 = vld [vmem:[%s1157 + $0x30] sm:$0xf]
      %v1171 = vld [vmem:[%s1157 + $0x34] sm:$0xf]
      %v1172 = vld [vmem:[%s1157 + $0x38] sm:$0xf]
      %v1173 = vld [vmem:[%s1157 + $0x3c] sm:$0xf]
      %v1190 = vunpack.c.l.b16 %v1158
      %v1191 = vunpack.c.l.b16 %v1159
      %v1192 = vunpack.c.l.b16 %v1160
      %v1193 = vunpack.c.l.b16 %v1161
      %v1194 = vunpack.c.l.b16 %v1162
      %v1195 = vunpack.c.l.b16 %v1163
      %v1196 = vunpack.c.l.b16 %v1164
      %v1197 = vunpack.c.l.b16 %v1165
      %v1198 = vunpack.c.l.b16 %v1166
      %v1199 = vunpack.c.l.b16 %v1167
      %v1200 = vunpack.c.l.b16 %v1168
      %v1201 = vunpack.c.l.b16 %v1169
      %v1202 = vunpack.c.l.b16 %v1170
      %v1203 = vunpack.c.l.b16 %v1171
      %v1204 = vunpack.c.l.b16 %v1172
      %v1205 = vunpack.c.l.b16 %v1173
      %v1206 = vpack.c.b16 %v1191, %v1190
      %v1207 = vpack.c.b16 %v1193, %v1192
      %v1208 = vpack.c.b16 %v1195, %v1194
      %v1209 = vpack.c.b16 %v1197, %v1196
      %v1210 = vpack.c.b16 %v1199, %v1198
      %v1211 = vpack.c.b16 %v1201, %v1200
      %v1212 = vpack.c.b16 %v1203, %v1202
      %v1213 = vpack.c.b16 %v1205, %v1204
      %1222 = vmatprep.subr.bf16.mxu0 0
      %1223 = vmatpush1.bf16.msra.mxu0 %v1213
      %1224 = vmatprep.subr.bf16.mxu0 0
      %1225 = vmatpush1.bf16.msra.mxu0 %v1212
      %1226 = vmatprep.subr.bf16.mxu0 0
      %1227 = vmatpush1.bf16.msra.mxu0 %v1211
      %1228 = vmatprep.subr.bf16.mxu0 0
      %1229 = vmatpush1.bf16.msra.mxu0 %v1210
      %1230 = vmatprep.subr.bf16.mxu0 0
      %1231 = vmatpush1.bf16.msra.mxu0 %v1209
      %1232 = vmatprep.subr.bf16.mxu0 0
      %1233 = vmatpush1.bf16.msra.mxu0 %v1208
      %1234 = vmatprep.subr.bf16.mxu0 0
      %1235 = vmatpush1.bf16.msra.mxu0 %v1207
      %1236 = vmatprep.subr.bf16.mxu0 0
      %1237 = vmatpush1.bf16.msra.mxu0 %v1206
      %1238 = vmatprep.subr.bf16.mxu0 0
      %1239 = vmatpush2.bf16.msra.mxu0 0
      %1240 = vmatprep.subr.bf16.mxu0 0
      %1241 = vmatpush2.bf16.msra.mxu0 0
      %1242 = vmatprep.subr.bf16.mxu0 0
      %1243 = vmatpush2.bf16.msra.mxu0 0
      %1244 = vmatprep.subr.bf16.mxu0 0
      %1245 = vmatpush2.bf16.msra.mxu0 0
      %1246 = vmatprep.subr.bf16.mxu0 0
      %1247 = vmatpush2.bf16.msra.mxu0 0
      %1248 = vmatprep.subr.bf16.mxu0 0
      %1249 = vmatpush2.bf16.msra.mxu0 0
      %1250 = vmatprep.subr.bf16.mxu0 0
      %1251 = vmatpush2.bf16.msra.mxu0 0
      %1252 = vmatprep.subr.bf16.mxu0 0
      %1253 = vmatpush2.bf16.msra.mxu0 0
      %1254 = vmatprep.mubr.bf16.mxu0 0
      %1255 = vmatmul.mubr.bf16.gmra.mxu0 %v1153
      %v1256 = vpop.f32.mrf.mxu0
      %v1257 = vadd.f32 0.0, %v1256
      %v1258 = vpop.f32.mrf.mxu0
      %v1259 = vpop.f32.mrf.mxu0
      %v1260 = vadd.f32 0.0, %v1259
      %v1261 = vpop.f32.mrf.mxu0
      %1262 = vmatprep.mubr.bf16.mxu0 0
      %1263 = vmatmul.mubr.bf16.gmra.mxu0 %v1154
      %v1264 = vpop.f32.mrf.mxu0
      %v1265 = vadd.f32 0.0, %v1264
      %v1266 = vpop.f32.mrf.mxu0
      %v1267 = vpop.f32.mrf.mxu0
      %v1268 = vadd.f32 0.0, %v1267
      %v1269 = vpop.f32.mrf.mxu0
      %1270 = vmatprep.mubr.bf16.mxu0 0
      %1271 = vmatmul.mubr.bf16.gmra.mxu0 %v1155
      %v1272 = vpop.f32.mrf.mxu0
      %v1273 = vadd.f32 0.0, %v1272
      %v1274 = vpop.f32.mrf.mxu0
      %v1275 = vpop.f32.mrf.mxu0
      %v1276 = vadd.f32 0.0, %v1275
      %v1277 = vpop.f32.mrf.mxu0
      %1278 = vmatprep.mubr.bf16.mxu0 0
      %1279 = vmatmul.mubr.bf16.gmra.mxu0 %v1156
      %v1280 = vpop.f32.mrf.mxu0
      %v1281 = vadd.f32 0.0, %v1280
      %v1282 = vpop.f32.mrf.mxu0
      %v1283 = vpop.f32.mrf.mxu0
      %v1284 = vadd.f32 0.0, %v1283
      %v1285 = vpop.f32.mrf.mxu0
      %1286 = vdwg.mxu0
      %v1287 = vadd.f32 %v1139, %v1257
      %v1288 = vadd.f32 %v1140, %v1260
      %v1289 = vadd.f32 %v1141, %v1265
      %v1290 = vadd.f32 %v1142, %v1268
      %v1291 = vadd.f32 %v1143, %v1273
      %v1292 = vadd.f32 %v1144, %v1276
      %v1293 = vadd.f32 %v1145, %v1281
      %v1294 = vadd.f32 %v1146, %v1284
      %v1295 = vrot.slane %v510, 2
      %v1296 = vrot.slane %v511, 2
      %v1297 = vsel %vm830, %v1295, %v1296
      %v1299 = vpack.c.bf16 %v839, %v836
      %v1300 = vpack.c.bf16 %v845, %v842
      %v1301 = vpack.c.bf16 %v851, %v848
      %v1302 = vpack.c.bf16 %v1297, %v854
      %s1303 = scalar_lea.vmem %s1, 320
      %v1304 = vld [vmem:[%s1303] sm:$0xf]
      %v1305 = vld [vmem:[%s1303 + $0x4] sm:$0xf]
      %v1306 = vld [vmem:[%s1303 + $0x8] sm:$0xf]
      %v1307 = vld [vmem:[%s1303 + $0xc] sm:$0xf]
      %v1308 = vld [vmem:[%s1303 + $0x10] sm:$0xf]
      %v1309 = vld [vmem:[%s1303 + $0x14] sm:$0xf]
      %v1310 = vld [vmem:[%s1303 + $0x18] sm:$0xf]
      %v1311 = vld [vmem:[%s1303 + $0x1c] sm:$0xf]
      %v1312 = vld [vmem:[%s1303 + $0x20] sm:$0xf]
      %v1313 = vld [vmem:[%s1303 + $0x24] sm:$0xf]
      %v1314 = vld [vmem:[%s1303 + $0x28] sm:$0xf]
      %v1315 = vld [vmem:[%s1303 + $0x2c] sm:$0xf]
      %v1316 = vld [vmem:[%s1303 + $0x30] sm:$0xf]
      %v1317 = vld [vmem:[%s1303 + $0x34] sm:$0xf]
      %v1318 = vld [vmem:[%s1303 + $0x38] sm:$0xf]
      %v1319 = vld [vmem:[%s1303 + $0x3c] sm:$0xf]
      %v1336 = vunpack.c.l.b16 %v1304
      %v1337 = vunpack.c.l.b16 %v1305
      %v1338 = vunpack.c.l.b16 %v1306
      %v1339 = vunpack.c.l.b16 %v1307
      %v1340 = vunpack.c.l.b16 %v1308
      %v1341 = vunpack.c.l.b16 %v1309
      %v1342 = vunpack.c.l.b16 %v1310
      %v1343 = vunpack.c.l.b16 %v1311
      %v1344 = vunpack.c.l.b16 %v1312
      %v1345 = vunpack.c.l.b16 %v1313
      %v1346 = vunpack.c.l.b16 %v1314
      %v1347 = vunpack.c.l.b16 %v1315
      %v1348 = vunpack.c.l.b16 %v1316
      %v1349 = vunpack.c.l.b16 %v1317
      %v1350 = vunpack.c.l.b16 %v1318
      %v1351 = vunpack.c.l.b16 %v1319
      %v1352 = vpack.c.b16 %v1337, %v1336
      %v1353 = vpack.c.b16 %v1339, %v1338
      %v1354 = vpack.c.b16 %v1341, %v1340
      %v1355 = vpack.c.b16 %v1343, %v1342
      %v1356 = vpack.c.b16 %v1345, %v1344
      %v1357 = vpack.c.b16 %v1347, %v1346
      %v1358 = vpack.c.b16 %v1349, %v1348
      %v1359 = vpack.c.b16 %v1351, %v1350
      %1368 = vmatprep.subr.bf16.mxu0 0
      %1369 = vmatpush1.bf16.msra.mxu0 %v1359
      %1370 = vmatprep.subr.bf16.mxu0 0
      %1371 = vmatpush1.bf16.msra.mxu0 %v1358
      %1372 = vmatprep.subr.bf16.mxu0 0
      %1373 = vmatpush1.bf16.msra.mxu0 %v1357
      %1374 = vmatprep.subr.bf16.mxu0 0
      %1375 = vmatpush1.bf16.msra.mxu0 %v1356
      %1376 = vmatprep.subr.bf16.mxu0 0
      %1377 = vmatpush1.bf16.msra.mxu0 %v1355
      %1378 = vmatprep.subr.bf16.mxu0 0
      %1379 = vmatpush1.bf16.msra.mxu0 %v1354
      %1380 = vmatprep.subr.bf16.mxu0 0
      %1381 = vmatpush1.bf16.msra.mxu0 %v1353
      %1382 = vmatprep.subr.bf16.mxu0 0
      %1383 = vmatpush1.bf16.msra.mxu0 %v1352
      %1384 = vmatprep.subr.bf16.mxu0 0
      %1385 = vmatpush2.bf16.msra.mxu0 0
      %1386 = vmatprep.subr.bf16.mxu0 0
      %1387 = vmatpush2.bf16.msra.mxu0 0
      %1388 = vmatprep.subr.bf16.mxu0 0
      %1389 = vmatpush2.bf16.msra.mxu0 0
      %1390 = vmatprep.subr.bf16.mxu0 0
      %1391 = vmatpush2.bf16.msra.mxu0 0
      %1392 = vmatprep.subr.bf16.mxu0 0
      %1393 = vmatpush2.bf16.msra.mxu0 0
      %1394 = vmatprep.subr.bf16.mxu0 0
      %1395 = vmatpush2.bf16.msra.mxu0 0
      %1396 = vmatprep.subr.bf16.mxu0 0
      %1397 = vmatpush2.bf16.msra.mxu0 0
      %1398 = vmatprep.subr.bf16.mxu0 0
      %1399 = vmatpush2.bf16.msra.mxu0 0
      %1400 = vmatprep.mubr.bf16.mxu0 0
      %1401 = vmatmul.mubr.bf16.gmra.mxu0 %v1299
      %v1402 = vpop.f32.mrf.mxu0
      %v1403 = vadd.f32 0.0, %v1402
      %v1404 = vpop.f32.mrf.mxu0
      %v1405 = vpop.f32.mrf.mxu0
      %v1406 = vadd.f32 0.0, %v1405
      %v1407 = vpop.f32.mrf.mxu0
      %1408 = vmatprep.mubr.bf16.mxu0 0
      %1409 = vmatmul.mubr.bf16.gmra.mxu0 %v1300
      %v1410 = vpop.f32.mrf.mxu0
      %v1411 = vadd.f32 0.0, %v1410
      %v1412 = vpop.f32.mrf.mxu0
      %v1413 = vpop.f32.mrf.mxu0
      %v1414 = vadd.f32 0.0, %v1413
      %v1415 = vpop.f32.mrf.mxu0
      %1416 = vmatprep.mubr.bf16.mxu0 0
      %1417 = vmatmul.mubr.bf16.gmra.mxu0 %v1301
      %v1418 = vpop.f32.mrf.mxu0
      %v1419 = vadd.f32 0.0, %v1418
      %v1420 = vpop.f32.mrf.mxu0
      %v1421 = vpop.f32.mrf.mxu0
      %v1422 = vadd.f32 0.0, %v1421
      %v1423 = vpop.f32.mrf.mxu0
      %1424 = vmatprep.mubr.bf16.mxu0 0
      %1425 = vmatmul.mubr.bf16.gmra.mxu0 %v1302
      %v1426 = vpop.f32.mrf.mxu0
      %v1427 = vadd.f32 0.0, %v1426
      %v1428 = vpop.f32.mrf.mxu0
      %v1429 = vpop.f32.mrf.mxu0
      %v1430 = vadd.f32 0.0, %v1429
      %v1431 = vpop.f32.mrf.mxu0
      %1432 = vdwg.mxu0
      %v1433 = vadd.f32 %v1287, %v1403
      %v1434 = vadd.f32 %v1288, %v1406
      %v1435 = vadd.f32 %v1289, %v1411
      %v1436 = vadd.f32 %v1290, %v1414
      %v1437 = vadd.f32 %v1291, %v1419
      %v1438 = vadd.f32 %v1292, %v1422
      %v1439 = vadd.f32 %v1293, %v1427
      %v1440 = vadd.f32 %v1294, %v1430
      %v1441 = vpack.c.bf16 %v512, %v510
      %s1442 = scalar_lea.vmem %s1, 384
      %v1443 = vld [vmem:[%s1442] sm:$0xf]
      %v1444 = vld [vmem:[%s1442 + $0x4] sm:$0xf]
      %v1445 = vld [vmem:[%s1442 + $0x8] sm:$0xf]
      %v1446 = vld [vmem:[%s1442 + $0xc] sm:$0xf]
      %v1447 = vld [vmem:[%s1442 + $0x10] sm:$0xf]
      %v1448 = vld [vmem:[%s1442 + $0x14] sm:$0xf]
      %v1449 = vld [vmem:[%s1442 + $0x18] sm:$0xf]
      %v1450 = vld [vmem:[%s1442 + $0x1c] sm:$0xf]
      %v1451 = vld [vmem:[%s1442 + $0x20] sm:$0xf]
      %v1452 = vld [vmem:[%s1442 + $0x24] sm:$0xf]
      %v1453 = vld [vmem:[%s1442 + $0x28] sm:$0xf]
      %v1454 = vld [vmem:[%s1442 + $0x2c] sm:$0xf]
      %v1455 = vld [vmem:[%s1442 + $0x30] sm:$0xf]
      %v1456 = vld [vmem:[%s1442 + $0x34] sm:$0xf]
      %v1457 = vld [vmem:[%s1442 + $0x38] sm:$0xf]
      %v1458 = vld [vmem:[%s1442 + $0x3c] sm:$0xf]
      %v1475 = vunpack.c.l.b16 %v1443
      %v1476 = vunpack.c.l.b16 %v1444
      %v1477 = vunpack.c.l.b16 %v1445
      %v1478 = vunpack.c.l.b16 %v1446
      %v1479 = vunpack.c.l.b16 %v1447
      %v1480 = vunpack.c.l.b16 %v1448
      %v1481 = vunpack.c.l.b16 %v1449
      %v1482 = vunpack.c.l.b16 %v1450
      %v1483 = vunpack.c.l.b16 %v1451
      %v1484 = vunpack.c.l.b16 %v1452
      %v1485 = vunpack.c.l.b16 %v1453
      %v1486 = vunpack.c.l.b16 %v1454
      %v1487 = vunpack.c.l.b16 %v1455
      %v1488 = vunpack.c.l.b16 %v1456
      %v1489 = vunpack.c.l.b16 %v1457
      %v1490 = vunpack.c.l.b16 %v1458
      %v1491 = vpack.c.b16 %v1476, %v1475
      %v1492 = vpack.c.b16 %v1478, %v1477
      %v1493 = vpack.c.b16 %v1480, %v1479
      %v1494 = vpack.c.b16 %v1482, %v1481
      %v1495 = vpack.c.b16 %v1484, %v1483
      %v1496 = vpack.c.b16 %v1486, %v1485
      %v1497 = vpack.c.b16 %v1488, %v1487
      %v1498 = vpack.c.b16 %v1490, %v1489
      %1507 = vmatprep.subr.bf16.mxu0 0
      %1508 = vmatpush1.bf16.msra.mxu0 %v1498
      %1509 = vmatprep.subr.bf16.mxu0 0
      %1510 = vmatpush1.bf16.msra.mxu0 %v1497
      %1511 = vmatprep.subr.bf16.mxu0 0
      %1512 = vmatpush1.bf16.msra.mxu0 %v1496
      %1513 = vmatprep.subr.bf16.mxu0 0
      %1514 = vmatpush1.bf16.msra.mxu0 %v1495
      %1515 = vmatprep.subr.bf16.mxu0 0
      %1516 = vmatpush1.bf16.msra.mxu0 %v1494
      %1517 = vmatprep.subr.bf16.mxu0 0
      %1518 = vmatpush1.bf16.msra.mxu0 %v1493
      %1519 = vmatprep.subr.bf16.mxu0 0
      %1520 = vmatpush1.bf16.msra.mxu0 %v1492
      %1521 = vmatprep.subr.bf16.mxu0 0
      %1522 = vmatpush1.bf16.msra.mxu0 %v1491
      %1523 = vmatprep.subr.bf16.mxu0 0
      %1524 = vmatpush2.bf16.msra.mxu0 0
      %1525 = vmatprep.subr.bf16.mxu0 0
      %1526 = vmatpush2.bf16.msra.mxu0 0
      %1527 = vmatprep.subr.bf16.mxu0 0
      %1528 = vmatpush2.bf16.msra.mxu0 0
      %1529 = vmatprep.subr.bf16.mxu0 0
      %1530 = vmatpush2.bf16.msra.mxu0 0
      %1531 = vmatprep.subr.bf16.mxu0 0
      %1532 = vmatpush2.bf16.msra.mxu0 0
      %1533 = vmatprep.subr.bf16.mxu0 0
      %1534 = vmatpush2.bf16.msra.mxu0 0
      %1535 = vmatprep.subr.bf16.mxu0 0
      %1536 = vmatpush2.bf16.msra.mxu0 0
      %1537 = vmatprep.subr.bf16.mxu0 0
      %1538 = vmatpush2.bf16.msra.mxu0 0
      %1539 = vmatprep.mubr.bf16.mxu0 0
      %1540 = vmatmul.mubr.bf16.gmra.mxu0 %v515
      %v1541 = vpop.f32.mrf.mxu0
      %v1542 = vadd.f32 0.0, %v1541
      %v1543 = vpop.f32.mrf.mxu0
      %v1544 = vpop.f32.mrf.mxu0
      %v1545 = vadd.f32 0.0, %v1544
      %v1546 = vpop.f32.mrf.mxu0
      %1547 = vmatprep.mubr.bf16.mxu0 0
      %1548 = vmatmul.mubr.bf16.gmra.mxu0 %v516
      %v1549 = vpop.f32.mrf.mxu0
      %v1550 = vadd.f32 0.0, %v1549
      %v1551 = vpop.f32.mrf.mxu0
      %v1552 = vpop.f32.mrf.mxu0
      %v1553 = vadd.f32 0.0, %v1552
      %v1554 = vpop.f32.mrf.mxu0
      %1555 = vmatprep.mubr.bf16.mxu0 0
      %1556 = vmatmul.mubr.bf16.gmra.mxu0 %v517
      %v1557 = vpop.f32.mrf.mxu0
      %v1558 = vadd.f32 0.0, %v1557
      %v1559 = vpop.f32.mrf.mxu0
      %v1560 = vpop.f32.mrf.mxu0
      %v1561 = vadd.f32 0.0, %v1560
      %v1562 = vpop.f32.mrf.mxu0
      %1563 = vmatprep.mubr.bf16.mxu0 0
      %1564 = vmatmul.mubr.bf16.gmra.mxu0 %v1441
      %v1565 = vpop.f32.mrf.mxu0
      %v1566 = vadd.f32 0.0, %v1565
      %v1567 = vpop.f32.mrf.mxu0
      %v1568 = vpop.f32.mrf.mxu0
      %v1569 = vadd.f32 0.0, %v1568
      %v1570 = vpop.f32.mrf.mxu0
      %1571 = vdwg.mxu0
      %v1572 = vadd.f32 %v1433, %v1542
      %v1573 = vadd.f32 %v1434, %v1545
      %v1574 = vadd.f32 %v1435, %v1550
      %v1575 = vadd.f32 %v1436, %v1553
      %v1576 = vadd.f32 %v1437, %v1558
      %v1577 = vadd.f32 %v1438, %v1561
      %v1578 = vadd.f32 %v1439, %v1566
      %v1579 = vadd.f32 %v1440, %v1569
      %v1582 = vrot.slane %v512, 1
      %v1583 = vrot.slane %v513, 1
      %v1584 = vsel %vm550, %v1582, %v1583
      %v1586 = vpack.c.bf16 %v1584, %v1151
      %s1587 = scalar_lea.vmem %s1, 448
      %v1588 = vld [vmem:[%s1587] sm:$0xf]
      %v1589 = vld [vmem:[%s1587 + $0x4] sm:$0xf]
      %v1590 = vld [vmem:[%s1587 + $0x8] sm:$0xf]
      %v1591 = vld [vmem:[%s1587 + $0xc] sm:$0xf]
      %v1592 = vld [vmem:[%s1587 + $0x10] sm:$0xf]
      %v1593 = vld [vmem:[%s1587 + $0x14] sm:$0xf]
      %v1594 = vld [vmem:[%s1587 + $0x18] sm:$0xf]
      %v1595 = vld [vmem:[%s1587 + $0x1c] sm:$0xf]
      %v1596 = vld [vmem:[%s1587 + $0x20] sm:$0xf]
      %v1597 = vld [vmem:[%s1587 + $0x24] sm:$0xf]
      %v1598 = vld [vmem:[%s1587 + $0x28] sm:$0xf]
      %v1599 = vld [vmem:[%s1587 + $0x2c] sm:$0xf]
      %v1600 = vld [vmem:[%s1587 + $0x30] sm:$0xf]
      %v1601 = vld [vmem:[%s1587 + $0x34] sm:$0xf]
      %v1602 = vld [vmem:[%s1587 + $0x38] sm:$0xf]
      %v1603 = vld [vmem:[%s1587 + $0x3c] sm:$0xf]
      %v1620 = vunpack.c.l.b16 %v1588
      %v1621 = vunpack.c.l.b16 %v1589
      %v1622 = vunpack.c.l.b16 %v1590
      %v1623 = vunpack.c.l.b16 %v1591
      %v1624 = vunpack.c.l.b16 %v1592
      %v1625 = vunpack.c.l.b16 %v1593
      %v1626 = vunpack.c.l.b16 %v1594
      %v1627 = vunpack.c.l.b16 %v1595
      %v1628 = vunpack.c.l.b16 %v1596
      %v1629 = vunpack.c.l.b16 %v1597
      %v1630 = vunpack.c.l.b16 %v1598
      %v1631 = vunpack.c.l.b16 %v1599
      %v1632 = vunpack.c.l.b16 %v1600
      %v1633 = vunpack.c.l.b16 %v1601
      %v1634 = vunpack.c.l.b16 %v1602
      %v1635 = vunpack.c.l.b16 %v1603
      %v1636 = vpack.c.b16 %v1621, %v1620
      %v1637 = vpack.c.b16 %v1623, %v1622
      %v1638 = vpack.c.b16 %v1625, %v1624
      %v1639 = vpack.c.b16 %v1627, %v1626
      %v1640 = vpack.c.b16 %v1629, %v1628
      %v1641 = vpack.c.b16 %v1631, %v1630
      %v1642 = vpack.c.b16 %v1633, %v1632
      %v1643 = vpack.c.b16 %v1635, %v1634
      %1652 = vmatprep.subr.bf16.mxu0 0
      %1653 = vmatpush1.bf16.msra.mxu0 %v1643
      %1654 = vmatprep.subr.bf16.mxu0 0
      %1655 = vmatpush1.bf16.msra.mxu0 %v1642
      %1656 = vmatprep.subr.bf16.mxu0 0
      %1657 = vmatpush1.bf16.msra.mxu0 %v1641
      %1658 = vmatprep.subr.bf16.mxu0 0
      %1659 = vmatpush1.bf16.msra.mxu0 %v1640
      %1660 = vmatprep.subr.bf16.mxu0 0
      %1661 = vmatpush1.bf16.msra.mxu0 %v1639
      %1662 = vmatprep.subr.bf16.mxu0 0
      %1663 = vmatpush1.bf16.msra.mxu0 %v1638
      %1664 = vmatprep.subr.bf16.mxu0 0
      %1665 = vmatpush1.bf16.msra.mxu0 %v1637
      %1666 = vmatprep.subr.bf16.mxu0 0
      %1667 = vmatpush1.bf16.msra.mxu0 %v1636
      %1668 = vmatprep.subr.bf16.mxu0 0
      %1669 = vmatpush2.bf16.msra.mxu0 0
      %1670 = vmatprep.subr.bf16.mxu0 0
      %1671 = vmatpush2.bf16.msra.mxu0 0
      %1672 = vmatprep.subr.bf16.mxu0 0
      %1673 = vmatpush2.bf16.msra.mxu0 0
      %1674 = vmatprep.subr.bf16.mxu0 0
      %1675 = vmatpush2.bf16.msra.mxu0 0
      %1676 = vmatprep.subr.bf16.mxu0 0
      %1677 = vmatpush2.bf16.msra.mxu0 0
      %1678 = vmatprep.subr.bf16.mxu0 0
      %1679 = vmatpush2.bf16.msra.mxu0 0
      %1680 = vmatprep.subr.bf16.mxu0 0
      %1681 = vmatpush2.bf16.msra.mxu0 0
      %1682 = vmatprep.subr.bf16.mxu0 0
      %1683 = vmatpush2.bf16.msra.mxu0 0
      %1684 = vmatprep.mubr.bf16.mxu0 0
      %1685 = vmatmul.mubr.bf16.gmra.mxu0 %v584
      %v1686 = vpop.f32.mrf.mxu0
      %v1687 = vadd.f32 0.0, %v1686
      %v1688 = vpop.f32.mrf.mxu0
      %v1689 = vpop.f32.mrf.mxu0
      %v1690 = vadd.f32 0.0, %v1689
      %v1691 = vpop.f32.mrf.mxu0
      %1692 = vmatprep.mubr.bf16.mxu0 0
      %1693 = vmatmul.mubr.bf16.gmra.mxu0 %v585
      %v1694 = vpop.f32.mrf.mxu0
      %v1695 = vadd.f32 0.0, %v1694
      %v1696 = vpop.f32.mrf.mxu0
      %v1697 = vpop.f32.mrf.mxu0
      %v1698 = vadd.f32 0.0, %v1697
      %v1699 = vpop.f32.mrf.mxu0
      %1700 = vmatprep.mubr.bf16.mxu0 0
      %1701 = vmatmul.mubr.bf16.gmra.mxu0 %v586
      %v1702 = vpop.f32.mrf.mxu0
      %v1703 = vadd.f32 0.0, %v1702
      %v1704 = vpop.f32.mrf.mxu0
      %v1705 = vpop.f32.mrf.mxu0
      %v1706 = vadd.f32 0.0, %v1705
      %v1707 = vpop.f32.mrf.mxu0
      %1708 = vmatprep.mubr.bf16.mxu0 0
      %1709 = vmatmul.mubr.bf16.gmra.mxu0 %v1586
      %v1710 = vpop.f32.mrf.mxu0
      %v1711 = vadd.f32 0.0, %v1710
      %v1712 = vpop.f32.mrf.mxu0
      %v1713 = vpop.f32.mrf.mxu0
      %v1714 = vadd.f32 0.0, %v1713
      %v1715 = vpop.f32.mrf.mxu0
      %1716 = vdwg.mxu0
      %v1717 = vadd.f32 %v1572, %v1687
      %v1718 = vadd.f32 %v1573, %v1690
      %v1719 = vadd.f32 %v1574, %v1695
      %v1720 = vadd.f32 %v1575, %v1698
      %v1721 = vadd.f32 %v1576, %v1703
      %v1722 = vadd.f32 %v1577, %v1706
      %v1723 = vadd.f32 %v1578, %v1711
      %v1724 = vadd.f32 %v1579, %v1714
      %v1725 = vrot.slane %v512, 2
      %v1726 = vrot.slane %v513, 2
      %v1727 = vsel %vm830, %v1725, %v1726
      %v1729 = vpack.c.bf16 %v1727, %v1297
      %s1730 = scalar_lea.vmem %s1, 512
      %v1731 = vld [vmem:[%s1730] sm:$0xf]
      %v1732 = vld [vmem:[%s1730 + $0x4] sm:$0xf]
      %v1733 = vld [vmem:[%s1730 + $0x8] sm:$0xf]
      %v1734 = vld [vmem:[%s1730 + $0xc] sm:$0xf]
      %v1735 = vld [vmem:[%s1730 + $0x10] sm:$0xf]
      %v1736 = vld [vmem:[%s1730 + $0x14] sm:$0xf]
      %v1737 = vld [vmem:[%s1730 + $0x18] sm:$0xf]
      %v1738 = vld [vmem:[%s1730 + $0x1c] sm:$0xf]
      %v1739 = vld [vmem:[%s1730 + $0x20] sm:$0xf]
      %v1740 = vld [vmem:[%s1730 + $0x24] sm:$0xf]
      %v1741 = vld [vmem:[%s1730 + $0x28] sm:$0xf]
      %v1742 = vld [vmem:[%s1730 + $0x2c] sm:$0xf]
      %v1743 = vld [vmem:[%s1730 + $0x30] sm:$0xf]
      %v1744 = vld [vmem:[%s1730 + $0x34] sm:$0xf]
      %v1745 = vld [vmem:[%s1730 + $0x38] sm:$0xf]
      %v1746 = vld [vmem:[%s1730 + $0x3c] sm:$0xf]
      %v1763 = vunpack.c.l.b16 %v1731
      %v1764 = vunpack.c.l.b16 %v1732
      %v1765 = vunpack.c.l.b16 %v1733
      %v1766 = vunpack.c.l.b16 %v1734
      %v1767 = vunpack.c.l.b16 %v1735
      %v1768 = vunpack.c.l.b16 %v1736
      %v1769 = vunpack.c.l.b16 %v1737
      %v1770 = vunpack.c.l.b16 %v1738
      %v1771 = vunpack.c.l.b16 %v1739
      %v1772 = vunpack.c.l.b16 %v1740
      %v1773 = vunpack.c.l.b16 %v1741
      %v1774 = vunpack.c.l.b16 %v1742
      %v1775 = vunpack.c.l.b16 %v1743
      %v1776 = vunpack.c.l.b16 %v1744
      %v1777 = vunpack.c.l.b16 %v1745
      %v1778 = vunpack.c.l.b16 %v1746
      %v1779 = vpack.c.b16 %v1764, %v1763
      %v1780 = vpack.c.b16 %v1766, %v1765
      %v1781 = vpack.c.b16 %v1768, %v1767
      %v1782 = vpack.c.b16 %v1770, %v1769
      %v1783 = vpack.c.b16 %v1772, %v1771
      %v1784 = vpack.c.b16 %v1774, %v1773
      %v1785 = vpack.c.b16 %v1776, %v1775
      %v1786 = vpack.c.b16 %v1778, %v1777
      %1795 = vmatprep.subr.bf16.mxu0 0
      %1796 = vmatpush1.bf16.msra.mxu0 %v1786
      %1797 = vmatprep.subr.bf16.mxu0 0
      %1798 = vmatpush1.bf16.msra.mxu0 %v1785
      %1799 = vmatprep.subr.bf16.mxu0 0
      %1800 = vmatpush1.bf16.msra.mxu0 %v1784
      %1801 = vmatprep.subr.bf16.mxu0 0
      %1802 = vmatpush1.bf16.msra.mxu0 %v1783
      %1803 = vmatprep.subr.bf16.mxu0 0
      %1804 = vmatpush1.bf16.msra.mxu0 %v1782
      %1805 = vmatprep.subr.bf16.mxu0 0
      %1806 = vmatpush1.bf16.msra.mxu0 %v1781
      %1807 = vmatprep.subr.bf16.mxu0 0
      %1808 = vmatpush1.bf16.msra.mxu0 %v1780
      %1809 = vmatprep.subr.bf16.mxu0 0
      %1810 = vmatpush1.bf16.msra.mxu0 %v1779
      %1811 = vmatprep.subr.bf16.mxu0 0
      %1812 = vmatpush2.bf16.msra.mxu0 0
      %1813 = vmatprep.subr.bf16.mxu0 0
      %1814 = vmatpush2.bf16.msra.mxu0 0
      %1815 = vmatprep.subr.bf16.mxu0 0
      %1816 = vmatpush2.bf16.msra.mxu0 0
      %1817 = vmatprep.subr.bf16.mxu0 0
      %1818 = vmatpush2.bf16.msra.mxu0 0
      %1819 = vmatprep.subr.bf16.mxu0 0
      %1820 = vmatpush2.bf16.msra.mxu0 0
      %1821 = vmatprep.subr.bf16.mxu0 0
      %1822 = vmatpush2.bf16.msra.mxu0 0
      %1823 = vmatprep.subr.bf16.mxu0 0
      %1824 = vmatpush2.bf16.msra.mxu0 0
      %1825 = vmatprep.subr.bf16.mxu0 0
      %1826 = vmatpush2.bf16.msra.mxu0 0
      %1827 = vmatprep.mubr.bf16.mxu0 0
      %1828 = vmatmul.mubr.bf16.gmra.mxu0 %v864
      %v1829 = vpop.f32.mrf.mxu0
      %v1830 = vadd.f32 0.0, %v1829
      %v1831 = vpop.f32.mrf.mxu0
      %v1832 = vpop.f32.mrf.mxu0
      %v1833 = vadd.f32 0.0, %v1832
      %v1834 = vpop.f32.mrf.mxu0
      %1835 = vmatprep.mubr.bf16.mxu0 0
      %1836 = vmatmul.mubr.bf16.gmra.mxu0 %v865
      %v1837 = vpop.f32.mrf.mxu0
      %v1838 = vadd.f32 0.0, %v1837
      %v1839 = vpop.f32.mrf.mxu0
      %v1840 = vpop.f32.mrf.mxu0
      %v1841 = vadd.f32 0.0, %v1840
      %v1842 = vpop.f32.mrf.mxu0
      %1843 = vmatprep.mubr.bf16.mxu0 0
      %1844 = vmatmul.mubr.bf16.gmra.mxu0 %v866
      %v1845 = vpop.f32.mrf.mxu0
      %v1846 = vadd.f32 0.0, %v1845
      %v1847 = vpop.f32.mrf.mxu0
      %v1848 = vpop.f32.mrf.mxu0
      %v1849 = vadd.f32 0.0, %v1848
      %v1850 = vpop.f32.mrf.mxu0
      %1851 = vmatprep.mubr.bf16.mxu0 0
      %1852 = vmatmul.mubr.bf16.gmra.mxu0 %v1729
      %v1853 = vpop.f32.mrf.mxu0
      %v1854 = vadd.f32 0.0, %v1853
      %v1855 = vpop.f32.mrf.mxu0
      %v1856 = vpop.f32.mrf.mxu0
      %v1857 = vadd.f32 0.0, %v1856
      %v1858 = vpop.f32.mrf.mxu0
      %1859 = vdwg.mxu0
      %v1860 = vadd.f32 %v1717, %v1830
      %v1861 = vadd.f32 %v1718, %v1833
      %v1862 = vadd.f32 %v1719, %v1838
      %v1863 = vadd.f32 %v1720, %v1841
      %v1864 = vadd.f32 %v1721, %v1846
      %v1865 = vadd.f32 %v1722, %v1849
      %v1866 = vadd.f32 %v1723, %v1854
      %v1867 = vadd.f32 %v1724, %v1857
      %v1868 = vld [vmem:[%s2] sm:$0x1]
      %v1870 = vlaneseq
      %v1871 = vshrl.u32 %v1870, 7
      %v1872 = vsub.s32 0, %v1871
      %v1873 = vrot.slane %v1868, %v1872
      %v1875 = vmul.f32 %v1860, %v1873
      %v1876 = vmul.f32 %v1861, %v1873
      %v1877 = vmul.f32 %v1862, %v1873
      %v1878 = vmul.f32 %v1863, %v1873
      %v1879 = vmul.f32 %v1864, %v1873
      %v1880 = vmul.f32 %v1865, %v1873
      %v1881 = vmul.f32 %v1866, %v1873
      %v1882 = vmul.f32 %v1867, %v1873
      %v1883 = vld [vmem:[%s3] sm:$0x1]
      %v1885 = vlaneseq
      %v1886 = vshrl.u32 %v1885, 7
      %v1887 = vsub.s32 0, %v1886
      %v1888 = vrot.slane %v1883, %v1887
      %v1890 = vadd.f32 %v1875, %v1888
      %v1891 = vadd.f32 %v1876, %v1888
      %v1892 = vadd.f32 %v1877, %v1888
      %v1893 = vadd.f32 %v1878, %v1888
      %v1894 = vadd.f32 %v1879, %v1888
      %v1895 = vadd.f32 %v1880, %v1888
      %v1896 = vadd.f32 %v1881, %v1888
      %v1897 = vadd.f32 %v1882, %v1888
      %v1898 = vmax.f32 %v1890, 0.0
      %v1899 = vmax.f32 %v1891, 0.0
      %v1900 = vmax.f32 %v1892, 0.0
      %v1901 = vmax.f32 %v1893, 0.0
      %v1902 = vmax.f32 %v1894, 0.0
      %v1903 = vmax.f32 %v1895, 0.0
      %v1904 = vmax.f32 %v1896, 0.0
      %v1905 = vmax.f32 %v1897, 0.0
      %1906 = vst [vmem:[#allocation2] sm:$0xff] 0.0
      %1907 = vst [vmem:[#allocation2 + $0x8] sm:$0x3] 0.0
      %1908 = vst [vmem:[#allocation2 + $0x10] sm:$0xff] 0.0
      %1909 = vst [vmem:[#allocation2 + $0x18] sm:$0x3] 0.0
      %1910 = vst [vmem:[#allocation2 + $0x20] sm:$0xff] 0.0
      %1911 = vst [vmem:[#allocation2 + $0x28] sm:$0x3] 0.0
      %1912 = vst [vmem:[#allocation2 + $0x30] sm:$0xff] 0.0
      %1913 = vst [vmem:[#allocation2 + $0x38] sm:$0x3] 0.0
      %1914 = vst [vmem:[#allocation2 + $0x40] sm:$0xff] 0.0
      %1915 = vst [vmem:[#allocation2 + $0x48] sm:$0x3] 0.0
      %1916 = vst [vmem:[#allocation2 + $0x50] sm:$0xff] 0.0
      %1917 = vst [vmem:[#allocation2 + $0x58] sm:$0x3] 0.0
      %1918 = vst [vmem:[#allocation2 + $0x60] sm:$0xff] 0.0
      %1919 = vst [vmem:[#allocation2 + $0x68] sm:$0x3] 0.0
      %1920 = vst [vmem:[#allocation2 + $0x70] sm:$0xff] 0.0
      %1921 = vst [vmem:[#allocation2 + $0x78] sm:$0x3] 0.0
      %1922 = vst [vmem:[#allocation2 + $0x80] sm:$0xff] 0.0
      %1923 = vst [vmem:[#allocation2 + $0x88] sm:$0x3] 0.0
      %1924 = vst [vmem:[#allocation2 + $0x90] sm:$0xff] 0.0
      %1925 = vst [vmem:[#allocation2 + $0x98] sm:$0x3] 0.0
      %s1926 = scalar_lea.vmem [#allocation2], 16
      %1927 = vst [vmem:[%s1926 + $0x1] sm:$0xff] %v1898
      %1928 = vst [vmem:[%s1926 + $0x11] sm:$0xff] %v1899
      %1929 = vst [vmem:[%s1926 + $0x21] sm:$0xff] %v1900
      %1930 = vst [vmem:[%s1926 + $0x31] sm:$0xff] %v1901
      %1931 = vst [vmem:[%s1926 + $0x41] sm:$0xff] %v1902
      %1932 = vst [vmem:[%s1926 + $0x51] sm:$0xff] %v1903
      %1933 = vst [vmem:[%s1926 + $0x61] sm:$0xff] %v1904
      %1934 = vst [vmem:[%s1926 + $0x71] sm:$0xff] %v1905
      %v1935 = vld [vmem:[#allocation2] sm:$0xff]
      %v1936 = vld [vmem:[#allocation2 + $0x10] sm:$0xff]
      %v1937 = vld [vmem:[#allocation2 + $0x20] sm:$0xff]
      %v1938 = vld [vmem:[#allocation2 + $0x30] sm:$0xff]
      %v1939 = vld [vmem:[#allocation2 + $0x40] sm:$0xff]
      %v1940 = vld [vmem:[#allocation2 + $0x50] sm:$0xff]
      %v1941 = vld [vmem:[#allocation2 + $0x60] sm:$0xff]
      %v1942 = vld [vmem:[#allocation2 + $0x70] sm:$0xff]
      %v1943 = vpack.c.bf16 %v1936, %v1935
      %v1944 = vpack.c.bf16 %v1938, %v1937
      %v1945 = vpack.c.bf16 %v1940, %v1939
      %v1946 = vpack.c.bf16 %v1942, %v1941
      %v1947 = vld [vmem:[%s4] sm:$0xf]
      %v1948 = vld [vmem:[%s4 + $0x4] sm:$0xf]
      %v1949 = vld [vmem:[%s4 + $0x8] sm:$0xf]
      %v1950 = vld [vmem:[%s4 + $0xc] sm:$0xf]
      %v1951 = vld [vmem:[%s4 + $0x10] sm:$0xf]
      %v1952 = vld [vmem:[%s4 + $0x14] sm:$0xf]
      %v1953 = vld [vmem:[%s4 + $0x18] sm:$0xf]
      %v1954 = vld [vmem:[%s4 + $0x1c] sm:$0xf]
      %v1955 = vld [vmem:[%s4 + $0x20] sm:$0xf]
      %v1956 = vld [vmem:[%s4 + $0x24] sm:$0xf]
      %v1957 = vld [vmem:[%s4 + $0x28] sm:$0xf]
      %v1958 = vld [vmem:[%s4 + $0x2c] sm:$0xf]
      %v1959 = vld [vmem:[%s4 + $0x30] sm:$0xf]
      %v1960 = vld [vmem:[%s4 + $0x34] sm:$0xf]
      %v1961 = vld [vmem:[%s4 + $0x38] sm:$0xf]
      %v1962 = vld [vmem:[%s4 + $0x3c] sm:$0xf]
      %v1963 = vld [vmem:[#allocation2 + $0x1] sm:$0xff]
      %v1964 = vld [vmem:[#allocation2 + $0x11] sm:$0xff]
      %v1965 = vld [vmem:[#allocation2 + $0x21] sm:$0xff]
      %v1966 = vld [vmem:[#allocation2 + $0x31] sm:$0xff]
      %v1967 = vld [vmem:[#allocation2 + $0x41] sm:$0xff]
      %v1968 = vld [vmem:[#allocation2 + $0x51] sm:$0xff]
      %v1969 = vld [vmem:[#allocation2 + $0x61] sm:$0xff]
      %v1970 = vld [vmem:[#allocation2 + $0x71] sm:$0xff]
      %v1971 = vpack.c.bf16 %v1964, %v1963
      %v1972 = vpack.c.bf16 %v1966, %v1965
      %v1973 = vpack.c.bf16 %v1968, %v1967
      %v1974 = vpack.c.bf16 %v1970, %v1969
      %s1975 = scalar_lea.vmem %s4, 64
      %v1976 = vld [vmem:[%s1975] sm:$0xf]
      %v1977 = vld [vmem:[%s1975 + $0x4] sm:$0xf]
      %v1978 = vld [vmem:[%s1975 + $0x8] sm:$0xf]
      %v1979 = vld [vmem:[%s1975 + $0xc] sm:$0xf]
      %v1980 = vld [vmem:[%s1975 + $0x10] sm:$0xf]
      %v1981 = vld [vmem:[%s1975 + $0x14] sm:$0xf]
      %v1982 = vld [vmem:[%s1975 + $0x18] sm:$0xf]
      %v1983 = vld [vmem:[%s1975 + $0x1c] sm:$0xf]
      %v1984 = vld [vmem:[%s1975 + $0x20] sm:$0xf]
      %v1985 = vld [vmem:[%s1975 + $0x24] sm:$0xf]
      %v1986 = vld [vmem:[%s1975 + $0x28] sm:$0xf]
      %v1987 = vld [vmem:[%s1975 + $0x2c] sm:$0xf]
      %v1988 = vld [vmem:[%s1975 + $0x30] sm:$0xf]
      %v1989 = vld [vmem:[%s1975 + $0x34] sm:$0xf]
      %v1990 = vld [vmem:[%s1975 + $0x38] sm:$0xf]
      %v1991 = vld [vmem:[%s1975 + $0x3c] sm:$0xf]
      %v2008 = vunpack.c.l.b16 %v1976
      %v2009 = vunpack.c.l.b16 %v1977
      %v2010 = vunpack.c.l.b16 %v1978
      %v2011 = vunpack.c.l.b16 %v1979
      %v2012 = vunpack.c.l.b16 %v1980
      %v2013 = vunpack.c.l.b16 %v1981
      %v2014 = vunpack.c.l.b16 %v1982
      %v2015 = vunpack.c.l.b16 %v1983
      %v2016 = vunpack.c.l.b16 %v1984
      %v2017 = vunpack.c.l.b16 %v1985
      %v2018 = vunpack.c.l.b16 %v1986
      %v2019 = vunpack.c.l.b16 %v1987
      %v2020 = vunpack.c.l.b16 %v1988
      %v2021 = vunpack.c.l.b16 %v1989
      %v2022 = vunpack.c.l.b16 %v1990
      %v2023 = vunpack.c.l.b16 %v1991
      %v2024 = vpack.c.b16 %v2009, %v2008
      %v2025 = vpack.c.b16 %v2011, %v2010
      %v2026 = vpack.c.b16 %v2013, %v2012
      %v2027 = vpack.c.b16 %v2015, %v2014
      %v2028 = vpack.c.b16 %v2017, %v2016
      %v2029 = vpack.c.b16 %v2019, %v2018
      %v2030 = vpack.c.b16 %v2021, %v2020
      %v2031 = vpack.c.b16 %v2023, %v2022
      %2040 = vmatprep.subr.bf16.mxu0 0
      %2041 = vmatpush1.bf16.msra.mxu0 %v2031
      %2042 = vmatprep.subr.bf16.mxu0 0
      %2043 = vmatpush1.bf16.msra.mxu0 %v2030
      %2044 = vmatprep.subr.bf16.mxu0 0
      %2045 = vmatpush1.bf16.msra.mxu0 %v2029
      %2046 = vmatprep.subr.bf16.mxu0 0
      %2047 = vmatpush1.bf16.msra.mxu0 %v2028
      %2048 = vmatprep.subr.bf16.mxu0 0
      %2049 = vmatpush1.bf16.msra.mxu0 %v2027
      %2050 = vmatprep.subr.bf16.mxu0 0
      %2051 = vmatpush1.bf16.msra.mxu0 %v2026
      %2052 = vmatprep.subr.bf16.mxu0 0
      %2053 = vmatpush1.bf16.msra.mxu0 %v2025
      %2054 = vmatprep.subr.bf16.mxu0 0
      %2055 = vmatpush1.bf16.msra.mxu0 %v2024
      %2056 = vmatprep.subr.bf16.mxu0 0
      %2057 = vmatpush2.bf16.msra.mxu0 0
      %2058 = vmatprep.subr.bf16.mxu0 0
      %2059 = vmatpush2.bf16.msra.mxu0 0
      %2060 = vmatprep.subr.bf16.mxu0 0
      %2061 = vmatpush2.bf16.msra.mxu0 0
      %2062 = vmatprep.subr.bf16.mxu0 0
      %2063 = vmatpush2.bf16.msra.mxu0 0
      %2064 = vmatprep.subr.bf16.mxu0 0
      %2065 = vmatpush2.bf16.msra.mxu0 0
      %2066 = vmatprep.subr.bf16.mxu0 0
      %2067 = vmatpush2.bf16.msra.mxu0 0
      %2068 = vmatprep.subr.bf16.mxu0 0
      %2069 = vmatpush2.bf16.msra.mxu0 0
      %2070 = vmatprep.subr.bf16.mxu0 0
      %2071 = vmatpush2.bf16.msra.mxu0 0
      %2072 = vmatprep.mubr.bf16.mxu0 0
      %2073 = vmatmul.mubr.bf16.gmra.mxu0 %v1971
      %v2074 = vpop.f32.mrf.mxu0
      %v2075 = vadd.f32 0.0, %v2074
      %v2076 = vpop.f32.mrf.mxu0
      %v2077 = vpop.f32.mrf.mxu0
      %v2078 = vadd.f32 0.0, %v2077
      %v2079 = vpop.f32.mrf.mxu0
      %2080 = vmatprep.mubr.bf16.mxu0 0
      %2081 = vmatmul.mubr.bf16.gmra.mxu0 %v1972
      %v2082 = vpop.f32.mrf.mxu0
      %v2083 = vadd.f32 0.0, %v2082
      %v2084 = vpop.f32.mrf.mxu0
      %v2085 = vpop.f32.mrf.mxu0
      %v2086 = vadd.f32 0.0, %v2085
      %v2087 = vpop.f32.mrf.mxu0
      %2088 = vmatprep.mubr.bf16.mxu0 0
      %2089 = vmatmul.mubr.bf16.gmra.mxu0 %v1973
      %v2090 = vpop.f32.mrf.mxu0
      %v2091 = vadd.f32 0.0, %v2090
      %v2092 = vpop.f32.mrf.mxu0
      %v2093 = vpop.f32.mrf.mxu0
      %v2094 = vadd.f32 0.0, %v2093
      %v2095 = vpop.f32.mrf.mxu0
      %2096 = vmatprep.mubr.bf16.mxu0 0
      %2097 = vmatmul.mubr.bf16.gmra.mxu0 %v1974
      %v2098 = vpop.f32.mrf.mxu0
      %v2099 = vadd.f32 0.0, %v2098
      %v2100 = vpop.f32.mrf.mxu0
      %v2101 = vpop.f32.mrf.mxu0
      %v2102 = vadd.f32 0.0, %v2101
      %v2103 = vpop.f32.mrf.mxu0
      %2104 = vdwg.mxu0
      %v2121 = vunpack.c.l.b16 %v1947
      %v2122 = vunpack.c.l.b16 %v1948
      %v2123 = vunpack.c.l.b16 %v1949
      %v2124 = vunpack.c.l.b16 %v1950
      %v2125 = vunpack.c.l.b16 %v1951
      %v2126 = vunpack.c.l.b16 %v1952
      %v2127 = vunpack.c.l.b16 %v1953
      %v2128 = vunpack.c.l.b16 %v1954
      %v2129 = vunpack.c.l.b16 %v1955
      %v2130 = vunpack.c.l.b16 %v1956
      %v2131 = vunpack.c.l.b16 %v1957
      %v2132 = vunpack.c.l.b16 %v1958
      %v2133 = vunpack.c.l.b16 %v1959
      %v2134 = vunpack.c.l.b16 %v1960
      %v2135 = vunpack.c.l.b16 %v1961
      %v2136 = vunpack.c.l.b16 %v1962
      %v2137 = vpack.c.b16 %v2122, %v2121
      %v2138 = vpack.c.b16 %v2124, %v2123
      %v2139 = vpack.c.b16 %v2126, %v2125
      %v2140 = vpack.c.b16 %v2128, %v2127
      %v2141 = vpack.c.b16 %v2130, %v2129
      %v2142 = vpack.c.b16 %v2132, %v2131
      %v2143 = vpack.c.b16 %v2134, %v2133
      %v2144 = vpack.c.b16 %v2136, %v2135
      %2153 = vmatprep.subr.bf16.mxu0 0
      %2154 = vmatpush1.bf16.msra.mxu0 %v2144
      %2155 = vmatprep.subr.bf16.mxu0 0
      %2156 = vmatpush1.bf16.msra.mxu0 %v2143
      %2157 = vmatprep.subr.bf16.mxu0 0
      %2158 = vmatpush1.bf16.msra.mxu0 %v2142
      %2159 = vmatprep.subr.bf16.mxu0 0
      %2160 = vmatpush1.bf16.msra.mxu0 %v2141
      %2161 = vmatprep.subr.bf16.mxu0 0
      %2162 = vmatpush1.bf16.msra.mxu0 %v2140
      %2163 = vmatprep.subr.bf16.mxu0 0
      %2164 = vmatpush1.bf16.msra.mxu0 %v2139
      %2165 = vmatprep.subr.bf16.mxu0 0
      %2166 = vmatpush1.bf16.msra.mxu0 %v2138
      %2167 = vmatprep.subr.bf16.mxu0 0
      %2168 = vmatpush1.bf16.msra.mxu0 %v2137
      %2169 = vmatprep.subr.bf16.mxu0 0
      %2170 = vmatpush2.bf16.msra.mxu0 0
      %2171 = vmatprep.subr.bf16.mxu0 0
      %2172 = vmatpush2.bf16.msra.mxu0 0
      %2173 = vmatprep.subr.bf16.mxu0 0
      %2174 = vmatpush2.bf16.msra.mxu0 0
      %2175 = vmatprep.subr.bf16.mxu0 0
      %2176 = vmatpush2.bf16.msra.mxu0 0
      %2177 = vmatprep.subr.bf16.mxu0 0
      %2178 = vmatpush2.bf16.msra.mxu0 0
      %2179 = vmatprep.subr.bf16.mxu0 0
      %2180 = vmatpush2.bf16.msra.mxu0 0
      %2181 = vmatprep.subr.bf16.mxu0 0
      %2182 = vmatpush2.bf16.msra.mxu0 0
      %2183 = vmatprep.subr.bf16.mxu0 0
      %2184 = vmatpush2.bf16.msra.mxu0 0
      %2185 = vmatprep.mubr.bf16.mxu0 0
      %2186 = vmatmul.mubr.bf16.gmra.mxu0 %v1943
      %v2187 = vpop.f32.mrf.mxu0
      %v2188 = vadd.f32 %v2075, %v2187
      %v2189 = vpop.f32.mrf.mxu0
      %v2190 = vpop.f32.mrf.mxu0
      %v2191 = vadd.f32 %v2078, %v2190
      %v2192 = vpop.f32.mrf.mxu0
      %2193 = vmatprep.mubr.bf16.mxu0 0
      %2194 = vmatmul.mubr.bf16.gmra.mxu0 %v1944
      %v2195 = vpop.f32.mrf.mxu0
      %v2196 = vadd.f32 %v2083, %v2195
      %v2197 = vpop.f32.mrf.mxu0
      %v2198 = vpop.f32.mrf.mxu0
      %v2199 = vadd.f32 %v2086, %v2198
      %v2200 = vpop.f32.mrf.mxu0
      %2201 = vmatprep.mubr.bf16.mxu0 0
      %2202 = vmatmul.mubr.bf16.gmra.mxu0 %v1945
      %v2203 = vpop.f32.mrf.mxu0
      %v2204 = vadd.f32 %v2091, %v2203
      %v2205 = vpop.f32.mrf.mxu0
      %v2206 = vpop.f32.mrf.mxu0
      %v2207 = vadd.f32 %v2094, %v2206
      %v2208 = vpop.f32.mrf.mxu0
      %2209 = vmatprep.mubr.bf16.mxu0 0
      %2210 = vmatmul.mubr.bf16.gmra.mxu0 %v1946
      %v2211 = vpop.f32.mrf.mxu0
      %v2212 = vadd.f32 %v2099, %v2211
      %v2213 = vpop.f32.mrf.mxu0
      %v2214 = vpop.f32.mrf.mxu0
      %v2215 = vadd.f32 %v2102, %v2214
      %v2216 = vpop.f32.mrf.mxu0
      %2217 = vdwg.mxu0
      %v2218 = vld [vmem:[#allocation2 + $0x2] sm:$0xff]
      %v2219 = vld [vmem:[#allocation2 + $0x12] sm:$0xff]
      %v2220 = vld [vmem:[#allocation2 + $0x22] sm:$0xff]
      %v2221 = vld [vmem:[#allocation2 + $0x32] sm:$0xff]
      %v2222 = vld [vmem:[#allocation2 + $0x42] sm:$0xff]
      %v2223 = vld [vmem:[#allocation2 + $0x52] sm:$0xff]
      %v2224 = vld [vmem:[#allocation2 + $0x62] sm:$0xff]
      %v2225 = vld [vmem:[#allocation2 + $0x72] sm:$0xff]
      %v2226 = vpack.c.bf16 %v2219, %v2218
      %v2227 = vpack.c.bf16 %v2221, %v2220
      %v2228 = vpack.c.bf16 %v2223, %v2222
      %v2229 = vpack.c.bf16 %v2225, %v2224
      %s2230 = scalar_lea.vmem %s4, 128
      %v2231 = vld [vmem:[%s2230] sm:$0xf]
      %v2232 = vld [vmem:[%s2230 + $0x4] sm:$0xf]
      %v2233 = vld [vmem:[%s2230 + $0x8] sm:$0xf]
      %v2234 = vld [vmem:[%s2230 + $0xc] sm:$0xf]
      %v2235 = vld [vmem:[%s2230 + $0x10] sm:$0xf]
      %v2236 = vld [vmem:[%s2230 + $0x14] sm:$0xf]
      %v2237 = vld [vmem:[%s2230 + $0x18] sm:$0xf]
      %v2238 = vld [vmem:[%s2230 + $0x1c] sm:$0xf]
      %v2239 = vld [vmem:[%s2230 + $0x20] sm:$0xf]
      %v2240 = vld [vmem:[%s2230 + $0x24] sm:$0xf]
      %v2241 = vld [vmem:[%s2230 + $0x28] sm:$0xf]
      %v2242 = vld [vmem:[%s2230 + $0x2c] sm:$0xf]
      %v2243 = vld [vmem:[%s2230 + $0x30] sm:$0xf]
      %v2244 = vld [vmem:[%s2230 + $0x34] sm:$0xf]
      %v2245 = vld [vmem:[%s2230 + $0x38] sm:$0xf]
      %v2246 = vld [vmem:[%s2230 + $0x3c] sm:$0xf]
      %v2263 = vunpack.c.l.b16 %v2231
      %v2264 = vunpack.c.l.b16 %v2232
      %v2265 = vunpack.c.l.b16 %v2233
      %v2266 = vunpack.c.l.b16 %v2234
      %v2267 = vunpack.c.l.b16 %v2235
      %v2268 = vunpack.c.l.b16 %v2236
      %v2269 = vunpack.c.l.b16 %v2237
      %v2270 = vunpack.c.l.b16 %v2238
      %v2271 = vunpack.c.l.b16 %v2239
      %v2272 = vunpack.c.l.b16 %v2240
      %v2273 = vunpack.c.l.b16 %v2241
      %v2274 = vunpack.c.l.b16 %v2242
      %v2275 = vunpack.c.l.b16 %v2243
      %v2276 = vunpack.c.l.b16 %v2244
      %v2277 = vunpack.c.l.b16 %v2245
      %v2278 = vunpack.c.l.b16 %v2246
      %v2279 = vpack.c.b16 %v2264, %v2263
      %v2280 = vpack.c.b16 %v2266, %v2265
      %v2281 = vpack.c.b16 %v2268, %v2267
      %v2282 = vpack.c.b16 %v2270, %v2269
      %v2283 = vpack.c.b16 %v2272, %v2271
      %v2284 = vpack.c.b16 %v2274, %v2273
      %v2285 = vpack.c.b16 %v2276, %v2275
      %v2286 = vpack.c.b16 %v2278, %v2277
      %2295 = vmatprep.subr.bf16.mxu0 0
      %2296 = vmatpush1.bf16.msra.mxu0 %v2286
      %2297 = vmatprep.subr.bf16.mxu0 0
      %2298 = vmatpush1.bf16.msra.mxu0 %v2285
      %2299 = vmatprep.subr.bf16.mxu0 0
      %2300 = vmatpush1.bf16.msra.mxu0 %v2284
      %2301 = vmatprep.subr.bf16.mxu0 0
      %2302 = vmatpush1.bf16.msra.mxu0 %v2283
      %2303 = vmatprep.subr.bf16.mxu0 0
      %2304 = vmatpush1.bf16.msra.mxu0 %v2282
      %2305 = vmatprep.subr.bf16.mxu0 0
      %2306 = vmatpush1.bf16.msra.mxu0 %v2281
      %2307 = vmatprep.subr.bf16.mxu0 0
      %2308 = vmatpush1.bf16.msra.mxu0 %v2280
      %2309 = vmatprep.subr.bf16.mxu0 0
      %2310 = vmatpush1.bf16.msra.mxu0 %v2279
      %2311 = vmatprep.subr.bf16.mxu0 0
      %2312 = vmatpush2.bf16.msra.mxu0 0
      %2313 = vmatprep.subr.bf16.mxu0 0
      %2314 = vmatpush2.bf16.msra.mxu0 0
      %2315 = vmatprep.subr.bf16.mxu0 0
      %2316 = vmatpush2.bf16.msra.mxu0 0
      %2317 = vmatprep.subr.bf16.mxu0 0
      %2318 = vmatpush2.bf16.msra.mxu0 0
      %2319 = vmatprep.subr.bf16.mxu0 0
      %2320 = vmatpush2.bf16.msra.mxu0 0
      %2321 = vmatprep.subr.bf16.mxu0 0
      %2322 = vmatpush2.bf16.msra.mxu0 0
      %2323 = vmatprep.subr.bf16.mxu0 0
      %2324 = vmatpush2.bf16.msra.mxu0 0
      %2325 = vmatprep.subr.bf16.mxu0 0
      %2326 = vmatpush2.bf16.msra.mxu0 0
      %2327 = vmatprep.mubr.bf16.mxu0 0
      %2328 = vmatmul.mubr.bf16.gmra.mxu0 %v2226
      %v2329 = vpop.f32.mrf.mxu0
      %v2330 = vadd.f32 0.0, %v2329
      %v2331 = vpop.f32.mrf.mxu0
      %v2332 = vpop.f32.mrf.mxu0
      %v2333 = vadd.f32 0.0, %v2332
      %v2334 = vpop.f32.mrf.mxu0
      %2335 = vmatprep.mubr.bf16.mxu0 0
      %2336 = vmatmul.mubr.bf16.gmra.mxu0 %v2227
      %v2337 = vpop.f32.mrf.mxu0
      %v2338 = vadd.f32 0.0, %v2337
      %v2339 = vpop.f32.mrf.mxu0
      %v2340 = vpop.f32.mrf.mxu0
      %v2341 = vadd.f32 0.0, %v2340
      %v2342 = vpop.f32.mrf.mxu0
      %2343 = vmatprep.mubr.bf16.mxu0 0
      %2344 = vmatmul.mubr.bf16.gmra.mxu0 %v2228
      %v2345 = vpop.f32.mrf.mxu0
      %v2346 = vadd.f32 0.0, %v2345
      %v2347 = vpop.f32.mrf.mxu0
      %v2348 = vpop.f32.mrf.mxu0
      %v2349 = vadd.f32 0.0, %v2348
      %v2350 = vpop.f32.mrf.mxu0
      %2351 = vmatprep.mubr.bf16.mxu0 0
      %2352 = vmatmul.mubr.bf16.gmra.mxu0 %v2229
      %v2353 = vpop.f32.mrf.mxu0
      %v2354 = vadd.f32 0.0, %v2353
      %v2355 = vpop.f32.mrf.mxu0
      %v2356 = vpop.f32.mrf.mxu0
      %v2357 = vadd.f32 0.0, %v2356
      %v2358 = vpop.f32.mrf.mxu0
      %2359 = vdwg.mxu0
      %v2360 = vadd.f32 %v2188, %v2330
      %v2361 = vadd.f32 %v2191, %v2333
      %v2362 = vadd.f32 %v2196, %v2338
      %v2363 = vadd.f32 %v2199, %v2341
      %v2364 = vadd.f32 %v2204, %v2346
      %v2365 = vadd.f32 %v2207, %v2349
      %v2366 = vadd.f32 %v2212, %v2354
      %v2367 = vadd.f32 %v2215, %v2357
      %v2368 = vld [vmem:[%s1926] sm:$0xff]
      %v2369 = vld [vmem:[%s1926 + $0x10] sm:$0xff]
      %v2370 = vld [vmem:[%s1926 + $0x20] sm:$0xff]
      %v2371 = vld [vmem:[%s1926 + $0x30] sm:$0xff]
      %v2372 = vld [vmem:[%s1926 + $0x40] sm:$0xff]
      %v2373 = vld [vmem:[%s1926 + $0x50] sm:$0xff]
      %v2374 = vld [vmem:[%s1926 + $0x60] sm:$0xff]
      %v2375 = vld [vmem:[%s1926 + $0x70] sm:$0xff]
      %v2376 = vpack.c.bf16 %v2369, %v2368
      %v2377 = vpack.c.bf16 %v2371, %v2370
      %v2378 = vpack.c.bf16 %v2373, %v2372
      %v2379 = vpack.c.bf16 %v2375, %v2374
      %s2380 = scalar_lea.vmem %s4, 192
      %v2381 = vld [vmem:[%s2380] sm:$0xf]
      %v2382 = vld [vmem:[%s2380 + $0x4] sm:$0xf]
      %v2383 = vld [vmem:[%s2380 + $0x8] sm:$0xf]
      %v2384 = vld [vmem:[%s2380 + $0xc] sm:$0xf]
      %v2385 = vld [vmem:[%s2380 + $0x10] sm:$0xf]
      %v2386 = vld [vmem:[%s2380 + $0x14] sm:$0xf]
      %v2387 = vld [vmem:[%s2380 + $0x18] sm:$0xf]
      %v2388 = vld [vmem:[%s2380 + $0x1c] sm:$0xf]
      %v2389 = vld [vmem:[%s2380 + $0x20] sm:$0xf]
      %v2390 = vld [vmem:[%s2380 + $0x24] sm:$0xf]
      %v2391 = vld [vmem:[%s2380 + $0x28] sm:$0xf]
      %v2392 = vld [vmem:[%s2380 + $0x2c] sm:$0xf]
      %v2393 = vld [vmem:[%s2380 + $0x30] sm:$0xf]
      %v2394 = vld [vmem:[%s2380 + $0x34] sm:$0xf]
      %v2395 = vld [vmem:[%s2380 + $0x38] sm:$0xf]
      %v2396 = vld [vmem:[%s2380 + $0x3c] sm:$0xf]
      %v2413 = vunpack.c.l.b16 %v2381
      %v2414 = vunpack.c.l.b16 %v2382
      %v2415 = vunpack.c.l.b16 %v2383
      %v2416 = vunpack.c.l.b16 %v2384
      %v2417 = vunpack.c.l.b16 %v2385
      %v2418 = vunpack.c.l.b16 %v2386
      %v2419 = vunpack.c.l.b16 %v2387
      %v2420 = vunpack.c.l.b16 %v2388
      %v2421 = vunpack.c.l.b16 %v2389
      %v2422 = vunpack.c.l.b16 %v2390
      %v2423 = vunpack.c.l.b16 %v2391
      %v2424 = vunpack.c.l.b16 %v2392
      %v2425 = vunpack.c.l.b16 %v2393
      %v2426 = vunpack.c.l.b16 %v2394
      %v2427 = vunpack.c.l.b16 %v2395
      %v2428 = vunpack.c.l.b16 %v2396
      %v2429 = vpack.c.b16 %v2414, %v2413
      %v2430 = vpack.c.b16 %v2416, %v2415
      %v2431 = vpack.c.b16 %v2418, %v2417
      %v2432 = vpack.c.b16 %v2420, %v2419
      %v2433 = vpack.c.b16 %v2422, %v2421
      %v2434 = vpack.c.b16 %v2424, %v2423
      %v2435 = vpack.c.b16 %v2426, %v2425
      %v2436 = vpack.c.b16 %v2428, %v2427
      %2445 = vmatprep.subr.bf16.mxu0 0
      %2446 = vmatpush1.bf16.msra.mxu0 %v2436
      %2447 = vmatprep.subr.bf16.mxu0 0
      %2448 = vmatpush1.bf16.msra.mxu0 %v2435
      %2449 = vmatprep.subr.bf16.mxu0 0
      %2450 = vmatpush1.bf16.msra.mxu0 %v2434
      %2451 = vmatprep.subr.bf16.mxu0 0
      %2452 = vmatpush1.bf16.msra.mxu0 %v2433
      %2453 = vmatprep.subr.bf16.mxu0 0
      %2454 = vmatpush1.bf16.msra.mxu0 %v2432
      %2455 = vmatprep.subr.bf16.mxu0 0
      %2456 = vmatpush1.bf16.msra.mxu0 %v2431
      %2457 = vmatprep.subr.bf16.mxu0 0
      %2458 = vmatpush1.bf16.msra.mxu0 %v2430
      %2459 = vmatprep.subr.bf16.mxu0 0
      %2460 = vmatpush1.bf16.msra.mxu0 %v2429
      %2461 = vmatprep.subr.bf16.mxu0 0
      %2462 = vmatpush2.bf16.msra.mxu0 0
      %2463 = vmatprep.subr.bf16.mxu0 0
      %2464 = vmatpush2.bf16.msra.mxu0 0
      %2465 = vmatprep.subr.bf16.mxu0 0
      %2466 = vmatpush2.bf16.msra.mxu0 0
      %2467 = vmatprep.subr.bf16.mxu0 0
      %2468 = vmatpush2.bf16.msra.mxu0 0
      %2469 = vmatprep.subr.bf16.mxu0 0
      %2470 = vmatpush2.bf16.msra.mxu0 0
      %2471 = vmatprep.subr.bf16.mxu0 0
      %2472 = vmatpush2.bf16.msra.mxu0 0
      %2473 = vmatprep.subr.bf16.mxu0 0
      %2474 = vmatpush2.bf16.msra.mxu0 0
      %2475 = vmatprep.subr.bf16.mxu0 0
      %2476 = vmatpush2.bf16.msra.mxu0 0
      %2477 = vmatprep.mubr.bf16.mxu0 0
      %2478 = vmatmul.mubr.bf16.gmra.mxu0 %v2376
      %v2479 = vpop.f32.mrf.mxu0
      %v2480 = vadd.f32 0.0, %v2479
      %v2481 = vpop.f32.mrf.mxu0
      %v2482 = vpop.f32.mrf.mxu0
      %v2483 = vadd.f32 0.0, %v2482
      %v2484 = vpop.f32.mrf.mxu0
      %2485 = vmatprep.mubr.bf16.mxu0 0
      %2486 = vmatmul.mubr.bf16.gmra.mxu0 %v2377
      %v2487 = vpop.f32.mrf.mxu0
      %v2488 = vadd.f32 0.0, %v2487
      %v2489 = vpop.f32.mrf.mxu0
      %v2490 = vpop.f32.mrf.mxu0
      %v2491 = vadd.f32 0.0, %v2490
      %v2492 = vpop.f32.mrf.mxu0
      %2493 = vmatprep.mubr.bf16.mxu0 0
      %2494 = vmatmul.mubr.bf16.gmra.mxu0 %v2378
      %v2495 = vpop.f32.mrf.mxu0
      %v2496 = vadd.f32 0.0, %v2495
      %v2497 = vpop.f32.mrf.mxu0
      %v2498 = vpop.f32.mrf.mxu0
      %v2499 = vadd.f32 0.0, %v2498
      %v2500 = vpop.f32.mrf.mxu0
      %2501 = vmatprep.mubr.bf16.mxu0 0
      %2502 = vmatmul.mubr.bf16.gmra.mxu0 %v2379
      %v2503 = vpop.f32.mrf.mxu0
      %v2504 = vadd.f32 0.0, %v2503
      %v2505 = vpop.f32.mrf.mxu0
      %v2506 = vpop.f32.mrf.mxu0
      %v2507 = vadd.f32 0.0, %v2506
      %v2508 = vpop.f32.mrf.mxu0
      %2509 = vdwg.mxu0
      %v2510 = vadd.f32 %v2360, %v2480
      %v2511 = vadd.f32 %v2361, %v2483
      %v2512 = vadd.f32 %v2362, %v2488
      %v2513 = vadd.f32 %v2363, %v2491
      %v2514 = vadd.f32 %v2364, %v2496
      %v2515 = vadd.f32 %v2365, %v2499
      %v2516 = vadd.f32 %v2366, %v2504
      %v2517 = vadd.f32 %v2367, %v2507
      %v2518 = vld [vmem:[%s1926 + $0x1] sm:$0xff]
      %v2519 = vld [vmem:[%s1926 + $0x11] sm:$0xff]
      %v2520 = vld [vmem:[%s1926 + $0x21] sm:$0xff]
      %v2521 = vld [vmem:[%s1926 + $0x31] sm:$0xff]
      %v2522 = vld [vmem:[%s1926 + $0x41] sm:$0xff]
      %v2523 = vld [vmem:[%s1926 + $0x51] sm:$0xff]
      %v2524 = vld [vmem:[%s1926 + $0x61] sm:$0xff]
      %v2525 = vld [vmem:[%s1926 + $0x71] sm:$0xff]
      %v2526 = vpack.c.bf16 %v2519, %v2518
      %v2527 = vpack.c.bf16 %v2521, %v2520
      %v2528 = vpack.c.bf16 %v2523, %v2522
      %v2529 = vpack.c.bf16 %v2525, %v2524
      %s2530 = scalar_lea.vmem %s4, 256
      %v2531 = vld [vmem:[%s2530] sm:$0xf]
      %v2532 = vld [vmem:[%s2530 + $0x4] sm:$0xf]
      %v2533 = vld [vmem:[%s2530 + $0x8] sm:$0xf]
      %v2534 = vld [vmem:[%s2530 + $0xc] sm:$0xf]
      %v2535 = vld [vmem:[%s2530 + $0x10] sm:$0xf]
      %v2536 = vld [vmem:[%s2530 + $0x14] sm:$0xf]
      %v2537 = vld [vmem:[%s2530 + $0x18] sm:$0xf]
      %v2538 = vld [vmem:[%s2530 + $0x1c] sm:$0xf]
      %v2539 = vld [vmem:[%s2530 + $0x20] sm:$0xf]
      %v2540 = vld [vmem:[%s2530 + $0x24] sm:$0xf]
      %v2541 = vld [vmem:[%s2530 + $0x28] sm:$0xf]
      %v2542 = vld [vmem:[%s2530 + $0x2c] sm:$0xf]
      %v2543 = vld [vmem:[%s2530 + $0x30] sm:$0xf]
      %v2544 = vld [vmem:[%s2530 + $0x34] sm:$0xf]
      %v2545 = vld [vmem:[%s2530 + $0x38] sm:$0xf]
      %v2546 = vld [vmem:[%s2530 + $0x3c] sm:$0xf]
      %v2563 = vunpack.c.l.b16 %v2531
      %v2564 = vunpack.c.l.b16 %v2532
      %v2565 = vunpack.c.l.b16 %v2533
      %v2566 = vunpack.c.l.b16 %v2534
      %v2567 = vunpack.c.l.b16 %v2535
      %v2568 = vunpack.c.l.b16 %v2536
      %v2569 = vunpack.c.l.b16 %v2537
      %v2570 = vunpack.c.l.b16 %v2538
      %v2571 = vunpack.c.l.b16 %v2539
      %v2572 = vunpack.c.l.b16 %v2540
      %v2573 = vunpack.c.l.b16 %v2541
      %v2574 = vunpack.c.l.b16 %v2542
      %v2575 = vunpack.c.l.b16 %v2543
      %v2576 = vunpack.c.l.b16 %v2544
      %v2577 = vunpack.c.l.b16 %v2545
      %v2578 = vunpack.c.l.b16 %v2546
      %v2579 = vpack.c.b16 %v2564, %v2563
      %v2580 = vpack.c.b16 %v2566, %v2565
      %v2581 = vpack.c.b16 %v2568, %v2567
      %v2582 = vpack.c.b16 %v2570, %v2569
      %v2583 = vpack.c.b16 %v2572, %v2571
      %v2584 = vpack.c.b16 %v2574, %v2573
      %v2585 = vpack.c.b16 %v2576, %v2575
      %v2586 = vpack.c.b16 %v2578, %v2577
      %2595 = vmatprep.subr.bf16.mxu0 0
      %2596 = vmatpush1.bf16.msra.mxu0 %v2586
      %2597 = vmatprep.subr.bf16.mxu0 0
      %2598 = vmatpush1.bf16.msra.mxu0 %v2585
      %2599 = vmatprep.subr.bf16.mxu0 0
      %2600 = vmatpush1.bf16.msra.mxu0 %v2584
      %2601 = vmatprep.subr.bf16.mxu0 0
      %2602 = vmatpush1.bf16.msra.mxu0 %v2583
      %2603 = vmatprep.subr.bf16.mxu0 0
      %2604 = vmatpush1.bf16.msra.mxu0 %v2582
      %2605 = vmatprep.subr.bf16.mxu0 0
      %2606 = vmatpush1.bf16.msra.mxu0 %v2581
      %2607 = vmatprep.subr.bf16.mxu0 0
      %2608 = vmatpush1.bf16.msra.mxu0 %v2580
      %2609 = vmatprep.subr.bf16.mxu0 0
      %2610 = vmatpush1.bf16.msra.mxu0 %v2579
      %2611 = vmatprep.subr.bf16.mxu0 0
      %2612 = vmatpush2.bf16.msra.mxu0 0
      %2613 = vmatprep.subr.bf16.mxu0 0
      %2614 = vmatpush2.bf16.msra.mxu0 0
      %2615 = vmatprep.subr.bf16.mxu0 0
      %2616 = vmatpush2.bf16.msra.mxu0 0
      %2617 = vmatprep.subr.bf16.mxu0 0
      %2618 = vmatpush2.bf16.msra.mxu0 0
      %2619 = vmatprep.subr.bf16.mxu0 0
      %2620 = vmatpush2.bf16.msra.mxu0 0
      %2621 = vmatprep.subr.bf16.mxu0 0
      %2622 = vmatpush2.bf16.msra.mxu0 0
      %2623 = vmatprep.subr.bf16.mxu0 0
      %2624 = vmatpush2.bf16.msra.mxu0 0
      %2625 = vmatprep.subr.bf16.mxu0 0
      %2626 = vmatpush2.bf16.msra.mxu0 0
      %2627 = vmatprep.mubr.bf16.mxu0 0
      %2628 = vmatmul.mubr.bf16.gmra.mxu0 %v2526
      %v2629 = vpop.f32.mrf.mxu0
      %v2630 = vadd.f32 0.0, %v2629
      %v2631 = vpop.f32.mrf.mxu0
      %v2632 = vpop.f32.mrf.mxu0
      %v2633 = vadd.f32 0.0, %v2632
      %v2634 = vpop.f32.mrf.mxu0
      %2635 = vmatprep.mubr.bf16.mxu0 0
      %2636 = vmatmul.mubr.bf16.gmra.mxu0 %v2527
      %v2637 = vpop.f32.mrf.mxu0
      %v2638 = vadd.f32 0.0, %v2637
      %v2639 = vpop.f32.mrf.mxu0
      %v2640 = vpop.f32.mrf.mxu0
      %v2641 = vadd.f32 0.0, %v2640
      %v2642 = vpop.f32.mrf.mxu0
      %2643 = vmatprep.mubr.bf16.mxu0 0
      %2644 = vmatmul.mubr.bf16.gmra.mxu0 %v2528
      %v2645 = vpop.f32.mrf.mxu0
      %v2646 = vadd.f32 0.0, %v2645
      %v2647 = vpop.f32.mrf.mxu0
      %v2648 = vpop.f32.mrf.mxu0
      %v2649 = vadd.f32 0.0, %v2648
      %v2650 = vpop.f32.mrf.mxu0
      %2651 = vmatprep.mubr.bf16.mxu0 0
      %2652 = vmatmul.mubr.bf16.gmra.mxu0 %v2529
      %v2653 = vpop.f32.mrf.mxu0
      %v2654 = vadd.f32 0.0, %v2653
      %v2655 = vpop.f32.mrf.mxu0
      %v2656 = vpop.f32.mrf.mxu0
      %v2657 = vadd.f32 0.0, %v2656
      %v2658 = vpop.f32.mrf.mxu0
      %2659 = vdwg.mxu0
      %v2660 = vadd.f32 %v2510, %v2630
      %v2661 = vadd.f32 %v2511, %v2633
      %v2662 = vadd.f32 %v2512, %v2638
      %v2663 = vadd.f32 %v2513, %v2641
      %v2664 = vadd.f32 %v2514, %v2646
      %v2665 = vadd.f32 %v2515, %v2649
      %v2666 = vadd.f32 %v2516, %v2654
      %v2667 = vadd.f32 %v2517, %v2657
      %v2668 = vld [vmem:[%s1926 + $0x2] sm:$0xff]
      %v2669 = vld [vmem:[%s1926 + $0x12] sm:$0xff]
      %v2670 = vld [vmem:[%s1926 + $0x22] sm:$0xff]
      %v2671 = vld [vmem:[%s1926 + $0x32] sm:$0xff]
      %v2672 = vld [vmem:[%s1926 + $0x42] sm:$0xff]
      %v2673 = vld [vmem:[%s1926 + $0x52] sm:$0xff]
      %v2674 = vld [vmem:[%s1926 + $0x62] sm:$0xff]
      %v2675 = vld [vmem:[%s1926 + $0x72] sm:$0xff]
      %v2676 = vpack.c.bf16 %v2669, %v2668
      %v2677 = vpack.c.bf16 %v2671, %v2670
      %v2678 = vpack.c.bf16 %v2673, %v2672
      %v2679 = vpack.c.bf16 %v2675, %v2674
      %s2680 = scalar_lea.vmem %s4, 320
      %v2681 = vld [vmem:[%s2680] sm:$0xf]
      %v2682 = vld [vmem:[%s2680 + $0x4] sm:$0xf]
      %v2683 = vld [vmem:[%s2680 + $0x8] sm:$0xf]
      %v2684 = vld [vmem:[%s2680 + $0xc] sm:$0xf]
      %v2685 = vld [vmem:[%s2680 + $0x10] sm:$0xf]
      %v2686 = vld [vmem:[%s2680 + $0x14] sm:$0xf]
      %v2687 = vld [vmem:[%s2680 + $0x18] sm:$0xf]
      %v2688 = vld [vmem:[%s2680 + $0x1c] sm:$0xf]
      %v2689 = vld [vmem:[%s2680 + $0x20] sm:$0xf]
      %v2690 = vld [vmem:[%s2680 + $0x24] sm:$0xf]
      %v2691 = vld [vmem:[%s2680 + $0x28] sm:$0xf]
      %v2692 = vld [vmem:[%s2680 + $0x2c] sm:$0xf]
      %v2693 = vld [vmem:[%s2680 + $0x30] sm:$0xf]
      %v2694 = vld [vmem:[%s2680 + $0x34] sm:$0xf]
      %v2695 = vld [vmem:[%s2680 + $0x38] sm:$0xf]
      %v2696 = vld [vmem:[%s2680 + $0x3c] sm:$0xf]
      %v2713 = vunpack.c.l.b16 %v2681
      %v2714 = vunpack.c.l.b16 %v2682
      %v2715 = vunpack.c.l.b16 %v2683
      %v2716 = vunpack.c.l.b16 %v2684
      %v2717 = vunpack.c.l.b16 %v2685
      %v2718 = vunpack.c.l.b16 %v2686
      %v2719 = vunpack.c.l.b16 %v2687
      %v2720 = vunpack.c.l.b16 %v2688
      %v2721 = vunpack.c.l.b16 %v2689
      %v2722 = vunpack.c.l.b16 %v2690
      %v2723 = vunpack.c.l.b16 %v2691
      %v2724 = vunpack.c.l.b16 %v2692
      %v2725 = vunpack.c.l.b16 %v2693
      %v2726 = vunpack.c.l.b16 %v2694
      %v2727 = vunpack.c.l.b16 %v2695
      %v2728 = vunpack.c.l.b16 %v2696
      %v2729 = vpack.c.b16 %v2714, %v2713
      %v2730 = vpack.c.b16 %v2716, %v2715
      %v2731 = vpack.c.b16 %v2718, %v2717
      %v2732 = vpack.c.b16 %v2720, %v2719
      %v2733 = vpack.c.b16 %v2722, %v2721
      %v2734 = vpack.c.b16 %v2724, %v2723
      %v2735 = vpack.c.b16 %v2726, %v2725
      %v2736 = vpack.c.b16 %v2728, %v2727
      %2745 = vmatprep.subr.bf16.mxu0 0
      %2746 = vmatpush1.bf16.msra.mxu0 %v2736
      %2747 = vmatprep.subr.bf16.mxu0 0
      %2748 = vmatpush1.bf16.msra.mxu0 %v2735
      %2749 = vmatprep.subr.bf16.mxu0 0
      %2750 = vmatpush1.bf16.msra.mxu0 %v2734
      %2751 = vmatprep.subr.bf16.mxu0 0
      %2752 = vmatpush1.bf16.msra.mxu0 %v2733
      %2753 = vmatprep.subr.bf16.mxu0 0
      %2754 = vmatpush1.bf16.msra.mxu0 %v2732
      %2755 = vmatprep.subr.bf16.mxu0 0
      %2756 = vmatpush1.bf16.msra.mxu0 %v2731
      %2757 = vmatprep.subr.bf16.mxu0 0
      %2758 = vmatpush1.bf16.msra.mxu0 %v2730
      %2759 = vmatprep.subr.bf16.mxu0 0
      %2760 = vmatpush1.bf16.msra.mxu0 %v2729
      %2761 = vmatprep.subr.bf16.mxu0 0
      %2762 = vmatpush2.bf16.msra.mxu0 0
      %2763 = vmatprep.subr.bf16.mxu0 0
      %2764 = vmatpush2.bf16.msra.mxu0 0
      %2765 = vmatprep.subr.bf16.mxu0 0
      %2766 = vmatpush2.bf16.msra.mxu0 0
      %2767 = vmatprep.subr.bf16.mxu0 0
      %2768 = vmatpush2.bf16.msra.mxu0 0
      %2769 = vmatprep.subr.bf16.mxu0 0
      %2770 = vmatpush2.bf16.msra.mxu0 0
      %2771 = vmatprep.subr.bf16.mxu0 0
      %2772 = vmatpush2.bf16.msra.mxu0 0
      %2773 = vmatprep.subr.bf16.mxu0 0
      %2774 = vmatpush2.bf16.msra.mxu0 0
      %2775 = vmatprep.subr.bf16.mxu0 0
      %2776 = vmatpush2.bf16.msra.mxu0 0
      %2777 = vmatprep.mubr.bf16.mxu0 0
      %2778 = vmatmul.mubr.bf16.gmra.mxu0 %v2676
      %v2779 = vpop.f32.mrf.mxu0
      %v2780 = vadd.f32 0.0, %v2779
      %v2781 = vpop.f32.mrf.mxu0
      %v2782 = vpop.f32.mrf.mxu0
      %v2783 = vadd.f32 0.0, %v2782
      %v2784 = vpop.f32.mrf.mxu0
      %2785 = vmatprep.mubr.bf16.mxu0 0
      %2786 = vmatmul.mubr.bf16.gmra.mxu0 %v2677
      %v2787 = vpop.f32.mrf.mxu0
      %v2788 = vadd.f32 0.0, %v2787
      %v2789 = vpop.f32.mrf.mxu0
      %v2790 = vpop.f32.mrf.mxu0
      %v2791 = vadd.f32 0.0, %v2790
      %v2792 = vpop.f32.mrf.mxu0
      %2793 = vmatprep.mubr.bf16.mxu0 0
      %2794 = vmatmul.mubr.bf16.gmra.mxu0 %v2678
      %v2795 = vpop.f32.mrf.mxu0
      %v2796 = vadd.f32 0.0, %v2795
      %v2797 = vpop.f32.mrf.mxu0
      %v2798 = vpop.f32.mrf.mxu0
      %v2799 = vadd.f32 0.0, %v2798
      %v2800 = vpop.f32.mrf.mxu0
      %2801 = vmatprep.mubr.bf16.mxu0 0
      %2802 = vmatmul.mubr.bf16.gmra.mxu0 %v2679
      %v2803 = vpop.f32.mrf.mxu0
      %v2804 = vadd.f32 0.0, %v2803
      %v2805 = vpop.f32.mrf.mxu0
      %v2806 = vpop.f32.mrf.mxu0
      %v2807 = vadd.f32 0.0, %v2806
      %v2808 = vpop.f32.mrf.mxu0
      %2809 = vdwg.mxu0
      %v2810 = vadd.f32 %v2660, %v2780
      %v2811 = vadd.f32 %v2661, %v2783
      %v2812 = vadd.f32 %v2662, %v2788
      %v2813 = vadd.f32 %v2663, %v2791
      %v2814 = vadd.f32 %v2664, %v2796
      %v2815 = vadd.f32 %v2665, %v2799
      %v2816 = vadd.f32 %v2666, %v2804
      %v2817 = vadd.f32 %v2667, %v2807
      %s2818 = scalar_lea.vmem [#allocation2], 32
      %v2819 = vld [vmem:[%s2818] sm:$0xff]
      %v2820 = vld [vmem:[%s2818 + $0x10] sm:$0xff]
      %v2821 = vld [vmem:[%s2818 + $0x20] sm:$0xff]
      %v2822 = vld [vmem:[%s2818 + $0x30] sm:$0xff]
      %v2823 = vld [vmem:[%s2818 + $0x40] sm:$0xff]
      %v2824 = vld [vmem:[%s2818 + $0x50] sm:$0xff]
      %v2825 = vld [vmem:[%s2818 + $0x60] sm:$0xff]
      %v2826 = vld [vmem:[%s2818 + $0x70] sm:$0xff]
      %v2827 = vpack.c.bf16 %v2820, %v2819
      %v2828 = vpack.c.bf16 %v2822, %v2821
      %v2829 = vpack.c.bf16 %v2824, %v2823
      %v2830 = vpack.c.bf16 %v2826, %v2825
      %s2831 = scalar_lea.vmem %s4, 384
      %v2832 = vld [vmem:[%s2831] sm:$0xf]
      %v2833 = vld [vmem:[%s2831 + $0x4] sm:$0xf]
      %v2834 = vld [vmem:[%s2831 + $0x8] sm:$0xf]
      %v2835 = vld [vmem:[%s2831 + $0xc] sm:$0xf]
      %v2836 = vld [vmem:[%s2831 + $0x10] sm:$0xf]
      %v2837 = vld [vmem:[%s2831 + $0x14] sm:$0xf]
      %v2838 = vld [vmem:[%s2831 + $0x18] sm:$0xf]
      %v2839 = vld [vmem:[%s2831 + $0x1c] sm:$0xf]
      %v2840 = vld [vmem:[%s2831 + $0x20] sm:$0xf]
      %v2841 = vld [vmem:[%s2831 + $0x24] sm:$0xf]
      %v2842 = vld [vmem:[%s2831 + $0x28] sm:$0xf]
      %v2843 = vld [vmem:[%s2831 + $0x2c] sm:$0xf]
      %v2844 = vld [vmem:[%s2831 + $0x30] sm:$0xf]
      %v2845 = vld [vmem:[%s2831 + $0x34] sm:$0xf]
      %v2846 = vld [vmem:[%s2831 + $0x38] sm:$0xf]
      %v2847 = vld [vmem:[%s2831 + $0x3c] sm:$0xf]
      %v2864 = vunpack.c.l.b16 %v2832
      %v2865 = vunpack.c.l.b16 %v2833
      %v2866 = vunpack.c.l.b16 %v2834
      %v2867 = vunpack.c.l.b16 %v2835
      %v2868 = vunpack.c.l.b16 %v2836
      %v2869 = vunpack.c.l.b16 %v2837
      %v2870 = vunpack.c.l.b16 %v2838
      %v2871 = vunpack.c.l.b16 %v2839
      %v2872 = vunpack.c.l.b16 %v2840
      %v2873 = vunpack.c.l.b16 %v2841
      %v2874 = vunpack.c.l.b16 %v2842
      %v2875 = vunpack.c.l.b16 %v2843
      %v2876 = vunpack.c.l.b16 %v2844
      %v2877 = vunpack.c.l.b16 %v2845
      %v2878 = vunpack.c.l.b16 %v2846
      %v2879 = vunpack.c.l.b16 %v2847
      %v2880 = vpack.c.b16 %v2865, %v2864
      %v2881 = vpack.c.b16 %v2867, %v2866
      %v2882 = vpack.c.b16 %v2869, %v2868
      %v2883 = vpack.c.b16 %v2871, %v2870
      %v2884 = vpack.c.b16 %v2873, %v2872
      %v2885 = vpack.c.b16 %v2875, %v2874
      %v2886 = vpack.c.b16 %v2877, %v2876
      %v2887 = vpack.c.b16 %v2879, %v2878
      %2896 = vmatprep.subr.bf16.mxu0 0
      %2897 = vmatpush1.bf16.msra.mxu0 %v2887
      %2898 = vmatprep.subr.bf16.mxu0 0
      %2899 = vmatpush1.bf16.msra.mxu0 %v2886
      %2900 = vmatprep.subr.bf16.mxu0 0
      %2901 = vmatpush1.bf16.msra.mxu0 %v2885
      %2902 = vmatprep.subr.bf16.mxu0 0
      %2903 = vmatpush1.bf16.msra.mxu0 %v2884
      %2904 = vmatprep.subr.bf16.mxu0 0
      %2905 = vmatpush1.bf16.msra.mxu0 %v2883
      %2906 = vmatprep.subr.bf16.mxu0 0
      %2907 = vmatpush1.bf16.msra.mxu0 %v2882
      %2908 = vmatprep.subr.bf16.mxu0 0
      %2909 = vmatpush1.bf16.msra.mxu0 %v2881
      %2910 = vmatprep.subr.bf16.mxu0 0
      %2911 = vmatpush1.bf16.msra.mxu0 %v2880
      %2912 = vmatprep.subr.bf16.mxu0 0
      %2913 = vmatpush2.bf16.msra.mxu0 0
      %2914 = vmatprep.subr.bf16.mxu0 0
      %2915 = vmatpush2.bf16.msra.mxu0 0
      %2916 = vmatprep.subr.bf16.mxu0 0
      %2917 = vmatpush2.bf16.msra.mxu0 0
      %2918 = vmatprep.subr.bf16.mxu0 0
      %2919 = vmatpush2.bf16.msra.mxu0 0
      %2920 = vmatprep.subr.bf16.mxu0 0
      %2921 = vmatpush2.bf16.msra.mxu0 0
      %2922 = vmatprep.subr.bf16.mxu0 0
      %2923 = vmatpush2.bf16.msra.mxu0 0
      %2924 = vmatprep.subr.bf16.mxu0 0
      %2925 = vmatpush2.bf16.msra.mxu0 0
      %2926 = vmatprep.subr.bf16.mxu0 0
      %2927 = vmatpush2.bf16.msra.mxu0 0
      %2928 = vmatprep.mubr.bf16.mxu0 0
      %2929 = vmatmul.mubr.bf16.gmra.mxu0 %v2827
      %v2930 = vpop.f32.mrf.mxu0
      %v2931 = vadd.f32 0.0, %v2930
      %v2932 = vpop.f32.mrf.mxu0
      %v2933 = vpop.f32.mrf.mxu0
      %v2934 = vadd.f32 0.0, %v2933
      %v2935 = vpop.f32.mrf.mxu0
      %2936 = vmatprep.mubr.bf16.mxu0 0
      %2937 = vmatmul.mubr.bf16.gmra.mxu0 %v2828
      %v2938 = vpop.f32.mrf.mxu0
      %v2939 = vadd.f32 0.0, %v2938
      %v2940 = vpop.f32.mrf.mxu0
      %v2941 = vpop.f32.mrf.mxu0
      %v2942 = vadd.f32 0.0, %v2941
      %v2943 = vpop.f32.mrf.mxu0
      %2944 = vmatprep.mubr.bf16.mxu0 0
      %2945 = vmatmul.mubr.bf16.gmra.mxu0 %v2829
      %v2946 = vpop.f32.mrf.mxu0
      %v2947 = vadd.f32 0.0, %v2946
      %v2948 = vpop.f32.mrf.mxu0
      %v2949 = vpop.f32.mrf.mxu0
      %v2950 = vadd.f32 0.0, %v2949
      %v2951 = vpop.f32.mrf.mxu0
      %2952 = vmatprep.mubr.bf16.mxu0 0
      %2953 = vmatmul.mubr.bf16.gmra.mxu0 %v2830
      %v2954 = vpop.f32.mrf.mxu0
      %v2955 = vadd.f32 0.0, %v2954
      %v2956 = vpop.f32.mrf.mxu0
      %v2957 = vpop.f32.mrf.mxu0
      %v2958 = vadd.f32 0.0, %v2957
      %v2959 = vpop.f32.mrf.mxu0
      %2960 = vdwg.mxu0
      %v2961 = vadd.f32 %v2810, %v2931
      %v2962 = vadd.f32 %v2811, %v2934
      %v2963 = vadd.f32 %v2812, %v2939
      %v2964 = vadd.f32 %v2813, %v2942
      %v2965 = vadd.f32 %v2814, %v2947
      %v2966 = vadd.f32 %v2815, %v2950
      %v2967 = vadd.f32 %v2816, %v2955
      %v2968 = vadd.f32 %v2817, %v2958
      %v2969 = vld [vmem:[%s2818 + $0x1] sm:$0xff]
      %v2970 = vld [vmem:[%s2818 + $0x11] sm:$0xff]
      %v2971 = vld [vmem:[%s2818 + $0x21] sm:$0xff]
      %v2972 = vld [vmem:[%s2818 + $0x31] sm:$0xff]
      %v2973 = vld [vmem:[%s2818 + $0x41] sm:$0xff]
      %v2974 = vld [vmem:[%s2818 + $0x51] sm:$0xff]
      %v2975 = vld [vmem:[%s2818 + $0x61] sm:$0xff]
      %v2976 = vld [vmem:[%s2818 + $0x71] sm:$0xff]
      %v2977 = vpack.c.bf16 %v2970, %v2969
      %v2978 = vpack.c.bf16 %v2972, %v2971
      %v2979 = vpack.c.bf16 %v2974, %v2973
      %v2980 = vpack.c.bf16 %v2976, %v2975
      %s2981 = scalar_lea.vmem %s4, 448
      %v2982 = vld [vmem:[%s2981] sm:$0xf]
      %v2983 = vld [vmem:[%s2981 + $0x4] sm:$0xf]
      %v2984 = vld [vmem:[%s2981 + $0x8] sm:$0xf]
      %v2985 = vld [vmem:[%s2981 + $0xc] sm:$0xf]
      %v2986 = vld [vmem:[%s2981 + $0x10] sm:$0xf]
      %v2987 = vld [vmem:[%s2981 + $0x14] sm:$0xf]
      %v2988 = vld [vmem:[%s2981 + $0x18] sm:$0xf]
      %v2989 = vld [vmem:[%s2981 + $0x1c] sm:$0xf]
      %v2990 = vld [vmem:[%s2981 + $0x20] sm:$0xf]
      %v2991 = vld [vmem:[%s2981 + $0x24] sm:$0xf]
      %v2992 = vld [vmem:[%s2981 + $0x28] sm:$0xf]
      %v2993 = vld [vmem:[%s2981 + $0x2c] sm:$0xf]
      %v2994 = vld [vmem:[%s2981 + $0x30] sm:$0xf]
      %v2995 = vld [vmem:[%s2981 + $0x34] sm:$0xf]
      %v2996 = vld [vmem:[%s2981 + $0x38] sm:$0xf]
      %v2997 = vld [vmem:[%s2981 + $0x3c] sm:$0xf]
      %v3014 = vunpack.c.l.b16 %v2982
      %v3015 = vunpack.c.l.b16 %v2983
      %v3016 = vunpack.c.l.b16 %v2984
      %v3017 = vunpack.c.l.b16 %v2985
      %v3018 = vunpack.c.l.b16 %v2986
      %v3019 = vunpack.c.l.b16 %v2987
      %v3020 = vunpack.c.l.b16 %v2988
      %v3021 = vunpack.c.l.b16 %v2989
      %v3022 = vunpack.c.l.b16 %v2990
      %v3023 = vunpack.c.l.b16 %v2991
      %v3024 = vunpack.c.l.b16 %v2992
      %v3025 = vunpack.c.l.b16 %v2993
      %v3026 = vunpack.c.l.b16 %v2994
      %v3027 = vunpack.c.l.b16 %v2995
      %v3028 = vunpack.c.l.b16 %v2996
      %v3029 = vunpack.c.l.b16 %v2997
      %v3030 = vpack.c.b16 %v3015, %v3014
      %v3031 = vpack.c.b16 %v3017, %v3016
      %v3032 = vpack.c.b16 %v3019, %v3018
      %v3033 = vpack.c.b16 %v3021, %v3020
      %v3034 = vpack.c.b16 %v3023, %v3022
      %v3035 = vpack.c.b16 %v3025, %v3024
      %v3036 = vpack.c.b16 %v3027, %v3026
      %v3037 = vpack.c.b16 %v3029, %v3028
      %3046 = vmatprep.subr.bf16.mxu0 0
      %3047 = vmatpush1.bf16.msra.mxu0 %v3037
      %3048 = vmatprep.subr.bf16.mxu0 0
      %3049 = vmatpush1.bf16.msra.mxu0 %v3036
      %3050 = vmatprep.subr.bf16.mxu0 0
      %3051 = vmatpush1.bf16.msra.mxu0 %v3035
      %3052 = vmatprep.subr.bf16.mxu0 0
      %3053 = vmatpush1.bf16.msra.mxu0 %v3034
      %3054 = vmatprep.subr.bf16.mxu0 0
      %3055 = vmatpush1.bf16.msra.mxu0 %v3033
      %3056 = vmatprep.subr.bf16.mxu0 0
      %3057 = vmatpush1.bf16.msra.mxu0 %v3032
      %3058 = vmatprep.subr.bf16.mxu0 0
      %3059 = vmatpush1.bf16.msra.mxu0 %v3031
      %3060 = vmatprep.subr.bf16.mxu0 0
      %3061 = vmatpush1.bf16.msra.mxu0 %v3030
      %3062 = vmatprep.subr.bf16.mxu0 0
      %3063 = vmatpush2.bf16.msra.mxu0 0
      %3064 = vmatprep.subr.bf16.mxu0 0
      %3065 = vmatpush2.bf16.msra.mxu0 0
      %3066 = vmatprep.subr.bf16.mxu0 0
      %3067 = vmatpush2.bf16.msra.mxu0 0
      %3068 = vmatprep.subr.bf16.mxu0 0
      %3069 = vmatpush2.bf16.msra.mxu0 0
      %3070 = vmatprep.subr.bf16.mxu0 0
      %3071 = vmatpush2.bf16.msra.mxu0 0
      %3072 = vmatprep.subr.bf16.mxu0 0
      %3073 = vmatpush2.bf16.msra.mxu0 0
      %3074 = vmatprep.subr.bf16.mxu0 0
      %3075 = vmatpush2.bf16.msra.mxu0 0
      %3076 = vmatprep.subr.bf16.mxu0 0
      %3077 = vmatpush2.bf16.msra.mxu0 0
      %3078 = vmatprep.mubr.bf16.mxu0 0
      %3079 = vmatmul.mubr.bf16.gmra.mxu0 %v2977
      %v3080 = vpop.f32.mrf.mxu0
      %v3081 = vadd.f32 0.0, %v3080
      %v3082 = vpop.f32.mrf.mxu0
      %v3083 = vpop.f32.mrf.mxu0
      %v3084 = vadd.f32 0.0, %v3083
      %v3085 = vpop.f32.mrf.mxu0
      %3086 = vmatprep.mubr.bf16.mxu0 0
      %3087 = vmatmul.mubr.bf16.gmra.mxu0 %v2978
      %v3088 = vpop.f32.mrf.mxu0
      %v3089 = vadd.f32 0.0, %v3088
      %v3090 = vpop.f32.mrf.mxu0
      %v3091 = vpop.f32.mrf.mxu0
      %v3092 = vadd.f32 0.0, %v3091
      %v3093 = vpop.f32.mrf.mxu0
      %3094 = vmatprep.mubr.bf16.mxu0 0
      %3095 = vmatmul.mubr.bf16.gmra.mxu0 %v2979
      %v3096 = vpop.f32.mrf.mxu0
      %v3097 = vadd.f32 0.0, %v3096
      %v3098 = vpop.f32.mrf.mxu0
      %v3099 = vpop.f32.mrf.mxu0
      %v3100 = vadd.f32 0.0, %v3099
      %v3101 = vpop.f32.mrf.mxu0
      %3102 = vmatprep.mubr.bf16.mxu0 0
      %3103 = vmatmul.mubr.bf16.gmra.mxu0 %v2980
      %v3104 = vpop.f32.mrf.mxu0
      %v3105 = vadd.f32 0.0, %v3104
      %v3106 = vpop.f32.mrf.mxu0
      %v3107 = vpop.f32.mrf.mxu0
      %v3108 = vadd.f32 0.0, %v3107
      %v3109 = vpop.f32.mrf.mxu0
      %3110 = vdwg.mxu0
      %v3111 = vadd.f32 %v2961, %v3081
      %v3112 = vadd.f32 %v2962, %v3084
      %v3113 = vadd.f32 %v2963, %v3089
      %v3114 = vadd.f32 %v2964, %v3092
      %v3115 = vadd.f32 %v2965, %v3097
      %v3116 = vadd.f32 %v2966, %v3100
      %v3117 = vadd.f32 %v2967, %v3105
      %v3118 = vadd.f32 %v2968, %v3108
      %v3119 = vld [vmem:[%s2818 + $0x2] sm:$0xff]
      %v3120 = vld [vmem:[%s2818 + $0x12] sm:$0xff]
      %v3121 = vld [vmem:[%s2818 + $0x22] sm:$0xff]
      %v3122 = vld [vmem:[%s2818 + $0x32] sm:$0xff]
      %v3123 = vld [vmem:[%s2818 + $0x42] sm:$0xff]
      %v3124 = vld [vmem:[%s2818 + $0x52] sm:$0xff]
      %v3125 = vld [vmem:[%s2818 + $0x62] sm:$0xff]
      %v3126 = vld [vmem:[%s2818 + $0x72] sm:$0xff]
      %v3127 = vpack.c.bf16 %v3120, %v3119
      %v3128 = vpack.c.bf16 %v3122, %v3121
      %v3129 = vpack.c.bf16 %v3124, %v3123
      %v3130 = vpack.c.bf16 %v3126, %v3125
      %s3131 = scalar_lea.vmem %s4, 512
      %v3132 = vld [vmem:[%s3131] sm:$0xf]
      %v3133 = vld [vmem:[%s3131 + $0x4] sm:$0xf]
      %v3134 = vld [vmem:[%s3131 + $0x8] sm:$0xf]
      %v3135 = vld [vmem:[%s3131 + $0xc] sm:$0xf]
      %v3136 = vld [vmem:[%s3131 + $0x10] sm:$0xf]
      %v3137 = vld [vmem:[%s3131 + $0x14] sm:$0xf]
      %v3138 = vld [vmem:[%s3131 + $0x18] sm:$0xf]
      %v3139 = vld [vmem:[%s3131 + $0x1c] sm:$0xf]
      %v3140 = vld [vmem:[%s3131 + $0x20] sm:$0xf]
      %v3141 = vld [vmem:[%s3131 + $0x24] sm:$0xf]
      %v3142 = vld [vmem:[%s3131 + $0x28] sm:$0xf]
      %v3143 = vld [vmem:[%s3131 + $0x2c] sm:$0xf]
      %v3144 = vld [vmem:[%s3131 + $0x30] sm:$0xf]
      %v3145 = vld [vmem:[%s3131 + $0x34] sm:$0xf]
      %v3146 = vld [vmem:[%s3131 + $0x38] sm:$0xf]
      %v3147 = vld [vmem:[%s3131 + $0x3c] sm:$0xf]
      %v3164 = vunpack.c.l.b16 %v3132
      %v3165 = vunpack.c.l.b16 %v3133
      %v3166 = vunpack.c.l.b16 %v3134
      %v3167 = vunpack.c.l.b16 %v3135
      %v3168 = vunpack.c.l.b16 %v3136
      %v3169 = vunpack.c.l.b16 %v3137
      %v3170 = vunpack.c.l.b16 %v3138
      %v3171 = vunpack.c.l.b16 %v3139
      %v3172 = vunpack.c.l.b16 %v3140
      %v3173 = vunpack.c.l.b16 %v3141
      %v3174 = vunpack.c.l.b16 %v3142
      %v3175 = vunpack.c.l.b16 %v3143
      %v3176 = vunpack.c.l.b16 %v3144
      %v3177 = vunpack.c.l.b16 %v3145
      %v3178 = vunpack.c.l.b16 %v3146
      %v3179 = vunpack.c.l.b16 %v3147
      %v3180 = vpack.c.b16 %v3165, %v3164
      %v3181 = vpack.c.b16 %v3167, %v3166
      %v3182 = vpack.c.b16 %v3169, %v3168
      %v3183 = vpack.c.b16 %v3171, %v3170
      %v3184 = vpack.c.b16 %v3173, %v3172
      %v3185 = vpack.c.b16 %v3175, %v3174
      %v3186 = vpack.c.b16 %v3177, %v3176
      %v3187 = vpack.c.b16 %v3179, %v3178
      %3196 = vmatprep.subr.bf16.mxu0 0
      %3197 = vmatpush1.bf16.msra.mxu0 %v3187
      %3198 = vmatprep.subr.bf16.mxu0 0
      %3199 = vmatpush1.bf16.msra.mxu0 %v3186
      %3200 = vmatprep.subr.bf16.mxu0 0
      %3201 = vmatpush1.bf16.msra.mxu0 %v3185
      %3202 = vmatprep.subr.bf16.mxu0 0
      %3203 = vmatpush1.bf16.msra.mxu0 %v3184
      %3204 = vmatprep.subr.bf16.mxu0 0
      %3205 = vmatpush1.bf16.msra.mxu0 %v3183
      %3206 = vmatprep.subr.bf16.mxu0 0
      %3207 = vmatpush1.bf16.msra.mxu0 %v3182
      %3208 = vmatprep.subr.bf16.mxu0 0
      %3209 = vmatpush1.bf16.msra.mxu0 %v3181
      %3210 = vmatprep.subr.bf16.mxu0 0
      %3211 = vmatpush1.bf16.msra.mxu0 %v3180
      %3212 = vmatprep.subr.bf16.mxu0 0
      %3213 = vmatpush2.bf16.msra.mxu0 0
      %3214 = vmatprep.subr.bf16.mxu0 0
      %3215 = vmatpush2.bf16.msra.mxu0 0
      %3216 = vmatprep.subr.bf16.mxu0 0
      %3217 = vmatpush2.bf16.msra.mxu0 0
      %3218 = vmatprep.subr.bf16.mxu0 0
      %3219 = vmatpush2.bf16.msra.mxu0 0
      %3220 = vmatprep.subr.bf16.mxu0 0
      %3221 = vmatpush2.bf16.msra.mxu0 0
      %3222 = vmatprep.subr.bf16.mxu0 0
      %3223 = vmatpush2.bf16.msra.mxu0 0
      %3224 = vmatprep.subr.bf16.mxu0 0
      %3225 = vmatpush2.bf16.msra.mxu0 0
      %3226 = vmatprep.subr.bf16.mxu0 0
      %3227 = vmatpush2.bf16.msra.mxu0 0
      %3228 = vmatprep.mubr.bf16.mxu0 0
      %3229 = vmatmul.mubr.bf16.gmra.mxu0 %v3127
      %v3230 = vpop.f32.mrf.mxu0
      %v3231 = vadd.f32 0.0, %v3230
      %v3232 = vpop.f32.mrf.mxu0
      %v3233 = vpop.f32.mrf.mxu0
      %v3234 = vadd.f32 0.0, %v3233
      %v3235 = vpop.f32.mrf.mxu0
      %3236 = vmatprep.mubr.bf16.mxu0 0
      %3237 = vmatmul.mubr.bf16.gmra.mxu0 %v3128
      %v3238 = vpop.f32.mrf.mxu0
      %v3239 = vadd.f32 0.0, %v3238
      %v3240 = vpop.f32.mrf.mxu0
      %v3241 = vpop.f32.mrf.mxu0
      %v3242 = vadd.f32 0.0, %v3241
      %v3243 = vpop.f32.mrf.mxu0
      %3244 = vmatprep.mubr.bf16.mxu0 0
      %3245 = vmatmul.mubr.bf16.gmra.mxu0 %v3129
      %v3246 = vpop.f32.mrf.mxu0
      %v3247 = vadd.f32 0.0, %v3246
      %v3248 = vpop.f32.mrf.mxu0
      %v3249 = vpop.f32.mrf.mxu0
      %v3250 = vadd.f32 0.0, %v3249
      %v3251 = vpop.f32.mrf.mxu0
      %3252 = vmatprep.mubr.bf16.mxu0 0
      %3253 = vmatmul.mubr.bf16.gmra.mxu0 %v3130
      %v3254 = vpop.f32.mrf.mxu0
      %v3255 = vadd.f32 0.0, %v3254
      %v3256 = vpop.f32.mrf.mxu0
      %v3257 = vpop.f32.mrf.mxu0
      %v3258 = vadd.f32 0.0, %v3257
      %v3259 = vpop.f32.mrf.mxu0
      %3260 = vdwg.mxu0
      %v3261 = vadd.f32 %v3111, %v3231
      %v3262 = vadd.f32 %v3112, %v3234
      %v3263 = vadd.f32 %v3113, %v3239
      %v3264 = vadd.f32 %v3114, %v3242
      %v3265 = vadd.f32 %v3115, %v3247
      %v3266 = vadd.f32 %v3116, %v3250
      %v3267 = vadd.f32 %v3117, %v3255
      %v3268 = vadd.f32 %v3118, %v3258
      %v3269 = vld [vmem:[%s5] sm:$0x1]
      %v3271 = vlaneseq
      %v3272 = vshrl.u32 %v3271, 7
      %v3273 = vsub.s32 0, %v3272
      %v3274 = vrot.slane %v3269, %v3273
      %v3276 = vmul.f32 %v3261, %v3274
      %v3277 = vmul.f32 %v3262, %v3274
      %v3278 = vmul.f32 %v3263, %v3274
      %v3279 = vmul.f32 %v3264, %v3274
      %v3280 = vmul.f32 %v3265, %v3274
      %v3281 = vmul.f32 %v3266, %v3274
      %v3282 = vmul.f32 %v3267, %v3274
      %v3283 = vmul.f32 %v3268, %v3274
      %v3284 = vld [vmem:[%s6] sm:$0x1]
      %v3286 = vlaneseq
      %v3287 = vshrl.u32 %v3286, 7
      %v3288 = vsub.s32 0, %v3287
      %v3289 = vrot.slane %v3284, %v3288
      %v3291 = vadd.f32 %v3276, %v3289
      %v3292 = vadd.f32 %v3277, %v3289
      %v3293 = vadd.f32 %v3278, %v3289
      %v3294 = vadd.f32 %v3279, %v3289
      %v3295 = vadd.f32 %v3280, %v3289
      %v3296 = vadd.f32 %v3281, %v3289
      %v3297 = vadd.f32 %v3282, %v3289
      %v3298 = vadd.f32 %v3283, %v3289
      %v3299 = vmax.f32 %v3291, 0.0
      %v3300 = vmax.f32 %v3292, 0.0
      %v3301 = vmax.f32 %v3293, 0.0
      %v3302 = vmax.f32 %v3294, 0.0
      %v3303 = vmax.f32 %v3295, 0.0
      %v3304 = vmax.f32 %v3296, 0.0
      %v3305 = vmax.f32 %v3297, 0.0
      %v3306 = vmax.f32 %v3298, 0.0
      %v3307 = vld [vmem:[%s7] sm:$0xf]
      %v3308 = vld [vmem:[%s7 + $0x4] sm:$0xf]
      %v3309 = vld [vmem:[%s7 + $0x8] sm:$0xf]
      %v3310 = vld [vmem:[%s7 + $0xc] sm:$0xf]
      %v3311 = vld [vmem:[%s7 + $0x10] sm:$0xf]
      %v3312 = vld [vmem:[%s7 + $0x14] sm:$0xf]
      %v3313 = vld [vmem:[%s7 + $0x18] sm:$0xf]
      %v3314 = vld [vmem:[%s7 + $0x1c] sm:$0xf]
      %v3315 = vld [vmem:[%s7 + $0x20] sm:$0xf]
      %v3316 = vld [vmem:[%s7 + $0x24] sm:$0xf]
      %v3317 = vld [vmem:[%s7 + $0x28] sm:$0xf]
      %v3318 = vld [vmem:[%s7 + $0x2c] sm:$0xf]
      %v3319 = vld [vmem:[%s7 + $0x30] sm:$0xf]
      %v3320 = vld [vmem:[%s7 + $0x34] sm:$0xf]
      %v3321 = vld [vmem:[%s7 + $0x38] sm:$0xf]
      %v3322 = vld [vmem:[%s7 + $0x3c] sm:$0xf]
      %v3323 = vld [vmem:[%s8] sm:$0x1]
      %v3325 = vlaneseq
      %v3326 = vshrl.u32 %v3325, 7
      %v3327 = vsub.s32 0, %v3326
      %v3328 = vrot.slane %v3323, %v3327
      %v3346 = vunpack.c.l.b16 %v3307
      %v3347 = vunpack.c.l.b16 %v3308
      %v3348 = vunpack.c.l.b16 %v3309
      %v3349 = vunpack.c.l.b16 %v3310
      %v3350 = vunpack.c.l.b16 %v3311
      %v3351 = vunpack.c.l.b16 %v3312
      %v3352 = vunpack.c.l.b16 %v3313
      %v3353 = vunpack.c.l.b16 %v3314
      %v3354 = vunpack.c.l.b16 %v3315
      %v3355 = vunpack.c.l.b16 %v3316
      %v3356 = vunpack.c.l.b16 %v3317
      %v3357 = vunpack.c.l.b16 %v3318
      %v3358 = vunpack.c.l.b16 %v3319
      %v3359 = vunpack.c.l.b16 %v3320
      %v3360 = vunpack.c.l.b16 %v3321
      %v3361 = vunpack.c.l.b16 %v3322
      %v3362 = vpack.c.b16 %v3347, %v3346
      %v3363 = vpack.c.b16 %v3349, %v3348
      %v3364 = vpack.c.b16 %v3351, %v3350
      %v3365 = vpack.c.b16 %v3353, %v3352
      %v3366 = vpack.c.b16 %v3355, %v3354
      %v3367 = vpack.c.b16 %v3357, %v3356
      %v3368 = vpack.c.b16 %v3359, %v3358
      %v3369 = vpack.c.b16 %v3361, %v3360
      %3378 = vmatprep.subr.bf16.mxu0 0
      %3379 = vmatpush1.bf16.msra.mxu0 %v3369
      %3380 = vmatprep.subr.bf16.mxu0 0
      %3381 = vmatpush1.bf16.msra.mxu0 %v3368
      %3382 = vmatprep.subr.bf16.mxu0 0
      %3383 = vmatpush1.bf16.msra.mxu0 %v3367
      %3384 = vmatprep.subr.bf16.mxu0 0
      %3385 = vmatpush1.bf16.msra.mxu0 %v3366
      %3386 = vmatprep.subr.bf16.mxu0 0
      %3387 = vmatpush1.bf16.msra.mxu0 %v3365
      %3388 = vmatprep.subr.bf16.mxu0 0
      %3389 = vmatpush1.bf16.msra.mxu0 %v3364
      %3390 = vmatprep.subr.bf16.mxu0 0
      %3391 = vmatpush1.bf16.msra.mxu0 %v3363
      %3392 = vmatprep.subr.bf16.mxu0 0
      %3393 = vmatpush1.bf16.msra.mxu0 %v3362
      %3394 = vmatprep.subr.bf16.mxu0 0
      %3395 = vmatpush2.bf16.msra.mxu0 0
      %3396 = vmatprep.subr.bf16.mxu0 0
      %3397 = vmatpush2.bf16.msra.mxu0 0
      %3398 = vmatprep.subr.bf16.mxu0 0
      %3399 = vmatpush2.bf16.msra.mxu0 0
      %3400 = vmatprep.subr.bf16.mxu0 0
      %3401 = vmatpush2.bf16.msra.mxu0 0
      %3402 = vmatprep.subr.bf16.mxu0 0
      %3403 = vmatpush2.bf16.msra.mxu0 0
      %3404 = vmatprep.subr.bf16.mxu0 0
      %3405 = vmatpush2.bf16.msra.mxu0 0
      %3406 = vmatprep.subr.bf16.mxu0 0
      %3407 = vmatpush2.bf16.msra.mxu0 0
      %3408 = vmatprep.subr.bf16.mxu0 0
      %3409 = vmatpush2.bf16.msra.mxu0 0
      %3410 = vmatprep.mubr.bf16.mxu0 0
      %3411 = vmatmul.mubr.bf16.gmra.mxu0 %v1153
      %v3412 = vpop.f32.mrf.mxu0
      %v3413 = vadd.f32 %v3328, %v3412
      %v3414 = vpop.f32.mrf.mxu0
      %v3415 = vpop.f32.mrf.mxu0
      %v3416 = vadd.f32 %v3328, %v3415
      %v3417 = vpop.f32.mrf.mxu0
      %3418 = vmatprep.mubr.bf16.mxu0 0
      %3419 = vmatmul.mubr.bf16.gmra.mxu0 %v1154
      %v3420 = vpop.f32.mrf.mxu0
      %v3421 = vadd.f32 %v3328, %v3420
      %v3422 = vpop.f32.mrf.mxu0
      %v3423 = vpop.f32.mrf.mxu0
      %v3424 = vadd.f32 %v3328, %v3423
      %v3425 = vpop.f32.mrf.mxu0
      %3426 = vmatprep.mubr.bf16.mxu0 0
      %3427 = vmatmul.mubr.bf16.gmra.mxu0 %v1155
      %v3428 = vpop.f32.mrf.mxu0
      %v3429 = vadd.f32 %v3328, %v3428
      %v3430 = vpop.f32.mrf.mxu0
      %v3431 = vpop.f32.mrf.mxu0
      %v3432 = vadd.f32 %v3328, %v3431
      %v3433 = vpop.f32.mrf.mxu0
      %3434 = vmatprep.mubr.bf16.mxu0 0
      %3435 = vmatmul.mubr.bf16.gmra.mxu0 %v1156
      %v3436 = vpop.f32.mrf.mxu0
      %v3437 = vadd.f32 %v3328, %v3436
      %v3438 = vpop.f32.mrf.mxu0
      %v3439 = vpop.f32.mrf.mxu0
      %v3440 = vadd.f32 %v3328, %v3439
      %v3441 = vpop.f32.mrf.mxu0
      %3442 = vdwg.mxu0
      %v3443 = vadd.f32 %v3299, %v3413
      %v3444 = vadd.f32 %v3300, %v3416
      %v3445 = vadd.f32 %v3301, %v3421
      %v3446 = vadd.f32 %v3302, %v3424
      %v3447 = vadd.f32 %v3303, %v3429
      %v3448 = vadd.f32 %v3304, %v3432
      %v3449 = vadd.f32 %v3305, %v3437
      %v3450 = vadd.f32 %v3306, %v3440
      %3451 = vst [vmem:[%s332] sm:$0xff] %v3443
      %3452 = vst [vmem:[%s332 + $0x8] sm:$0xff] %v3444
      %3453 = vst [vmem:[%s332 + $0x10] sm:$0xff] %v3445
      %3454 = vst [vmem:[%s332 + $0x18] sm:$0xff] %v3446
      %3455 = vst [vmem:[%s332 + $0x20] sm:$0xff] %v3447
      %3456 = vst [vmem:[%s332 + $0x28] sm:$0xff] %v3448
      %3457 = vst [vmem:[%s332 + $0x30] sm:$0xff] %v3449
      %3458 = vst [vmem:[%s332 + $0x38] sm:$0xff] %v3450
      %p3459 = scmp.lt.s32.totalorder %s20, 1
      %s3460 = scalar_select %p3459, %s20, 1
      %s3461 = smul.addr %s3460, 8
      %s3462 = smul.addr %s3461, 8
      %s3463 = scalar_lea.vmem %s9, %s3462
      // Predicated region
      $region57: #{down_forward.1} parent=55 // pred_check
        %p3464 = pneg %p232
      $region58: #{down_forward.1} parent=55 // pred_check_branch
        %3466 = sbr.rel (%p3464) target = $region60
      $region59: #{down_forward.1} parent=55 // pred_region
        _
      $region60: #{down_forward.1} parent=55 // pred_fallthru
        _
    $region56: #{down_forward.1} parent=5 // pred_fallthru
      _
    %p3467 = scmp.le.s32.totalorder 2, %s15
    // Predicated region
    $region61: #{down_forward.1} parent=5 // pred_check
      %p3468 = pneg %p3467
    $region62: #{down_forward.1} parent=5 // pred_check_branch
      %3470 = sbr.rel (%p3468) target = $region64
    $region63: #{down_forward.1} parent=5 // pred_region
      %s3471 = ssub.s32 %s15, 2
      // Predicated region
      $region65: #{down_forward.1} parent=63 // pred_check
        %p3472 = pneg %p238
      $region66: #{down_forward.1} parent=63 // pred_check_branch
        %3474 = sbr.rel (%p3472) target = $region68
      $region67: #{down_forward.1} parent=63 // pred_region
        %p3475 = scmp.lt.s32.totalorder %s21, 1
        %s3476 = scalar_select %p3475, %s21, 1
        %s3477 = smul.addr %s3476, 8
        %s3478 = smul.addr %s3477, 8
        %s3479 = scalar_lea.vmem %s9, %s3478
      $region68: #{down_forward.1} parent=63 // pred_fallthru
        _
    $region64: #{down_forward.1} parent=5 // pred_fallthru
      _
  $region6: #{down_forward.1} parent=0 // loop_footer
    %s19 = sadd.s32 1, %s15
  $region7: #{down_forward.1} parent=0 // loop_footer_branch
    %14 = sbr.rel target = $region3
  $region8: #{down_forward.1} parent=0 // loop_exit
    _

</llo_original>
